<compile_context>
chip_gen: v7x
topology: tpu7x:2x2x1
jax: 0.10.0
libtpu: 0.0.40
codegen_flags: <defaults>
</compile_context>

<pallas_src>
import jax
import jax.numpy as jnp
import numpy as np
from jax.experimental import pallas as pl
from jax.experimental.pallas import tpu as pltpu

NUM_GROUPS = 32
EPS = 1e-5


# --------------------------------- kernel ------------------------------------

def _attn_kernel(x_ref, g_ref, b_ref, a_cg_ref, a_gc_ref,
                 wq_ref, bq_ref, wk_ref, bk_ref, wv_ref, bv_ref,
                 wp_ref, bp_ref, out_ref):
    _, h, w, c = x_ref.shape
    hw = h * w

    xf = x_ref[0].reshape(hw, c).astype(jnp.float32)             # (HW, C)

    # ---- GroupNorm(32) (stats via tiny precomputed one-hot matmuls) --------
    cg = c // NUM_GROUPS
    count = float(hw * cg)
    s1 = jnp.sum(xf, axis=0, keepdims=True)                      # (1, C)
    s2 = jnp.sum(xf * xf, axis=0, keepdims=True)                 # (1, C)
    g_mean = jnp.dot(s1, a_cg_ref[...], preferred_element_type=jnp.float32) / count
    g_msq = jnp.dot(s2, a_cg_ref[...], preferred_element_type=jnp.float32) / count
    g_var = jnp.maximum(g_msq - g_mean * g_mean, 0.0)            # clamp cancellation
    g_inv = jax.lax.rsqrt(g_var + EPS)
    mean_c = jnp.dot(g_mean, a_gc_ref[...], preferred_element_type=jnp.float32)
    inv_c = jnp.dot(g_inv, a_gc_ref[...], preferred_element_type=jnp.float32)
    hn = (xf - mean_c) * inv_c * g_ref[...] + b_ref[...]         # (HW, C) f32

    # ---- q/k/v 1x1 projections (bf16 operands, f32 accumulation) -----------
    hn_b = hn.astype(jnp.bfloat16)
    q = jnp.dot(hn_b, wq_ref[...], preferred_element_type=jnp.float32) + bq_ref[...]
    k = jnp.dot(hn_b, wk_ref[...], preferred_element_type=jnp.float32) + bk_ref[...]
    v = jnp.dot(hn_b, wv_ref[...], preferred_element_type=jnp.float32) + bv_ref[...]

    # ---- scaled dot-product attention over the HW positions ----------------
    scale = float(c) ** -0.5                                     # == int(C) ** (-0.5)
    scores = jax.lax.dot_general(
        q.astype(jnp.bfloat16), k.astype(jnp.bfloat16),
        dimension_numbers=(((1,), (1,)), ((), ())),              # q @ k^T
        preferred_element_type=jnp.float32) * scale              # (HW, HW)
    scores = scores - jnp.max(scores, axis=-1, keepdims=True)
    p = jnp.exp(scores)
    p = p * pl.reciprocal(jnp.sum(p, axis=-1, keepdims=True), approx=True)

    attn = jnp.dot(p.astype(jnp.bfloat16), v.astype(jnp.bfloat16),
                   preferred_element_type=jnp.float32)           # (HW, C)

    # ---- output 1x1 projection + residual -----------------------------------
    h_out = jnp.dot(attn.astype(jnp.bfloat16), wp_ref[...],
                    preferred_element_type=jnp.float32) + bp_ref[...]
    out_ref[0] = (xf + h_out).reshape(h, w, c).astype(out_ref.dtype)


# --------------------------------- wrapper ------------------------------------

def attn_block_forward(x, params):
    n, h, w, c = x.shape
    assert c % NUM_GROUPS == 0, "GroupNorm(32, C) requires C % 32 == 0"

    g = NUM_GROUPS
    cg = c // g
    ch = np.arange(c)
    a_cg = jnp.asarray((ch[:, None] // cg) == np.arange(g)[None, :], jnp.float32)  # (C, G)
    a_gc = jnp.asarray(np.asarray(a_cg).T, jnp.float32)                            # (G, C)

    bf = lambda a: a.astype(jnp.bfloat16)                       # bf16 weights for the MXU

    def full(shape):
        return pl.BlockSpec(shape, lambda i, _n=len(shape): (0,) * _n)

    return pl.pallas_call(
        _attn_kernel,
        out_shape=jax.ShapeDtypeStruct((n, h, w, c), jnp.float32),
        grid=(n,),
        in_specs=[
            pl.BlockSpec((1, h, w, c), lambda i: (i, 0, 0, 0)),   # x
            full((1, c)), full((1, c)),                           # GN gamma / beta
            full((c, g)), full((g, c)),                           # group one-hots
            full((c, c)), full((1, c)),                           # wq / bq
            full((c, c)), full((1, c)),                           # wk / bk
            full((c, c)), full((1, c)),                           # wv / bv
            full((c, c)), full((1, c)),                           # wp / bp
        ],
        out_specs=pl.BlockSpec((1, h, w, c), lambda i: (i, 0, 0, 0)),
        compiler_params=pltpu.CompilerParams(dimension_semantics=("parallel",)),
    )(x, params["gn_g"], params["gn_b"], a_cg, a_gc,
      bf(params["wq"]), params["bq"], bf(params["wk"]), params["bk"],
      bf(params["wv"]), params["bv"], bf(params["wp"]), params["bp"])


# ------------------------- params + pure-JAX reference -------------------------

def init_params(key, c):
    ks = jax.random.split(key, 10)
    f = lambda k, shape, s: jax.random.normal(k, shape, jnp.float32) * s
    return {
        "gn_g": 1.0 + f(ks[0], (1, c), 0.1),
        "gn_b": f(ks[1], (1, c), 0.1),
        "wq": f(ks[2], (c, c), 0.05), "bq": f(ks[3], (1, c), 0.05),
        "wk": f(ks[4], (c, c), 0.05), "bk": f(ks[5], (1, c), 0.05),
        "wv": f(ks[6], (c, c), 0.05), "bv": f(ks[7], (1, c), 0.05),
        "wp": f(ks[8], (c, c), 0.05), "bp": f(ks[9], (1, c), 0.05),
    }


def ref_forward(x, params):
    n, h, w, c = x.shape
    xg = x.reshape(n, h, w, NUM_GROUPS, c // NUM_GROUPS)
    mean = xg.mean(axis=(1, 2, 4), keepdims=True)
    var = xg.var(axis=(1, 2, 4), keepdims=True)
    hn = ((xg - mean) / jnp.sqrt(var + EPS)).reshape(n, h, w, c)
    hn = hn * params["gn_g"].reshape(1, 1, 1, c) + params["gn_b"].reshape(1, 1, 1, c)
    hn = hn.reshape(n, h * w, c)
    q = hn @ params["wq"] + params["bq"]
    k = hn @ params["wk"] + params["bk"]
    v = hn @ params["wv"] + params["bv"]
    scores = jnp.einsum("nqc,nkc->nqk", q, k) * (float(c) ** -0.5)
    p = jax.nn.softmax(scores, axis=-1)
    attn = jnp.einsum("nqk,nkc->nqc", p, v)
    h_out = attn @ params["wp"] + params["bp"]
    return x + h_out.reshape(n, h, w, c)


if __name__ == "__main__":
    N, H, W, C = 2, 16, 16, 128          # GroupNorm(32, C) requires C % 32 == 0

    key = jax.random.PRNGKey(0)
    kx, kp = jax.random.split(key)
    x = jax.random.normal(kx, (N, H, W, C), jnp.float32)        # NHWC
    params = init_params(kp, C)

    out = jax.block_until_ready(attn_block_forward(x, params))
    ref = jax.block_until_ready(ref_forward(x, params))
    assert out.shape == (N, H, W, C)
    # bf16 MXU operands (f32 accumulation) => slightly looser tolerance than pure f32.
    np.testing.assert_allclose(np.asarray(out), np.asarray(ref), rtol=1e-2, atol=1e-2)
    print("KERNEL_OK")
</pallas_src>

<mosaic_0001>
module attributes {stable_mosaic.version = 11 : i64} {
  func.func @_attn_kernel(%arg0: i32, %arg1: memref<1x16x16x128xf32, #tpu.memory_space<vmem>>, %arg2: memref<1x128xf32, #tpu.memory_space<vmem>>, %arg3: memref<1x128xf32, #tpu.memory_space<vmem>>, %arg4: memref<128x32xf32, #tpu.memory_space<vmem>>, %arg5: memref<32x128xf32, #tpu.memory_space<vmem>>, %arg6: memref<128x128xbf16, #tpu.memory_space<vmem>>, %arg7: memref<1x128xf32, #tpu.memory_space<vmem>>, %arg8: memref<128x128xbf16, #tpu.memory_space<vmem>>, %arg9: memref<1x128xf32, #tpu.memory_space<vmem>>, %arg10: memref<128x128xbf16, #tpu.memory_space<vmem>>, %arg11: memref<1x128xf32, #tpu.memory_space<vmem>>, %arg12: memref<128x128xbf16, #tpu.memory_space<vmem>>, %arg13: memref<1x128xf32, #tpu.memory_space<vmem>>, %arg14: memref<1x16x16x128xf32, #tpu.memory_space<vmem>>) attributes {dimension_semantics = [#tpu.dimension_semantics<parallel>], iteration_bounds = array<i64: 2>, scalar_prefetch = 0 : i64, scratch_operands = 0 : i64, tpu.core_type = #tpu.core_type<tc>, window_params = [{transform_indices = @transform_0, window_bounds = array<i64: 1, 16, 16, 128>}, {pipeline_mode = #tpu.pipeline_mode<synchronous>, transform_indices = @transform_1, window_bounds = array<i64: 1, 128>}, {pipeline_mode = #tpu.pipeline_mode<synchronous>, transform_indices = @transform_2, window_bounds = array<i64: 1, 128>}, {pipeline_mode = #tpu.pipeline_mode<synchronous>, transform_indices = @transform_3, window_bounds = array<i64: 128, 32>}, {pipeline_mode = #tpu.pipeline_mode<synchronous>, transform_indices = @transform_4, window_bounds = array<i64: 32, 128>}, {pipeline_mode = #tpu.pipeline_mode<synchronous>, transform_indices = @transform_5, window_bounds = array<i64: 128, 128>}, {pipeline_mode = #tpu.pipeline_mode<synchronous>, transform_indices = @transform_6, window_bounds = array<i64: 1, 128>}, {pipeline_mode = #tpu.pipeline_mode<synchronous>, transform_indices = @transform_7, window_bounds = array<i64: 128, 128>}, {pipeline_mode = #tpu.pipeline_mode<synchronous>, transform_indices = @transform_8, window_bounds = array<i64: 1, 128>}, {pipeline_mode = #tpu.pipeline_mode<synchronous>, transform_indices = @transform_9, window_bounds = array<i64: 128, 128>}, {pipeline_mode = #tpu.pipeline_mode<synchronous>, transform_indices = @transform_10, window_bounds = array<i64: 1, 128>}, {pipeline_mode = #tpu.pipeline_mode<synchronous>, transform_indices = @transform_11, window_bounds = array<i64: 128, 128>}, {pipeline_mode = #tpu.pipeline_mode<synchronous>, transform_indices = @transform_12, window_bounds = array<i64: 1, 128>}, {transform_indices = @transform_13, window_bounds = array<i64: 1, 16, 16, 128>}]} {
    %c0 = arith.constant 0 : index
    %c0_0 = arith.constant 0 : index
    %c0_1 = arith.constant 0 : index
    %c0_2 = arith.constant 0 : index
    %0 = vector.load %arg1[%c0, %c0_0, %c0_1, %c0_2] : memref<1x16x16x128xf32, #tpu.memory_space<vmem>>, vector<1x16x16x128xf32>
    %1 = vector.shape_cast %0 : vector<1x16x16x128xf32> to vector<16x16x128xf32>
    %2 = vector.shape_cast %1 : vector<16x16x128xf32> to vector<256x128xf32>
    %cst = arith.constant dense<0.000000e+00> : vector<128xf32>
    %3 = vector.multi_reduction <add>, %2, %cst [0] : vector<256x128xf32> to vector<128xf32>
    %4 = vector.shape_cast %3 : vector<128xf32> to vector<1x128xf32>
    %5 = arith.mulf %2, %2 : vector<256x128xf32>
    %cst_3 = arith.constant dense<0.000000e+00> : vector<128xf32>
    %6 = vector.multi_reduction <add>, %5, %cst_3 [0] : vector<256x128xf32> to vector<128xf32>
    %7 = vector.shape_cast %6 : vector<128xf32> to vector<1x128xf32>
    %c0_4 = arith.constant 0 : index
    %c0_5 = arith.constant 0 : index
    %8 = vector.load %arg4[%c0_4, %c0_5] : memref<128x32xf32, #tpu.memory_space<vmem>>, vector<128x32xf32>
    %cst_6 = arith.constant dense<0.000000e+00> : vector<1x32xf32>
    %9 = tpu.matmul %4, %8, %cst_6 {dimension_numbers = #tpu.dot_dimension_numbers<[1], [0], [0], [1], [0, 0, 1, 1], [], []>} : vector<1x128xf32>, vector<128x32xf32>, vector<1x32xf32> -> vector<1x32xf32>
    %cst_7 = arith.constant 1.024000e+03 : f32
    %10 = vector.broadcast %cst_7 : f32 to vector<1x32xf32>
    %11 = arith.divf %9, %10 : vector<1x32xf32>
    %c0_8 = arith.constant 0 : index
    %c0_9 = arith.constant 0 : index
    %12 = vector.load %arg4[%c0_8, %c0_9] : memref<128x32xf32, #tpu.memory_space<vmem>>, vector<128x32xf32>
    %cst_10 = arith.constant dense<0.000000e+00> : vector<1x32xf32>
    %13 = tpu.matmul %7, %12, %cst_10 {dimension_numbers = #tpu.dot_dimension_numbers<[1], [0], [0], [1], [0, 0, 1, 1], [], []>} : vector<1x128xf32>, vector<128x32xf32>, vector<1x32xf32> -> vector<1x32xf32>
    %cst_11 = arith.constant 1.024000e+03 : f32
    %14 = vector.broadcast %cst_11 : f32 to vector<1x32xf32>
    %15 = arith.divf %13, %14 : vector<1x32xf32>
    %16 = arith.mulf %11, %11 : vector<1x32xf32>
    %17 = arith.subf %15, %16 : vector<1x32xf32>
    %cst_12 = arith.constant 0.000000e+00 : f32
    %18 = vector.broadcast %cst_12 : f32 to vector<1x32xf32>
    %19 = arith.maximumf %17, %18 : vector<1x32xf32>
    %cst_13 = arith.constant 9.99999974E-6 : f32
    %20 = vector.broadcast %cst_13 : f32 to vector<1x32xf32>
    %21 = arith.addf %19, %20 : vector<1x32xf32>
    %22 = math.rsqrt %21 : vector<1x32xf32>
    %c0_14 = arith.constant 0 : index
    %c0_15 = arith.constant 0 : index
    %23 = vector.load %arg5[%c0_14, %c0_15] : memref<32x128xf32, #tpu.memory_space<vmem>>, vector<32x128xf32>
    %cst_16 = arith.constant dense<0.000000e+00> : vector<1x128xf32>
    %24 = tpu.matmul %11, %23, %cst_16 {dimension_numbers = #tpu.dot_dimension_numbers<[1], [0], [0], [1], [0, 0, 1, 1], [], []>} : vector<1x32xf32>, vector<32x128xf32>, vector<1x128xf32> -> vector<1x128xf32>
    %c0_17 = arith.constant 0 : index
    %c0_18 = arith.constant 0 : index
    %25 = vector.load %arg5[%c0_17, %c0_18] : memref<32x128xf32, #tpu.memory_space<vmem>>, vector<32x128xf32>
    %cst_19 = arith.constant dense<0.000000e+00> : vector<1x128xf32>
    %26 = tpu.matmul %22, %25, %cst_19 {dimension_numbers = #tpu.dot_dimension_numbers<[1], [0], [0], [1], [0, 0, 1, 1], [], []>} : vector<1x32xf32>, vector<32x128xf32>, vector<1x128xf32> -> vector<1x128xf32>
    %27 = vector.broadcast %24 : vector<1x128xf32> to vector<256x128xf32>
    %28 = arith.subf %2, %27 : vector<256x128xf32>
    %29 = vector.broadcast %26 : vector<1x128xf32> to vector<256x128xf32>
    %30 = arith.mulf %28, %29 : vector<256x128xf32>
    %c0_20 = arith.constant 0 : index
    %c0_21 = arith.constant 0 : index
    %31 = vector.load %arg2[%c0_20, %c0_21] : memref<1x128xf32, #tpu.memory_space<vmem>>, vector<1x128xf32>
    %32 = vector.broadcast %31 : vector<1x128xf32> to vector<256x128xf32>
    %33 = arith.mulf %30, %32 : vector<256x128xf32>
    %c0_22 = arith.constant 0 : index
    %c0_23 = arith.constant 0 : index
    %34 = vector.load %arg3[%c0_22, %c0_23] : memref<1x128xf32, #tpu.memory_space<vmem>>, vector<1x128xf32>
    %35 = vector.broadcast %34 : vector<1x128xf32> to vector<256x128xf32>
    %36 = arith.addf %33, %35 : vector<256x128xf32>
    %37 = arith.truncf %36 : vector<256x128xf32> to vector<256x128xbf16>
    %c0_24 = arith.constant 0 : index
    %c0_25 = arith.constant 0 : index
    %38 = vector.load %arg6[%c0_24, %c0_25] : memref<128x128xbf16, #tpu.memory_space<vmem>>, vector<128x128xbf16>
    %cst_26 = arith.constant dense<0.000000e+00> : vector<256x128xf32>
    %39 = tpu.matmul %37, %38, %cst_26 {dimension_numbers = #tpu.dot_dimension_numbers<[1], [0], [0], [1], [0, 0, 1, 1], [], []>} : vector<256x128xbf16>, vector<128x128xbf16>, vector<256x128xf32> -> vector<256x128xf32>
    %c0_27 = arith.constant 0 : index
    %c0_28 = arith.constant 0 : index
    %40 = vector.load %arg7[%c0_27, %c0_28] : memref<1x128xf32, #tpu.memory_space<vmem>>, vector<1x128xf32>
    %41 = vector.broadcast %40 : vector<1x128xf32> to vector<256x128xf32>
    %42 = arith.addf %39, %41 : vector<256x128xf32>
    %c0_29 = arith.constant 0 : index
    %c0_30 = arith.constant 0 : index
    %43 = vector.load %arg8[%c0_29, %c0_30] : memref<128x128xbf16, #tpu.memory_space<vmem>>, vector<128x128xbf16>
    %cst_31 = arith.constant dense<0.000000e+00> : vector<256x128xf32>
    %44 = tpu.matmul %37, %43, %cst_31 {dimension_numbers = #tpu.dot_dimension_numbers<[1], [0], [0], [1], [0, 0, 1, 1], [], []>} : vector<256x128xbf16>, vector<128x128xbf16>, vector<256x128xf32> -> vector<256x128xf32>
    %c0_32 = arith.constant 0 : index
    %c0_33 = arith.constant 0 : index
    %45 = vector.load %arg9[%c0_32, %c0_33] : memref<1x128xf32, #tpu.memory_space<vmem>>, vector<1x128xf32>
    %46 = vector.broadcast %45 : vector<1x128xf32> to vector<256x128xf32>
    %47 = arith.addf %44, %46 : vector<256x128xf32>
    %c0_34 = arith.constant 0 : index
    %c0_35 = arith.constant 0 : index
    %48 = vector.load %arg10[%c0_34, %c0_35] : memref<128x128xbf16, #tpu.memory_space<vmem>>, vector<128x128xbf16>
    %cst_36 = arith.constant dense<0.000000e+00> : vector<256x128xf32>
    %49 = tpu.matmul %37, %48, %cst_36 {dimension_numbers = #tpu.dot_dimension_numbers<[1], [0], [0], [1], [0, 0, 1, 1], [], []>} : vector<256x128xbf16>, vector<128x128xbf16>, vector<256x128xf32> -> vector<256x128xf32>
    %c0_37 = arith.constant 0 : index
    %c0_38 = arith.constant 0 : index
    %50 = vector.load %arg11[%c0_37, %c0_38] : memref<1x128xf32, #tpu.memory_space<vmem>>, vector<1x128xf32>
    %51 = vector.broadcast %50 : vector<1x128xf32> to vector<256x128xf32>
    %52 = arith.addf %49, %51 : vector<256x128xf32>
    %53 = arith.truncf %42 : vector<256x128xf32> to vector<256x128xbf16>
    %54 = arith.truncf %47 : vector<256x128xf32> to vector<256x128xbf16>
    %cst_39 = arith.constant dense<0.000000e+00> : vector<256x256xf32>
    %55 = tpu.matmul %53, %54, %cst_39 {dimension_numbers = #tpu.dot_dimension_numbers<[1], [1], [0], [0], [0, 0, 1, 0], [], []>} : vector<256x128xbf16>, vector<256x128xbf16>, vector<256x256xf32> -> vector<256x256xf32>
    %cst_40 = arith.constant 0.0883883461 : f32
    %56 = vector.broadcast %cst_40 : f32 to vector<256x256xf32>
    %57 = arith.mulf %55, %56 : vector<256x256xf32>
    %cst_41 = arith.constant dense<0xFF800000> : vector<256xf32>
    %58 = vector.multi_reduction <maximumf>, %57, %cst_41 [1] : vector<256x256xf32> to vector<256xf32>
    %59 = vector.shape_cast %58 : vector<256xf32> to vector<256x1xf32>
    %60 = vector.broadcast %59 : vector<256x1xf32> to vector<256x256xf32>
    %61 = arith.subf %57, %60 : vector<256x256xf32>
    %62 = math.exp %61 : vector<256x256xf32>
    %cst_42 = arith.constant dense<0.000000e+00> : vector<256xf32>
    %63 = vector.multi_reduction <add>, %62, %cst_42 [1] : vector<256x256xf32> to vector<256xf32>
    %64 = vector.shape_cast %63 : vector<256xf32> to vector<256x1xf32>
    %65 = tpu.reciprocal %64 {approx = true} : vector<256x1xf32> -> vector<256x1xf32>
    %66 = vector.broadcast %65 : vector<256x1xf32> to vector<256x256xf32>
    %67 = arith.mulf %62, %66 : vector<256x256xf32>
    %68 = arith.truncf %67 : vector<256x256xf32> to vector<256x256xbf16>
    %69 = arith.truncf %52 : vector<256x128xf32> to vector<256x128xbf16>
    %cst_43 = arith.constant dense<0.000000e+00> : vector<256x128xf32>
    %70 = tpu.matmul %68, %69, %cst_43 {dimension_numbers = #tpu.dot_dimension_numbers<[1], [0], [0], [1], [0, 0, 1, 1], [], []>} : vector<256x256xbf16>, vector<256x128xbf16>, vector<256x128xf32> -> vector<256x128xf32>
    %71 = arith.truncf %70 : vector<256x128xf32> to vector<256x128xbf16>
    %c0_44 = arith.constant 0 : index
    %c0_45 = arith.constant 0 : index
    %72 = vector.load %arg12[%c0_44, %c0_45] : memref<128x128xbf16, #tpu.memory_space<vmem>>, vector<128x128xbf16>
    %cst_46 = arith.constant dense<0.000000e+00> : vector<256x128xf32>
    %73 = tpu.matmul %71, %72, %cst_46 {dimension_numbers = #tpu.dot_dimension_numbers<[1], [0], [0], [1], [0, 0, 1, 1], [], []>} : vector<256x128xbf16>, vector<128x128xbf16>, vector<256x128xf32> -> vector<256x128xf32>
    %c0_47 = arith.constant 0 : index
    %c0_48 = arith.constant 0 : index
    %74 = vector.load %arg13[%c0_47, %c0_48] : memref<1x128xf32, #tpu.memory_space<vmem>>, vector<1x128xf32>
    %75 = vector.broadcast %74 : vector<1x128xf32> to vector<256x128xf32>
    %76 = arith.addf %73, %75 : vector<256x128xf32>
    %77 = arith.addf %2, %76 : vector<256x128xf32>
    %78 = vector.shape_cast %77 : vector<256x128xf32> to vector<16x16x128xf32>
    %c0_49 = arith.constant 0 : index
    %c0_50 = arith.constant 0 : index
    %c0_51 = arith.constant 0 : index
    %c0_52 = arith.constant 0 : index
    %79 = vector.load %arg14[%c0_49, %c0_50, %c0_51, %c0_52] : memref<1x16x16x128xf32, #tpu.memory_space<vmem>>, vector<1x16x16x128xf32>
    %80 = vector.shape_cast %79 : vector<1x16x16x128xf32> to vector<16x16x128xf32>
    %81 = vector.shape_cast %78 : vector<16x16x128xf32> to vector<1x16x16x128xf32>
    tpu.vector_store %arg14[%c0_49, %c0_50, %c0_51, %c0_52], %81 {strides = array<i32>} : memref<1x16x16x128xf32, #tpu.memory_space<vmem>>, vector<1x16x16x128xf32>,
    return
  }
  func.func @transform_0(%arg0: i32) -> (i32, i32, i32, i32) {
    %c0_i32 = arith.constant 0 : i32
    %c0_i32_0 = arith.constant 0 : i32
    %c0_i32_1 = arith.constant 0 : i32
    %c0_i32_2 = arith.constant 0 : i32
    return %arg0, %c0_i32, %c0_i32_0, %c0_i32_1 : i32, i32, i32, i32
  }
  func.func @transform_1(%arg0: i32) -> (i32, i32) {
    %c0_i32 = arith.constant 0 : i32
    %c0_i32_0 = arith.constant 0 : i32
    %c0_i32_1 = arith.constant 0 : i32
    return %c0_i32, %c0_i32_0 : i32, i32
  }
  func.func @transform_2(%arg0: i32) -> (i32, i32) {
    %c0_i32 = arith.constant 0 : i32
    %c0_i32_0 = arith.constant 0 : i32
    %c0_i32_1 = arith.constant 0 : i32
    return %c0_i32, %c0_i32_0 : i32, i32
  }
  func.func @transform_3(%arg0: i32) -> (i32, i32) {
    %c0_i32 = arith.constant 0 : i32
    %c0_i32_0 = arith.constant 0 : i32
    %c0_i32_1 = arith.constant 0 : i32
    return %c0_i32, %c0_i32_0 : i32, i32
  }
  func.func @transform_4(%arg0: i32) -> (i32, i32) {
    %c0_i32 = arith.constant 0 : i32
    %c0_i32_0 = arith.constant 0 : i32
    %c0_i32_1 = arith.constant 0 : i32
    return %c0_i32, %c0_i32_0 : i32, i32
  }
  func.func @transform_5(%arg0: i32) -> (i32, i32) {
    %c0_i32 = arith.constant 0 : i32
    %c0_i32_0 = arith.constant 0 : i32
    %c0_i32_1 = arith.constant 0 : i32
    return %c0_i32, %c0_i32_0 : i32, i32
  }
  func.func @transform_6(%arg0: i32) -> (i32, i32) {
    %c0_i32 = arith.constant 0 : i32
    %c0_i32_0 = arith.constant 0 : i32
    %c0_i32_1 = arith.constant 0 : i32
    return %c0_i32, %c0_i32_0 : i32, i32
  }
  func.func @transform_7(%arg0: i32) -> (i32, i32) {
    %c0_i32 = arith.constant 0 : i32
    %c0_i32_0 = arith.constant 0 : i32
    %c0_i32_1 = arith.constant 0 : i32
    return %c0_i32, %c0_i32_0 : i32, i32
  }
  func.func @transform_8(%arg0: i32) -> (i32, i32) {
    %c0_i32 = arith.constant 0 : i32
    %c0_i32_0 = arith.constant 0 : i32
    %c0_i32_1 = arith.constant 0 : i32
    return %c0_i32, %c0_i32_0 : i32, i32
  }
  func.func @transform_9(%arg0: i32) -> (i32, i32) {
    %c0_i32 = arith.constant 0 : i32
    %c0_i32_0 = arith.constant 0 : i32
    %c0_i32_1 = arith.constant 0 : i32
    return %c0_i32, %c0_i32_0 : i32, i32
  }
  func.func @transform_10(%arg0: i32) -> (i32, i32) {
    %c0_i32 = arith.constant 0 : i32
    %c0_i32_0 = arith.constant 0 : i32
    %c0_i32_1 = arith.constant 0 : i32
    return %c0_i32, %c0_i32_0 : i32, i32
  }
  func.func @transform_11(%arg0: i32) -> (i32, i32) {
    %c0_i32 = arith.constant 0 : i32
    %c0_i32_0 = arith.constant 0 : i32
    %c0_i32_1 = arith.constant 0 : i32
    return %c0_i32, %c0_i32_0 : i32, i32
  }
  func.func @transform_12(%arg0: i32) -> (i32, i32) {
    %c0_i32 = arith.constant 0 : i32
    %c0_i32_0 = arith.constant 0 : i32
    %c0_i32_1 = arith.constant 0 : i32
    return %c0_i32, %c0_i32_0 : i32, i32
  }
  func.func @transform_13(%arg0: i32) -> (i32, i32, i32, i32) {
    %c0_i32 = arith.constant 0 : i32
    %c0_i32_0 = arith.constant 0 : i32
    %c0_i32_1 = arith.constant 0 : i32
    %c0_i32_2 = arith.constant 0 : i32
    return %arg0, %c0_i32, %c0_i32_0, %c0_i32_1 : i32, i32, i32, i32
  }
}

</mosaic_0001>

<llo_original>
// kernel: tpu_custom_call.1
$region0: #{tpu_custom_call.1}
  #allocation0 [shape = 'u32[]', space=smem, size = 0x4, offset = 0x4, fixed_abs, tag = 'smem constant byte address 0x4 - core index']
  #allocation1 [shape = 'u32[144,128]{1,0:T(1,128)}', space=vmem, size = 0x12000, scoped, tag = 'internal scratch']
  %s0 = inlined_call_operand.hbm [shape: f32[2,16,16,128], index: 0, kind: input, shape index: {}]
  %s1 = inlined_call_operand.vmem [shape: f32[1,128], index: 1, kind: input, shape index: {}]
  %s2 = inlined_call_operand.vmem [shape: f32[1,128], index: 2, kind: input, shape index: {}]
  %s3 = inlined_call_operand.vmem [shape: f32[128,32], index: 3, kind: input, shape index: {}]
  %s4 = inlined_call_operand.hbm [shape: f32[32,128], index: 4, kind: input, shape index: {}]
  %s5 = inlined_call_operand.vmem [shape: bf16[128,128], index: 5, kind: input, shape index: {}]
  %s6 = inlined_call_operand.hbm [shape: f32[1,128], index: 6, kind: input, shape index: {}]
  %s7 = inlined_call_operand.vmem [shape: bf16[128,128], index: 7, kind: input, shape index: {}]
  %s8 = inlined_call_operand.hbm [shape: f32[1,128], index: 8, kind: input, shape index: {}]
  %s9 = inlined_call_operand.vmem [shape: bf16[128,128], index: 9, kind: input, shape index: {}]
  %s10 = inlined_call_operand.vmem [shape: f32[1,128], index: 10, kind: input, shape index: {}]
  %s11 = inlined_call_operand.hbm [shape: bf16[128,128], index: 11, kind: input, shape index: {}]
  %s12 = inlined_call_operand.vmem [shape: f32[1,128], index: 12, kind: input, shape index: {}]
  %s13 = inlined_call_operand.hbm [shape: f32[2,16,16,128], index: 13, kind: output, shape index: {}]
  %s14 = sld [smem:[#allocation0]]
  $region105: #{tpu_custom_call.1} parent=0
    _
  %s16 = ssub.s32 1, %s14
  %s17 = scalar_select 0, %s16, %s14
  $region1: #{tpu_custom_call.1} parent=0
    #allocation2 [shape = 'u8[262144]{0}', space=vmem, size = 0x40000, scoped, tag = 'input window, operand 0']
    #allocation3 [shape = 's32[2]{0}', space=sflag, size = 0x8, scoped, tag = 'scoped memory for tpu_custom_call.1']
    #allocation4 [shape = 's32[2]{0}', space=sflag, size = 0x8, scoped, tag = 'scoped memory for tpu_custom_call.1']
    #allocation5 [shape = 'u8[16384]{0}', space=vmem, size = 0x4000, scoped, tag = 'input window, operand 4, single buffered']
    #allocation6 [shape = 's32[1]{0}', space=sflag, size = 0x4, scoped, tag = 'scoped memory for tpu_custom_call.1']
    #allocation7 [shape = 'u8[512]{0}', space=vmem, size = 0x400, scoped, tag = 'input window, operand 6, single buffered']
    #allocation8 [shape = 'u8[512]{0}', space=vmem, size = 0x400, scoped, tag = 'input window, operand 8, single buffered']
    #allocation9 [shape = 's32[1]{0}', space=sflag, size = 0x4, scoped, tag = 'scoped memory for tpu_custom_call.1']
    #allocation10 [shape = 'u8[32768]{0}', space=vmem, size = 0x8000, scoped, tag = 'input window, operand 11, single buffered']
    #allocation11 [shape = 'u8[262144]{0}', space=vmem, size = 0x40000, scoped, tag = 'output window, operand 0']
    %18 = vsyncpa [#allocation3], 0
    %s19 = scalar_lea.sflag [#allocation3], 1
    %20 = vsyncpa %s19, 0
    %21 = vsyncpa [#allocation6], 0
    %22 = vsyncpa [#allocation9], 0
    %23 = vsyncpa [#allocation4], 0
    %s24 = scalar_lea.sflag [#allocation4], 1
    %25 = vsyncpa %s24, 0
    loop: start=0, step=1, limit=4
    $region2: #{tpu_custom_call.1} parent=1 // loop_pre_header
      _
    $region3: #{tpu_custom_call.1} parent=1 // loop_header
      %s27 = sphi 0, %s31
      %p28 = scmp.ge.s32.totalorder %s27, 4
      %s37 = sphi 0, %s39
      %s40 = sphi 0, %s37
      %s41 = sphi 0, %s40
      %s57 = sphi 0, %s41
      %s61 = sphi 0, %s61
      %s63 = sphi 0, %s61
      %s64 = sphi 0, %s63
      %s78 = sphi 0, %s64
      %s82 = sphi 0, %s82
      %s84 = sphi 0, %s82
      %s85 = sphi 0, %s84
      %s99 = sphi 0, %s85
      %s103 = sphi 0, %s103
      %s105 = sphi 0, %s103
      %s106 = sphi 0, %s105
      %s120 = sphi 0, %s106
      %s124 = sphi 0, %s124
      %s126 = sphi 0, %s124
      %s127 = sphi 0, %s126
      %s141 = sphi 0, %s127
      %s145 = sphi 0, %s145
      %s147 = sphi 0, %s145
      %s148 = sphi 0, %s147
      %s162 = sphi 0, %s148
      %s166 = sphi 0, %s166
      %s168 = sphi 0, %s166
      %s169 = sphi 0, %s168
      %s183 = sphi 0, %s169
      %s187 = sphi 0, %s187
      %s189 = sphi 0, %s187
      %s190 = sphi 0, %s189
      %s204 = sphi 0, %s190
      %s208 = sphi 0, %s208
      %s210 = sphi 0, %s208
      %s211 = sphi 0, %s210
      %s225 = sphi 0, %s211
      %s229 = sphi 0, %s229
      %s231 = sphi 0, %s229
      %s232 = sphi 0, %s231
      %s246 = sphi 0, %s232
      %s250 = sphi 0, %s250
      %s252 = sphi 0, %s250
      %s253 = sphi 0, %s252
      %s267 = sphi 0, %s253
      %s271 = sphi 0, %s271
      %s273 = sphi 0, %s271
      %s274 = sphi 0, %s273
      %s288 = sphi 0, %s274
      %s292 = sphi 0, %s292
      %s294 = sphi 0, %s292
      %s295 = sphi 0, %s294
      %s309 = sphi 0, %s295
      %s315 = sphi 0, %s317
      %s318 = sphi 0, %s315
      %s319 = sphi 0, %s318
      %s335 = sphi 0, %s319
    $region4: #{tpu_custom_call.1} parent=1 // loop_header_branch
      %30 = sbr.rel (%p28) target = $region8
    $region5: #{tpu_custom_call.1} parent=1 // loop_body
      %s32 = ssub.s32 %s27, 1
      %s33 = ssub.s32 %s27, 2
      %s34 = sadd.s32 %s27, 1
      %s35 = ssub.s32 %s27, %s34
      %p36 = scmp.eq.s32.totalorder %s35, 0
      %s38 = sadd.s32 %s37, 1
      %s39 = scalar_select %p36, %s37, %s38
      %p42 = pneg %p36
      %p43 = scmp.eq.s32.totalorder %s27, 1
      %p44 = por %p42, %p43
      %p45 = scmp.ne.s32.totalorder %s37, %s40
      %p46 = scmp.eq.s32.totalorder %s27, 0
      %p47 = por %p45, %p46
      %p48 = scmp.ne.s32.totalorder %s37, %s40
      %p49 = scmp.eq.s32.totalorder %s32, 1
      %p50 = por %p48, %p49
      %p51 = scmp.ne.s32.totalorder %s40, %s41
      %p52 = scmp.eq.s32.totalorder %s32, 0
      %p53 = por %p51, %p52
      %p54 = scmp.ne.s32.totalorder %s40, %s41
      %p55 = scmp.eq.s32.totalorder %s33, 1
      %p56 = por %p54, %p55
      %p58 = scmp.ne.s32.totalorder %s41, %s57
      %p59 = scmp.eq.s32.totalorder %s33, 0
      %p60 = por %p58, %p59
      %s62 = sadd.s32 %s61, 1
      %p65 = scmp.eq.s32.totalorder %s27, 1
      %p66 = scmp.ne.s32.totalorder %s61, %s63
      %p67 = scmp.eq.s32.totalorder %s27, 0
      %p68 = por %p66, %p67
      %p69 = scmp.ne.s32.totalorder %s61, %s63
      %p70 = scmp.eq.s32.totalorder %s32, 1
      %p71 = por %p69, %p70
      %p72 = scmp.ne.s32.totalorder %s63, %s64
      %p73 = scmp.eq.s32.totalorder %s32, 0
      %p74 = por %p72, %p73
      %p75 = scmp.ne.s32.totalorder %s63, %s64
      %p76 = scmp.eq.s32.totalorder %s33, 1
      %p77 = por %p75, %p76
      %p79 = scmp.ne.s32.totalorder %s64, %s78
      %p80 = scmp.eq.s32.totalorder %s33, 0
      %p81 = por %p79, %p80
      %s83 = sadd.s32 %s82, 1
      %p86 = scmp.eq.s32.totalorder %s27, 1
      %p87 = scmp.ne.s32.totalorder %s82, %s84
      %p88 = scmp.eq.s32.totalorder %s27, 0
      %p89 = por %p87, %p88
      %p90 = scmp.ne.s32.totalorder %s82, %s84
      %p91 = scmp.eq.s32.totalorder %s32, 1
      %p92 = por %p90, %p91
      %p93 = scmp.ne.s32.totalorder %s84, %s85
      %p94 = scmp.eq.s32.totalorder %s32, 0
      %p95 = por %p93, %p94
      %p96 = scmp.ne.s32.totalorder %s84, %s85
      %p97 = scmp.eq.s32.totalorder %s33, 1
      %p98 = por %p96, %p97
      %p100 = scmp.ne.s32.totalorder %s85, %s99
      %p101 = scmp.eq.s32.totalorder %s33, 0
      %p102 = por %p100, %p101
      %s104 = sadd.s32 %s103, 1
      %p107 = scmp.eq.s32.totalorder %s27, 1
      %p108 = scmp.ne.s32.totalorder %s103, %s105
      %p109 = scmp.eq.s32.totalorder %s27, 0
      %p110 = por %p108, %p109
      %p111 = scmp.ne.s32.totalorder %s103, %s105
      %p112 = scmp.eq.s32.totalorder %s32, 1
      %p113 = por %p111, %p112
      %p114 = scmp.ne.s32.totalorder %s105, %s106
      %p115 = scmp.eq.s32.totalorder %s32, 0
      %p116 = por %p114, %p115
      %p117 = scmp.ne.s32.totalorder %s105, %s106
      %p118 = scmp.eq.s32.totalorder %s33, 1
      %p119 = por %p117, %p118
      %p121 = scmp.ne.s32.totalorder %s106, %s120
      %p122 = scmp.eq.s32.totalorder %s33, 0
      %p123 = por %p121, %p122
      %s125 = sadd.s32 %s124, 1
      %p128 = scmp.eq.s32.totalorder %s27, 1
      %p129 = scmp.ne.s32.totalorder %s124, %s126
      %p130 = scmp.eq.s32.totalorder %s27, 0
      %p131 = por %p129, %p130
      %p132 = scmp.ne.s32.totalorder %s124, %s126
      %p133 = scmp.eq.s32.totalorder %s32, 1
      %p134 = por %p132, %p133
      %p135 = scmp.ne.s32.totalorder %s126, %s127
      %p136 = scmp.eq.s32.totalorder %s32, 0
      %p137 = por %p135, %p136
      %p138 = scmp.ne.s32.totalorder %s126, %s127
      %p139 = scmp.eq.s32.totalorder %s33, 1
      %p140 = por %p138, %p139
      %p142 = scmp.ne.s32.totalorder %s127, %s141
      %p143 = scmp.eq.s32.totalorder %s33, 0
      %p144 = por %p142, %p143
      %s146 = sadd.s32 %s145, 1
      %p149 = scmp.eq.s32.totalorder %s27, 1
      %p150 = scmp.ne.s32.totalorder %s145, %s147
      %p151 = scmp.eq.s32.totalorder %s27, 0
      %p152 = por %p150, %p151
      %p153 = scmp.ne.s32.totalorder %s145, %s147
      %p154 = scmp.eq.s32.totalorder %s32, 1
      %p155 = por %p153, %p154
      %p156 = scmp.ne.s32.totalorder %s147, %s148
      %p157 = scmp.eq.s32.totalorder %s32, 0
      %p158 = por %p156, %p157
      %p159 = scmp.ne.s32.totalorder %s147, %s148
      %p160 = scmp.eq.s32.totalorder %s33, 1
      %p161 = por %p159, %p160
      %p163 = scmp.ne.s32.totalorder %s148, %s162
      %p164 = scmp.eq.s32.totalorder %s33, 0
      %p165 = por %p163, %p164
      %s167 = sadd.s32 %s166, 1
      %p170 = scmp.eq.s32.totalorder %s27, 1
      %p171 = scmp.ne.s32.totalorder %s166, %s168
      %p172 = scmp.eq.s32.totalorder %s27, 0
      %p173 = por %p171, %p172
      %p174 = scmp.ne.s32.totalorder %s166, %s168
      %p175 = scmp.eq.s32.totalorder %s32, 1
      %p176 = por %p174, %p175
      %p177 = scmp.ne.s32.totalorder %s168, %s169
      %p178 = scmp.eq.s32.totalorder %s32, 0
      %p179 = por %p177, %p178
      %p180 = scmp.ne.s32.totalorder %s168, %s169
      %p181 = scmp.eq.s32.totalorder %s33, 1
      %p182 = por %p180, %p181
      %p184 = scmp.ne.s32.totalorder %s169, %s183
      %p185 = scmp.eq.s32.totalorder %s33, 0
      %p186 = por %p184, %p185
      %s188 = sadd.s32 %s187, 1
      %p191 = scmp.eq.s32.totalorder %s27, 1
      %p192 = scmp.ne.s32.totalorder %s187, %s189
      %p193 = scmp.eq.s32.totalorder %s27, 0
      %p194 = por %p192, %p193
      %p195 = scmp.ne.s32.totalorder %s187, %s189
      %p196 = scmp.eq.s32.totalorder %s32, 1
      %p197 = por %p195, %p196
      %p198 = scmp.ne.s32.totalorder %s189, %s190
      %p199 = scmp.eq.s32.totalorder %s32, 0
      %p200 = por %p198, %p199
      %p201 = scmp.ne.s32.totalorder %s189, %s190
      %p202 = scmp.eq.s32.totalorder %s33, 1
      %p203 = por %p201, %p202
      %p205 = scmp.ne.s32.totalorder %s190, %s204
      %p206 = scmp.eq.s32.totalorder %s33, 0
      %p207 = por %p205, %p206
      %s209 = sadd.s32 %s208, 1
      %p212 = scmp.eq.s32.totalorder %s27, 1
      %p213 = scmp.ne.s32.totalorder %s208, %s210
      %p214 = scmp.eq.s32.totalorder %s27, 0
      %p215 = por %p213, %p214
      %p216 = scmp.ne.s32.totalorder %s208, %s210
      %p217 = scmp.eq.s32.totalorder %s32, 1
      %p218 = por %p216, %p217
      %p219 = scmp.ne.s32.totalorder %s210, %s211
      %p220 = scmp.eq.s32.totalorder %s32, 0
      %p221 = por %p219, %p220
      %p222 = scmp.ne.s32.totalorder %s210, %s211
      %p223 = scmp.eq.s32.totalorder %s33, 1
      %p224 = por %p222, %p223
      %p226 = scmp.ne.s32.totalorder %s211, %s225
      %p227 = scmp.eq.s32.totalorder %s33, 0
      %p228 = por %p226, %p227
      %s230 = sadd.s32 %s229, 1
      %p233 = scmp.eq.s32.totalorder %s27, 1
      %p234 = scmp.ne.s32.totalorder %s229, %s231
      %p235 = scmp.eq.s32.totalorder %s27, 0
      %p236 = por %p234, %p235
      %p237 = scmp.ne.s32.totalorder %s229, %s231
      %p238 = scmp.eq.s32.totalorder %s32, 1
      %p239 = por %p237, %p238
      %p240 = scmp.ne.s32.totalorder %s231, %s232
      %p241 = scmp.eq.s32.totalorder %s32, 0
      %p242 = por %p240, %p241
      %p243 = scmp.ne.s32.totalorder %s231, %s232
      %p244 = scmp.eq.s32.totalorder %s33, 1
      %p245 = por %p243, %p244
      %p247 = scmp.ne.s32.totalorder %s232, %s246
      %p248 = scmp.eq.s32.totalorder %s33, 0
      %p249 = por %p247, %p248
      %s251 = sadd.s32 %s250, 1
      %p254 = scmp.eq.s32.totalorder %s27, 1
      %p255 = scmp.ne.s32.totalorder %s250, %s252
      %p256 = scmp.eq.s32.totalorder %s27, 0
      %p257 = por %p255, %p256
      %p258 = scmp.ne.s32.totalorder %s250, %s252
      %p259 = scmp.eq.s32.totalorder %s32, 1
      %p260 = por %p258, %p259
      %p261 = scmp.ne.s32.totalorder %s252, %s253
      %p262 = scmp.eq.s32.totalorder %s32, 0
      %p263 = por %p261, %p262
      %p264 = scmp.ne.s32.totalorder %s252, %s253
      %p265 = scmp.eq.s32.totalorder %s33, 1
      %p266 = por %p264, %p265
      %p268 = scmp.ne.s32.totalorder %s253, %s267
      %p269 = scmp.eq.s32.totalorder %s33, 0
      %p270 = por %p268, %p269
      %s272 = sadd.s32 %s271, 1
      %p275 = scmp.eq.s32.totalorder %s27, 1
      %p276 = scmp.ne.s32.totalorder %s271, %s273
      %p277 = scmp.eq.s32.totalorder %s27, 0
      %p278 = por %p276, %p277
      %p279 = scmp.ne.s32.totalorder %s271, %s273
      %p280 = scmp.eq.s32.totalorder %s32, 1
      %p281 = por %p279, %p280
      %p282 = scmp.ne.s32.totalorder %s273, %s274
      %p283 = scmp.eq.s32.totalorder %s32, 0
      %p284 = por %p282, %p283
      %p285 = scmp.ne.s32.totalorder %s273, %s274
      %p286 = scmp.eq.s32.totalorder %s33, 1
      %p287 = por %p285, %p286
      %p289 = scmp.ne.s32.totalorder %s274, %s288
      %p290 = scmp.eq.s32.totalorder %s33, 0
      %p291 = por %p289, %p290
      %s293 = sadd.s32 %s292, 1
      %p296 = scmp.eq.s32.totalorder %s27, 1
      %p297 = scmp.ne.s32.totalorder %s292, %s294
      %p298 = scmp.eq.s32.totalorder %s27, 0
      %p299 = por %p297, %p298
      %p300 = scmp.ne.s32.totalorder %s292, %s294
      %p301 = scmp.eq.s32.totalorder %s32, 1
      %p302 = por %p300, %p301
      %p303 = scmp.ne.s32.totalorder %s294, %s295
      %p304 = scmp.eq.s32.totalorder %s32, 0
      %p305 = por %p303, %p304
      %p306 = scmp.ne.s32.totalorder %s294, %s295
      %p307 = scmp.eq.s32.totalorder %s33, 1
      %p308 = por %p306, %p307
      %p310 = scmp.ne.s32.totalorder %s295, %s309
      %p311 = scmp.eq.s32.totalorder %s33, 0
      %p312 = por %p310, %p311
      %s313 = ssub.s32 %s27, %s34
      %p314 = scmp.eq.s32.totalorder %s313, 0
      %s316 = sadd.s32 %s315, 1
      %s317 = scalar_select %p314, %s315, %s316
      %p320 = pneg %p314
      %p321 = scmp.eq.s32.totalorder %s27, 1
      %p322 = por %p320, %p321
      %p323 = scmp.ne.s32.totalorder %s315, %s318
      %p324 = scmp.eq.s32.totalorder %s27, 0
      %p325 = por %p323, %p324
      %p326 = scmp.ne.s32.totalorder %s315, %s318
      %p327 = scmp.eq.s32.totalorder %s32, 1
      %p328 = por %p326, %p327
      %p329 = scmp.ne.s32.totalorder %s318, %s319
      %p330 = scmp.eq.s32.totalorder %s32, 0
      %p331 = por %p329, %p330
      %p332 = scmp.ne.s32.totalorder %s318, %s319
      %p333 = scmp.eq.s32.totalorder %s33, 1
      %p334 = por %p332, %p333
      %p336 = scmp.ne.s32.totalorder %s319, %s335
      %p337 = scmp.eq.s32.totalorder %s33, 0
      %p338 = por %p336, %p337
      %p339 = scmp.le.s32.totalorder 1, %s27
      %p340 = scmp.lt.s32.totalorder %s27, 3
      %p341 = pnand %p339, %p340
      %p342 = pneg %p341
      // Predicated region
      $region9: #{tpu_custom_call.1} parent=5 // pred_check
        _
      $region10: #{tpu_custom_call.1} parent=5 // pred_check_branch
        %344 = sbr.rel (%p341) target = $region12
      $region11: #{tpu_custom_call.1} parent=5 // pred_region
        %s345 = ssub.s32 %s27, 1
        // Predicated region
        $region13: #{tpu_custom_call.1} parent=11 // pred_check
          %p346 = pneg %p74
        $region14: #{tpu_custom_call.1} parent=11 // pred_check_branch
          %348 = sbr.rel (%p346) target = $region16
        $region15: #{tpu_custom_call.1} parent=11 // pred_region
          _
        $region16: #{tpu_custom_call.1} parent=11 // pred_fallthru
          _
        // Predicated region
        $region17: #{tpu_custom_call.1} parent=11 // pred_check
          %p349 = pneg %p95
        $region18: #{tpu_custom_call.1} parent=11 // pred_check_branch
          %351 = sbr.rel (%p349) target = $region20
        $region19: #{tpu_custom_call.1} parent=11 // pred_region
          _
        $region20: #{tpu_custom_call.1} parent=11 // pred_fallthru
          _
        // Predicated region
        $region21: #{tpu_custom_call.1} parent=11 // pred_check
          %p352 = pneg %p116
        $region22: #{tpu_custom_call.1} parent=11 // pred_check_branch
          %354 = sbr.rel (%p352) target = $region24
        $region23: #{tpu_custom_call.1} parent=11 // pred_region
          _
        $region24: #{tpu_custom_call.1} parent=11 // pred_fallthru
          _
        // Predicated region
        $region25: #{tpu_custom_call.1} parent=11 // pred_check
          %p355 = pneg %p137
        $region26: #{tpu_custom_call.1} parent=11 // pred_check_branch
          %357 = sbr.rel (%p355) target = $region28
        $region27: #{tpu_custom_call.1} parent=11 // pred_region
          %s359 = ssub.s32 512, 512
          %360 = vsyncadd [#allocation6], %s359
          %s361 = sshll.u32 [#allocation5], 4
          %s362 = int_to_ptr.vmem [resolvable:$true] %s361
          %367 = dma.hbm_to_vmem [thread:$0]  %s4, 512, %s362, [#allocation6], 128, 128, 8
        $region28: #{tpu_custom_call.1} parent=11 // pred_fallthru
          _
        // Predicated region
        $region29: #{tpu_custom_call.1} parent=11 // pred_check
          %p368 = pneg %p158
        $region30: #{tpu_custom_call.1} parent=11 // pred_check_branch
          %370 = sbr.rel (%p368) target = $region32
        $region31: #{tpu_custom_call.1} parent=11 // pred_region
          _
        $region32: #{tpu_custom_call.1} parent=11 // pred_fallthru
          _
        // Predicated region
        $region33: #{tpu_custom_call.1} parent=11 // pred_check
          %p371 = pneg %p179
        $region34: #{tpu_custom_call.1} parent=11 // pred_check_branch
          %373 = sbr.rel (%p371) target = $region36
        $region35: #{tpu_custom_call.1} parent=11 // pred_region
          %s375 = ssub.s32 16, 16
          %376 = vsyncadd [#allocation6], %s375
          %s378 = sshll.u32 [#allocation7], 4
          %s379 = int_to_ptr.vmem [resolvable:$true] %s378
          %381 = dma.hbm_to_vmem [thread:$0]  %s6, 16, %s379, [#allocation6]
        $region36: #{tpu_custom_call.1} parent=11 // pred_fallthru
          _
        // Predicated region
        $region37: #{tpu_custom_call.1} parent=11 // pred_check
          %p382 = pneg %p200
        $region38: #{tpu_custom_call.1} parent=11 // pred_check_branch
          %384 = sbr.rel (%p382) target = $region40
        $region39: #{tpu_custom_call.1} parent=11 // pred_region
          _
        $region40: #{tpu_custom_call.1} parent=11 // pred_fallthru
          _
        // Predicated region
        $region41: #{tpu_custom_call.1} parent=11 // pred_check
          %p385 = pneg %p221
        $region42: #{tpu_custom_call.1} parent=11 // pred_check_branch
          %387 = sbr.rel (%p385) target = $region44
        $region43: #{tpu_custom_call.1} parent=11 // pred_region
          %s389 = ssub.s32 16, 16
          %390 = vsyncadd [#allocation9], %s389
          %s392 = sshll.u32 [#allocation8], 4
          %s393 = int_to_ptr.vmem [resolvable:$true] %s392
          %395 = dma.hbm_to_vmem [thread:$0]  %s8, 16, %s393, [#allocation9]
        $region44: #{tpu_custom_call.1} parent=11 // pred_fallthru
          _
        // Predicated region
        $region45: #{tpu_custom_call.1} parent=11 // pred_check
          %p396 = pneg %p242
        $region46: #{tpu_custom_call.1} parent=11 // pred_check_branch
          %398 = sbr.rel (%p396) target = $region48
        $region47: #{tpu_custom_call.1} parent=11 // pred_region
          _
        $region48: #{tpu_custom_call.1} parent=11 // pred_fallthru
          _
        // Predicated region
        $region49: #{tpu_custom_call.1} parent=11 // pred_check
          %p399 = pneg %p263
        $region50: #{tpu_custom_call.1} parent=11 // pred_check_branch
          %401 = sbr.rel (%p399) target = $region52
        $region51: #{tpu_custom_call.1} parent=11 // pred_region
          _
        $region52: #{tpu_custom_call.1} parent=11 // pred_fallthru
          _
        // Predicated region
        $region53: #{tpu_custom_call.1} parent=11 // pred_check
          %p402 = pneg %p284
        $region54: #{tpu_custom_call.1} parent=11 // pred_check_branch
          %404 = sbr.rel (%p402) target = $region56
        $region55: #{tpu_custom_call.1} parent=11 // pred_region
          %s406 = ssub.s32 1024, 1024
          %407 = vsyncadd [#allocation9], %s406
          %s408 = sshll.u32 [#allocation10], 4
          %s409 = int_to_ptr.vmem [resolvable:$true] %s408
          %414 = dma.hbm_to_vmem [thread:$0]  %s11, 1024, %s409, [#allocation9], 64, 64, 4
        $region56: #{tpu_custom_call.1} parent=11 // pred_fallthru
          _
        // Predicated region
        $region57: #{tpu_custom_call.1} parent=11 // pred_check
          %p415 = pneg %p305
        $region58: #{tpu_custom_call.1} parent=11 // pred_check_branch
          %417 = sbr.rel (%p415) target = $region60
        $region59: #{tpu_custom_call.1} parent=11 // pred_region
          _
        $region60: #{tpu_custom_call.1} parent=11 // pred_fallthru
          _
      $region12: #{tpu_custom_call.1} parent=5 // pred_fallthru
        _
      %p418 = scmp.lt.s32.totalorder %s27, 2
      // Predicated region
      $region61: #{tpu_custom_call.1} parent=5 // pred_check
        %p419 = pneg %p418
      $region62: #{tpu_custom_call.1} parent=5 // pred_check_branch
        %421 = sbr.rel (%p419) target = $region64
      $region63: #{tpu_custom_call.1} parent=5 // pred_region
        // Predicated region
        $region65: #{tpu_custom_call.1} parent=63 // pred_check
          %p422 = pneg %p47
        $region66: #{tpu_custom_call.1} parent=63 // pred_check_branch
          %424 = sbr.rel (%p422) target = $region68
        $region67: #{tpu_custom_call.1} parent=63 // pred_region
          %s425 = sand.u32 %s37, 1
          %s426 = scalar_lea.sflag [#allocation3], %s425
          %s427 = sand.u32 %s37, 1
          %s428 = smul.addr %s427, 256
          %s429 = scalar_lea.vmem [#allocation2], %s428
          %s431 = ssub.s32 4096, 4096
          %432 = vsyncadd %s426, %s431
          %s433 = smul.addr %s27, 32
          %s434 = smul.addr %s433, 128
          %s435 = scalar_lea.hbm %s0, %s434
          %s436 = sshll.u32 %s429, 4
          %s437 = int_to_ptr.vmem [resolvable:$true] %s436
          %442 = dma.hbm_to_vmem [thread:$0]  %s435, 4096, %s437, %s426, 128, 128, 8
        $region68: #{tpu_custom_call.1} parent=63 // pred_fallthru
          _
      $region64: #{tpu_custom_call.1} parent=5 // pred_fallthru
        _
      %p443 = scmp.le.s32.totalorder 1, %s27
      %p444 = scmp.lt.s32.totalorder %s27, 3
      %p445 = pnand %p443, %p444
      %p446 = pneg %p445
      // Predicated region
      $region69: #{tpu_custom_call.1} parent=5 // pred_check
        _
      $region70: #{tpu_custom_call.1} parent=5 // pred_check_branch
        %448 = sbr.rel (%p445) target = $region72
      $region71: #{tpu_custom_call.1} parent=5 // pred_region
        %s449 = ssub.s32 %s27, 1
        %s450 = sand.u32 %s40, 1
        %s451 = scalar_lea.sflag [#allocation3], %s450
        %s452 = sand.u32 %s40, 1
        %s453 = smul.addr %s452, 256
        %s454 = scalar_lea.vmem [#allocation2], %s453
        // Predicated region
        $region73: #{tpu_custom_call.1} parent=71 // pred_check
          %p455 = pneg %p53
        $region74: #{tpu_custom_call.1} parent=71 // pred_check_branch
          %457 = sbr.rel (%p455) target = $region76
        $region75: #{tpu_custom_call.1} parent=71 // pred_region
          %458 = dma.done %s451, 4096
        $region76: #{tpu_custom_call.1} parent=71 // pred_fallthru
          _
        // Predicated region
        $region77: #{tpu_custom_call.1} parent=71 // pred_check
          %p459 = pneg %p137
        $region78: #{tpu_custom_call.1} parent=71 // pred_check_branch
          %461 = sbr.rel (%p459) target = $region80
        $region79: #{tpu_custom_call.1} parent=71 // pred_region
          %462 = dma.done [#allocation6], 512
        $region80: #{tpu_custom_call.1} parent=71 // pred_fallthru
          _
        // Predicated region
        $region81: #{tpu_custom_call.1} parent=71 // pred_check
          %p463 = pneg %p179
        $region82: #{tpu_custom_call.1} parent=71 // pred_check_branch
          %465 = sbr.rel (%p463) target = $region84
        $region83: #{tpu_custom_call.1} parent=71 // pred_region
          %466 = dma.done [#allocation6], 16
        $region84: #{tpu_custom_call.1} parent=71 // pred_fallthru
          _
        // Predicated region
        $region85: #{tpu_custom_call.1} parent=71 // pred_check
          %p467 = pneg %p221
        $region86: #{tpu_custom_call.1} parent=71 // pred_check_branch
          %469 = sbr.rel (%p467) target = $region88
        $region87: #{tpu_custom_call.1} parent=71 // pred_region
          %470 = dma.done [#allocation9], 16
        $region88: #{tpu_custom_call.1} parent=71 // pred_fallthru
          _
        // Predicated region
        $region89: #{tpu_custom_call.1} parent=71 // pred_check
          %p471 = pneg %p284
        $region90: #{tpu_custom_call.1} parent=71 // pred_check_branch
          %473 = sbr.rel (%p471) target = $region92
        $region91: #{tpu_custom_call.1} parent=71 // pred_region
          %474 = dma.done [#allocation9], 1024
        $region92: #{tpu_custom_call.1} parent=71 // pred_fallthru
          _
        %s475 = sand.u32 %s40, 1
        %s476 = scalar_lea.sflag [#allocation3], %s475
        %s477 = sand.u32 %s40, 1
        %s478 = smul.addr %s477, 256
        %s479 = scalar_lea.vmem [#allocation2], %s478
        %p480 = pneg %p53
        %p481 = pneg %p50
        %p482 = pneg %p74
        %p483 = pneg %p71
        %p484 = pneg %p95
        %p485 = pneg %p92
        %p486 = pneg %p116
        %p487 = pneg %p113
        %p488 = pneg %p137
        %p489 = pneg %p134
        %p490 = pneg %p158
        %p491 = pneg %p155
        %p492 = pneg %p179
        %p493 = pneg %p176
        %p494 = pneg %p200
        %p495 = pneg %p197
        %p496 = pneg %p221
        %p497 = pneg %p218
        %p498 = pneg %p242
        %p499 = pneg %p239
        %p500 = pneg %p263
        %p501 = pneg %p260
        %p502 = pneg %p284
        %p503 = pneg %p281
        %p504 = pneg %p305
        %p505 = pneg %p302
        %p506 = pneg %p331
        %p507 = pneg %p328
        %s508 = sand.u32 %s318, 1
        %s509 = scalar_lea.sflag [#allocation4], %s508
        %s510 = sand.u32 %s318, 1
        %s511 = smul.addr %s510, 256
        %s512 = scalar_lea.vmem [#allocation11], %s511
        %v514 = vld [vmem:[%s454] sm:$0xff]
        %v515 = vld [vmem:[%s454 + $0x8] sm:$0xff]
        %v516 = vld [vmem:[%s454 + $0x10] sm:$0xff]
        %v517 = vld [vmem:[%s454 + $0x18] sm:$0xff]
        %v518 = vld [vmem:[%s454 + $0x20] sm:$0xff]
        %v519 = vld [vmem:[%s454 + $0x28] sm:$0xff]
        %v520 = vld [vmem:[%s454 + $0x30] sm:$0xff]
        %v521 = vld [vmem:[%s454 + $0x38] sm:$0xff]
        %v522 = vld [vmem:[%s454 + $0x40] sm:$0xff]
        %v523 = vld [vmem:[%s454 + $0x48] sm:$0xff]
        %v524 = vld [vmem:[%s454 + $0x50] sm:$0xff]
        %v525 = vld [vmem:[%s454 + $0x58] sm:$0xff]
        %v526 = vld [vmem:[%s454 + $0x60] sm:$0xff]
        %v527 = vld [vmem:[%s454 + $0x68] sm:$0xff]
        %v528 = vld [vmem:[%s454 + $0x70] sm:$0xff]
        %v529 = vld [vmem:[%s454 + $0x78] sm:$0xff]
        %v530 = vld [vmem:[%s454 + $0x80] sm:$0xff]
        %v531 = vld [vmem:[%s454 + $0x88] sm:$0xff]
        %v532 = vld [vmem:[%s454 + $0x90] sm:$0xff]
        %v533 = vld [vmem:[%s454 + $0x98] sm:$0xff]
        %v534 = vld [vmem:[%s454 + $0xa0] sm:$0xff]
        %v535 = vld [vmem:[%s454 + $0xa8] sm:$0xff]
        %v536 = vld [vmem:[%s454 + $0xb0] sm:$0xff]
        %v537 = vld [vmem:[%s454 + $0xb8] sm:$0xff]
        %v538 = vld [vmem:[%s454 + $0xc0] sm:$0xff]
        %v539 = vld [vmem:[%s454 + $0xc8] sm:$0xff]
        %v540 = vld [vmem:[%s454 + $0xd0] sm:$0xff]
        %v541 = vld [vmem:[%s454 + $0xd8] sm:$0xff]
        %v542 = vld [vmem:[%s454 + $0xe0] sm:$0xff]
        %v543 = vld [vmem:[%s454 + $0xe8] sm:$0xff]
        %v544 = vld [vmem:[%s454 + $0xf0] sm:$0xff]
        %v545 = vld [vmem:[%s454 + $0xf8] sm:$0xff]
        %v546 = vadd.f32 %v514, %v515
        %v547 = vadd.f32 %v546, %v516
        %v548 = vadd.f32 %v547, %v517
        %v549 = vadd.f32 %v548, %v518
        %v550 = vadd.f32 %v549, %v519
        %v551 = vadd.f32 %v550, %v520
        %v552 = vadd.f32 %v551, %v521
        %v553 = vadd.f32 %v552, %v522
        %v554 = vadd.f32 %v553, %v523
        %v555 = vadd.f32 %v554, %v524
        %v556 = vadd.f32 %v555, %v525
        %v557 = vadd.f32 %v556, %v526
        %v558 = vadd.f32 %v557, %v527
        %v559 = vadd.f32 %v558, %v528
        %v560 = vadd.f32 %v559, %v529
        %v561 = vadd.f32 %v560, %v530
        %v562 = vadd.f32 %v561, %v531
        %v563 = vadd.f32 %v562, %v532
        %v564 = vadd.f32 %v563, %v533
        %v565 = vadd.f32 %v564, %v534
        %v566 = vadd.f32 %v565, %v535
        %v567 = vadd.f32 %v566, %v536
        %v568 = vadd.f32 %v567, %v537
        %v569 = vadd.f32 %v568, %v538
        %v570 = vadd.f32 %v569, %v539
        %v571 = vadd.f32 %v570, %v540
        %v572 = vadd.f32 %v571, %v541
        %v573 = vadd.f32 %v572, %v542
        %v574 = vadd.f32 %v573, %v543
        %v575 = vadd.f32 %v574, %v544
        %v576 = vadd.f32 %v575, %v545
        %v577 = vrot.slane %v576, 4
        %v578 = vadd.f32 %v576, %v577
        %v579 = vrot.slane %v578, 2
        %v580 = vadd.f32 %v578, %v579
        %v581 = vrot.slane %v580, 1
        %v582 = vadd.f32 %v580, %v581
        %v583 = vmul.f32 %v514, %v514
        %v584 = vmul.f32 %v515, %v515
        %v585 = vmul.f32 %v516, %v516
        %v586 = vmul.f32 %v517, %v517
        %v587 = vmul.f32 %v518, %v518
        %v588 = vmul.f32 %v519, %v519
        %v589 = vmul.f32 %v520, %v520
        %v590 = vmul.f32 %v521, %v521
        %v591 = vmul.f32 %v522, %v522
        %v592 = vmul.f32 %v523, %v523
        %v593 = vmul.f32 %v524, %v524
        %v594 = vmul.f32 %v525, %v525
        %v595 = vmul.f32 %v526, %v526
        %v596 = vmul.f32 %v527, %v527
        %v597 = vmul.f32 %v528, %v528
        %v598 = vmul.f32 %v529, %v529
        %v599 = vmul.f32 %v530, %v530
        %v600 = vmul.f32 %v531, %v531
        %v601 = vmul.f32 %v532, %v532
        %v602 = vmul.f32 %v533, %v533
        %v603 = vmul.f32 %v534, %v534
        %v604 = vmul.f32 %v535, %v535
        %v605 = vmul.f32 %v536, %v536
        %v606 = vmul.f32 %v537, %v537
        %v607 = vmul.f32 %v538, %v538
        %v608 = vmul.f32 %v539, %v539
        %v609 = vmul.f32 %v540, %v540
        %v610 = vmul.f32 %v541, %v541
        %v611 = vmul.f32 %v542, %v542
        %v612 = vmul.f32 %v543, %v543
        %v613 = vmul.f32 %v544, %v544
        %v614 = vmul.f32 %v545, %v545
        %v615 = vadd.f32 %v583, %v584
        %v616 = vadd.f32 %v615, %v585
        %v617 = vadd.f32 %v616, %v586
        %v618 = vadd.f32 %v617, %v587
        %v619 = vadd.f32 %v618, %v588
        %v620 = vadd.f32 %v619, %v589
        %v621 = vadd.f32 %v620, %v590
        %v622 = vadd.f32 %v621, %v591
        %v623 = vadd.f32 %v622, %v592
        %v624 = vadd.f32 %v623, %v593
        %v625 = vadd.f32 %v624, %v594
        %v626 = vadd.f32 %v625, %v595
        %v627 = vadd.f32 %v626, %v596
        %v628 = vadd.f32 %v627, %v597
        %v629 = vadd.f32 %v628, %v598
        %v630 = vadd.f32 %v629, %v599
        %v631 = vadd.f32 %v630, %v600
        %v632 = vadd.f32 %v631, %v601
        %v633 = vadd.f32 %v632, %v602
        %v634 = vadd.f32 %v633, %v603
        %v635 = vadd.f32 %v634, %v604
        %v636 = vadd.f32 %v635, %v605
        %v637 = vadd.f32 %v636, %v606
        %v638 = vadd.f32 %v637, %v607
        %v639 = vadd.f32 %v638, %v608
        %v640 = vadd.f32 %v639, %v609
        %v641 = vadd.f32 %v640, %v610
        %v642 = vadd.f32 %v641, %v611
        %v643 = vadd.f32 %v642, %v612
        %v644 = vadd.f32 %v643, %v613
        %v645 = vadd.f32 %v644, %v614
        %v646 = vrot.slane %v645, 4
        %v647 = vadd.f32 %v645, %v646
        %v648 = vrot.slane %v647, 2
        %v649 = vadd.f32 %v647, %v648
        %v650 = vrot.slane %v649, 1
        %v651 = vadd.f32 %v649, %v650
        %v652 = vld [vmem:[%s3] sm:$0xff]
        %v653 = vld [vmem:[%s3 + $0x8] sm:$0xff]
        %v654 = vld [vmem:[%s3 + $0x10] sm:$0xff]
        %v655 = vld [vmem:[%s3 + $0x18] sm:$0xff]
        %v656 = vld [vmem:[%s3 + $0x20] sm:$0xff]
        %v657 = vld [vmem:[%s3 + $0x28] sm:$0xff]
        %v658 = vld [vmem:[%s3 + $0x30] sm:$0xff]
        %v659 = vld [vmem:[%s3 + $0x38] sm:$0xff]
        %v660 = vld [vmem:[%s3 + $0x40] sm:$0xff]
        %v661 = vld [vmem:[%s3 + $0x48] sm:$0xff]
        %v662 = vld [vmem:[%s3 + $0x50] sm:$0xff]
        %v663 = vld [vmem:[%s3 + $0x58] sm:$0xff]
        %v664 = vld [vmem:[%s3 + $0x60] sm:$0xff]
        %v665 = vld [vmem:[%s3 + $0x68] sm:$0xff]
        %v666 = vld [vmem:[%s3 + $0x70] sm:$0xff]
        %v667 = vld [vmem:[%s3 + $0x78] sm:$0xff]
        %668 = vmatprep.subr.mxu0 0.0
        %669 = vmatpush1.msra.mxu0 %v652
        %670 = vmatprep.subr.mxu0 0.0
        %671 = vmatpush1.msra.mxu0 %v653
        %672 = vmatprep.subr.mxu0 0.0
        %673 = vmatpush1.msra.mxu0 %v654
        %674 = vmatprep.subr.mxu0 0.0
        %675 = vmatpush1.msra.mxu0 %v655
        %676 = vmatprep.subr.mxu0 0.0
        %677 = vmatpush1.msra.mxu0 %v656
        %678 = vmatprep.subr.mxu0 0.0
        %679 = vmatpush1.msra.mxu0 %v657
        %680 = vmatprep.subr.mxu0 0.0
        %681 = vmatpush1.msra.mxu0 %v658
        %682 = vmatprep.subr.mxu0 0.0
        %683 = vmatpush1.msra.mxu0 %v659
        %684 = vmatprep.subr.mxu0 0.0
        %685 = vmatpush1.msra.mxu0 %v660
        %686 = vmatprep.subr.mxu0 0.0
        %687 = vmatpush1.msra.mxu0 %v661
        %688 = vmatprep.subr.mxu0 0.0
        %689 = vmatpush1.msra.mxu0 %v662
        %690 = vmatprep.subr.mxu0 0.0
        %691 = vmatpush1.msra.mxu0 %v663
        %692 = vmatprep.subr.mxu0 0.0
        %693 = vmatpush1.msra.mxu0 %v664
        %694 = vmatprep.subr.mxu0 0.0
        %695 = vmatpush1.msra.mxu0 %v665
        %696 = vmatprep.subr.mxu0 0.0
        %697 = vmatpush1.msra.mxu0 %v666
        %698 = vmatprep.subr.mxu0 0.0
        %699 = vmatpush1.msra.mxu0 %v667
        %700 = vmatprep.subr.mxu0 0.0
        %701 = vmatpush1.msra.mxu0 0.0
        %702 = vmatprep.subr.mxu0 0.0
        %703 = vmatpush1.msra.mxu0 0.0
        %704 = vmatprep.subr.mxu0 0.0
        %705 = vmatpush1.msra.mxu0 0.0
        %706 = vmatprep.subr.mxu0 0.0
        %707 = vmatpush1.msra.mxu0 0.0
        %708 = vmatprep.subr.mxu0 0.0
        %709 = vmatpush1.msra.mxu0 0.0
        %710 = vmatprep.subr.mxu0 0.0
        %711 = vmatpush1.msra.mxu0 0.0
        %712 = vmatprep.subr.mxu0 0.0
        %713 = vmatpush1.msra.mxu0 0.0
        %714 = vmatprep.subr.mxu0 0.0
        %715 = vmatpush1.msra.mxu0 0.0
        %716 = vmatprep.subr.mxu0 0.0
        %717 = vmatpush1.msra.mxu0 0.0
        %718 = vmatprep.subr.mxu0 0.0
        %719 = vmatpush1.msra.mxu0 0.0
        %720 = vmatprep.subr.mxu0 0.0
        %721 = vmatpush1.msra.mxu0 0.0
        %722 = vmatprep.subr.mxu0 0.0
        %723 = vmatpush1.msra.mxu0 0.0
        %724 = vmatprep.subr.mxu0 0.0
        %725 = vmatpush1.msra.mxu0 0.0
        %726 = vmatprep.subr.mxu0 0.0
        %727 = vmatpush1.msra.mxu0 0.0
        %728 = vmatprep.subr.mxu0 0.0
        %729 = vmatpush1.msra.mxu0 0.0
        %730 = vmatprep.subr.mxu0 0.0
        %731 = vmatpush1.msra.mxu0 0.0
        %732 = vmatprep.mubr.f32.mxu0 0.0
        %733 = vmatmul.mubr.f32.gmra.mrb[0].mxu0 %v582
        %v734 = vpop.f32.mrb[0].mxu0
        %v735 = vadd.f32 0.0, %v734
        %v736 = vpop.f32.mrb[0].mxu0
        %737 = vdwg.mxu0
        %v738 = vrcp.pop 1024.0
        %v739 = vmul.f32 %v735, %v738
        %740 = vmatprep.subr.mxu0 0.0
        %741 = vmatpush1.msra.mxu0 %v652
        %742 = vmatprep.subr.mxu0 0.0
        %743 = vmatpush1.msra.mxu0 %v653
        %744 = vmatprep.subr.mxu0 0.0
        %745 = vmatpush1.msra.mxu0 %v654
        %746 = vmatprep.subr.mxu0 0.0
        %747 = vmatpush1.msra.mxu0 %v655
        %748 = vmatprep.subr.mxu0 0.0
        %749 = vmatpush1.msra.mxu0 %v656
        %750 = vmatprep.subr.mxu0 0.0
        %751 = vmatpush1.msra.mxu0 %v657
        %752 = vmatprep.subr.mxu0 0.0
        %753 = vmatpush1.msra.mxu0 %v658
        %754 = vmatprep.subr.mxu0 0.0
        %755 = vmatpush1.msra.mxu0 %v659
        %756 = vmatprep.subr.mxu0 0.0
        %757 = vmatpush1.msra.mxu0 %v660
        %758 = vmatprep.subr.mxu0 0.0
        %759 = vmatpush1.msra.mxu0 %v661
        %760 = vmatprep.subr.mxu0 0.0
        %761 = vmatpush1.msra.mxu0 %v662
        %762 = vmatprep.subr.mxu0 0.0
        %763 = vmatpush1.msra.mxu0 %v663
        %764 = vmatprep.subr.mxu0 0.0
        %765 = vmatpush1.msra.mxu0 %v664
        %766 = vmatprep.subr.mxu0 0.0
        %767 = vmatpush1.msra.mxu0 %v665
        %768 = vmatprep.subr.mxu0 0.0
        %769 = vmatpush1.msra.mxu0 %v666
        %770 = vmatprep.subr.mxu0 0.0
        %771 = vmatpush1.msra.mxu0 %v667
        %772 = vmatprep.subr.mxu0 0.0
        %773 = vmatpush1.msra.mxu0 0.0
        %774 = vmatprep.subr.mxu0 0.0
        %775 = vmatpush1.msra.mxu0 0.0
        %776 = vmatprep.subr.mxu0 0.0
        %777 = vmatpush1.msra.mxu0 0.0
        %778 = vmatprep.subr.mxu0 0.0
        %779 = vmatpush1.msra.mxu0 0.0
        %780 = vmatprep.subr.mxu0 0.0
        %781 = vmatpush1.msra.mxu0 0.0
        %782 = vmatprep.subr.mxu0 0.0
        %783 = vmatpush1.msra.mxu0 0.0
        %784 = vmatprep.subr.mxu0 0.0
        %785 = vmatpush1.msra.mxu0 0.0
        %786 = vmatprep.subr.mxu0 0.0
        %787 = vmatpush1.msra.mxu0 0.0
        %788 = vmatprep.subr.mxu0 0.0
        %789 = vmatpush1.msra.mxu0 0.0
        %790 = vmatprep.subr.mxu0 0.0
        %791 = vmatpush1.msra.mxu0 0.0
        %792 = vmatprep.subr.mxu0 0.0
        %793 = vmatpush1.msra.mxu0 0.0
        %794 = vmatprep.subr.mxu0 0.0
        %795 = vmatpush1.msra.mxu0 0.0
        %796 = vmatprep.subr.mxu0 0.0
        %797 = vmatpush1.msra.mxu0 0.0
        %798 = vmatprep.subr.mxu0 0.0
        %799 = vmatpush1.msra.mxu0 0.0
        %800 = vmatprep.subr.mxu0 0.0
        %801 = vmatpush1.msra.mxu0 0.0
        %802 = vmatprep.subr.mxu0 0.0
        %803 = vmatpush1.msra.mxu0 0.0
        %804 = vmatprep.mubr.f32.mxu0 0.0
        %805 = vmatmul.mubr.f32.gmra.mrb[0].mxu0 %v651
        %v806 = vpop.f32.mrb[0].mxu0
        %v807 = vadd.f32 0.0, %v806
        %v808 = vpop.f32.mrb[0].mxu0
        %809 = vdwg.mxu0
        %v810 = vmul.f32 %v807, %v738
        %v811 = vmul.f32 %v739, %v739
        %v812 = vsub.f32 %v810, %v811
        %v813 = vmax.f32 %v812, 0.0
        %v814 = vadd.f32 %v813, 1e-05
        %v815 = vrsqrt.pop %v814
        %v816 = vld [vmem:[#allocation5] sm:$0xff]
        %v817 = vld [vmem:[#allocation5 + $0x8] sm:$0xff]
        %v818 = vld [vmem:[#allocation5 + $0x10] sm:$0xff]
        %v819 = vld [vmem:[#allocation5 + $0x18] sm:$0xff]
        %vm820 = vcmask 261120
        %v822 = vsel %vm820, %v739, 0
        %824 = vmatprep.subr.mxu0 0.0
        %825 = vmatpush1.msra.mxu0 %v816
        %826 = vmatprep.subr.mxu0 0.0
        %827 = vmatpush1.msra.mxu0 %v817
        %828 = vmatprep.subr.mxu0 0.0
        %829 = vmatpush1.msra.mxu0 %v818
        %830 = vmatprep.subr.mxu0 0.0
        %831 = vmatpush1.msra.mxu0 %v819
        %832 = vmatprep.subr.mxu0 0.0
        %833 = vmatpush1.msra.mxu0 0.0
        %834 = vmatprep.subr.mxu0 0.0
        %835 = vmatpush1.msra.mxu0 0.0
        %836 = vmatprep.subr.mxu0 0.0
        %837 = vmatpush1.msra.mxu0 0.0
        %838 = vmatprep.subr.mxu0 0.0
        %839 = vmatpush1.msra.mxu0 0.0
        %840 = vmatprep.subr.mxu0 0.0
        %841 = vmatpush1.msra.mxu0 0.0
        %842 = vmatprep.subr.mxu0 0.0
        %843 = vmatpush1.msra.mxu0 0.0
        %844 = vmatprep.subr.mxu0 0.0
        %845 = vmatpush1.msra.mxu0 0.0
        %846 = vmatprep.subr.mxu0 0.0
        %847 = vmatpush1.msra.mxu0 0.0
        %848 = vmatprep.subr.mxu0 0.0
        %849 = vmatpush1.msra.mxu0 0.0
        %850 = vmatprep.subr.mxu0 0.0
        %851 = vmatpush1.msra.mxu0 0.0
        %852 = vmatprep.subr.mxu0 0.0
        %853 = vmatpush1.msra.mxu0 0.0
        %854 = vmatprep.subr.mxu0 0.0
        %855 = vmatpush1.msra.mxu0 0.0
        %856 = vmatprep.subr.mxu0 0.0
        %857 = vmatpush1.msra.mxu0 0.0
        %858 = vmatprep.subr.mxu0 0.0
        %859 = vmatpush1.msra.mxu0 0.0
        %860 = vmatprep.subr.mxu0 0.0
        %861 = vmatpush1.msra.mxu0 0.0
        %862 = vmatprep.subr.mxu0 0.0
        %863 = vmatpush1.msra.mxu0 0.0
        %864 = vmatprep.subr.mxu0 0.0
        %865 = vmatpush1.msra.mxu0 0.0
        %866 = vmatprep.subr.mxu0 0.0
        %867 = vmatpush1.msra.mxu0 0.0
        %868 = vmatprep.subr.mxu0 0.0
        %869 = vmatpush1.msra.mxu0 0.0
        %870 = vmatprep.subr.mxu0 0.0
        %871 = vmatpush1.msra.mxu0 0.0
        %872 = vmatprep.subr.mxu0 0.0
        %873 = vmatpush1.msra.mxu0 0.0
        %874 = vmatprep.subr.mxu0 0.0
        %875 = vmatpush1.msra.mxu0 0.0
        %876 = vmatprep.subr.mxu0 0.0
        %877 = vmatpush1.msra.mxu0 0.0
        %878 = vmatprep.subr.mxu0 0.0
        %879 = vmatpush1.msra.mxu0 0.0
        %880 = vmatprep.subr.mxu0 0.0
        %881 = vmatpush1.msra.mxu0 0.0
        %882 = vmatprep.subr.mxu0 0.0
        %883 = vmatpush1.msra.mxu0 0.0
        %884 = vmatprep.subr.mxu0 0.0
        %885 = vmatpush1.msra.mxu0 0.0
        %886 = vmatprep.subr.mxu0 0.0
        %887 = vmatpush1.msra.mxu0 0.0
        %888 = vmatprep.mubr.f32.mxu0 0.0
        %889 = vmatmul.mubr.f32.gmra.mrb[0].mxu0 %v822
        %v890 = vpop.f32.mrb[0].mxu0
        %v891 = vadd.f32 0.0, %v890
        %v892 = vpop.f32.mrb[0].mxu0
        %893 = vdwg.mxu0
        %v895 = vsel %vm820, %v815, 0
        %897 = vmatprep.subr.mxu0 0.0
        %898 = vmatpush1.msra.mxu0 %v816
        %899 = vmatprep.subr.mxu0 0.0
        %900 = vmatpush1.msra.mxu0 %v817
        %901 = vmatprep.subr.mxu0 0.0
        %902 = vmatpush1.msra.mxu0 %v818
        %903 = vmatprep.subr.mxu0 0.0
        %904 = vmatpush1.msra.mxu0 %v819
        %905 = vmatprep.subr.mxu0 0.0
        %906 = vmatpush1.msra.mxu0 0.0
        %907 = vmatprep.subr.mxu0 0.0
        %908 = vmatpush1.msra.mxu0 0.0
        %909 = vmatprep.subr.mxu0 0.0
        %910 = vmatpush1.msra.mxu0 0.0
        %911 = vmatprep.subr.mxu0 0.0
        %912 = vmatpush1.msra.mxu0 0.0
        %913 = vmatprep.subr.mxu0 0.0
        %914 = vmatpush1.msra.mxu0 0.0
        %915 = vmatprep.subr.mxu0 0.0
        %916 = vmatpush1.msra.mxu0 0.0
        %917 = vmatprep.subr.mxu0 0.0
        %918 = vmatpush1.msra.mxu0 0.0
        %919 = vmatprep.subr.mxu0 0.0
        %920 = vmatpush1.msra.mxu0 0.0
        %921 = vmatprep.subr.mxu0 0.0
        %922 = vmatpush1.msra.mxu0 0.0
        %923 = vmatprep.subr.mxu0 0.0
        %924 = vmatpush1.msra.mxu0 0.0
        %925 = vmatprep.subr.mxu0 0.0
        %926 = vmatpush1.msra.mxu0 0.0
        %927 = vmatprep.subr.mxu0 0.0
        %928 = vmatpush1.msra.mxu0 0.0
        %929 = vmatprep.subr.mxu0 0.0
        %930 = vmatpush1.msra.mxu0 0.0
        %931 = vmatprep.subr.mxu0 0.0
        %932 = vmatpush1.msra.mxu0 0.0
        %933 = vmatprep.subr.mxu0 0.0
        %934 = vmatpush1.msra.mxu0 0.0
        %935 = vmatprep.subr.mxu0 0.0
        %936 = vmatpush1.msra.mxu0 0.0
        %937 = vmatprep.subr.mxu0 0.0
        %938 = vmatpush1.msra.mxu0 0.0
        %939 = vmatprep.subr.mxu0 0.0
        %940 = vmatpush1.msra.mxu0 0.0
        %941 = vmatprep.subr.mxu0 0.0
        %942 = vmatpush1.msra.mxu0 0.0
        %943 = vmatprep.subr.mxu0 0.0
        %944 = vmatpush1.msra.mxu0 0.0
        %945 = vmatprep.subr.mxu0 0.0
        %946 = vmatpush1.msra.mxu0 0.0
        %947 = vmatprep.subr.mxu0 0.0
        %948 = vmatpush1.msra.mxu0 0.0
        %949 = vmatprep.subr.mxu0 0.0
        %950 = vmatpush1.msra.mxu0 0.0
        %951 = vmatprep.subr.mxu0 0.0
        %952 = vmatpush1.msra.mxu0 0.0
        %953 = vmatprep.subr.mxu0 0.0
        %954 = vmatpush1.msra.mxu0 0.0
        %955 = vmatprep.subr.mxu0 0.0
        %956 = vmatpush1.msra.mxu0 0.0
        %957 = vmatprep.subr.mxu0 0.0
        %958 = vmatpush1.msra.mxu0 0.0
        %959 = vmatprep.subr.mxu0 0.0
        %960 = vmatpush1.msra.mxu0 0.0
        %961 = vmatprep.mubr.f32.mxu0 0.0
        %962 = vmatmul.mubr.f32.gmra.mrb[0].mxu0 %v895
        %v963 = vpop.f32.mrb[0].mxu0
        %v964 = vadd.f32 0.0, %v963
        %v965 = vpop.f32.mrb[0].mxu0
        %966 = vdwg.mxu0
        %v967 = vlaneseq
        %v968 = vshrl.u32 %v967, 7
        %v969 = vsub.s32 0, %v968
        %v970 = vrot.slane %v891, %v969
        %v971 = vsub.f32 %v514, %v970
        %v972 = vsub.f32 %v515, %v970
        %v973 = vsub.f32 %v516, %v970
        %v974 = vsub.f32 %v517, %v970
        %v975 = vsub.f32 %v518, %v970
        %v976 = vsub.f32 %v519, %v970
        %v977 = vsub.f32 %v520, %v970
        %v978 = vsub.f32 %v521, %v970
        %v979 = vsub.f32 %v522, %v970
        %v980 = vsub.f32 %v523, %v970
        %v981 = vsub.f32 %v524, %v970
        %v982 = vsub.f32 %v525, %v970
        %v983 = vsub.f32 %v526, %v970
        %v984 = vsub.f32 %v527, %v970
        %v985 = vsub.f32 %v528, %v970
        %v986 = vsub.f32 %v529, %v970
        %v987 = vsub.f32 %v530, %v970
        %v988 = vsub.f32 %v531, %v970
        %v989 = vsub.f32 %v532, %v970
        %v990 = vsub.f32 %v533, %v970
        %v991 = vsub.f32 %v534, %v970
        %v992 = vsub.f32 %v535, %v970
        %v993 = vsub.f32 %v536, %v970
        %v994 = vsub.f32 %v537, %v970
        %v995 = vsub.f32 %v538, %v970
        %v996 = vsub.f32 %v539, %v970
        %v997 = vsub.f32 %v540, %v970
        %v998 = vsub.f32 %v541, %v970
        %v999 = vsub.f32 %v542, %v970
        %v1000 = vsub.f32 %v543, %v970
        %v1001 = vsub.f32 %v544, %v970
        %v1002 = vsub.f32 %v545, %v970
        %v1003 = vlaneseq
        %v1004 = vshrl.u32 %v1003, 7
        %v1005 = vsub.s32 0, %v1004
        %v1006 = vrot.slane %v964, %v1005
        %v1007 = vmul.f32 %v971, %v1006
        %v1008 = vmul.f32 %v972, %v1006
        %v1009 = vmul.f32 %v973, %v1006
        %v1010 = vmul.f32 %v974, %v1006
        %v1011 = vmul.f32 %v975, %v1006
        %v1012 = vmul.f32 %v976, %v1006
        %v1013 = vmul.f32 %v977, %v1006
        %v1014 = vmul.f32 %v978, %v1006
        %v1015 = vmul.f32 %v979, %v1006
        %v1016 = vmul.f32 %v980, %v1006
        %v1017 = vmul.f32 %v981, %v1006
        %v1018 = vmul.f32 %v982, %v1006
        %v1019 = vmul.f32 %v983, %v1006
        %v1020 = vmul.f32 %v984, %v1006
        %v1021 = vmul.f32 %v985, %v1006
        %v1022 = vmul.f32 %v986, %v1006
        %v1023 = vmul.f32 %v987, %v1006
        %v1024 = vmul.f32 %v988, %v1006
        %v1025 = vmul.f32 %v989, %v1006
        %v1026 = vmul.f32 %v990, %v1006
        %v1027 = vmul.f32 %v991, %v1006
        %v1028 = vmul.f32 %v992, %v1006
        %v1029 = vmul.f32 %v993, %v1006
        %v1030 = vmul.f32 %v994, %v1006
        %v1031 = vmul.f32 %v995, %v1006
        %v1032 = vmul.f32 %v996, %v1006
        %v1033 = vmul.f32 %v997, %v1006
        %v1034 = vmul.f32 %v998, %v1006
        %v1035 = vmul.f32 %v999, %v1006
        %v1036 = vmul.f32 %v1000, %v1006
        %v1037 = vmul.f32 %v1001, %v1006
        %v1038 = vmul.f32 %v1002, %v1006
        %v1039 = vld [vmem:[%s1] sm:$0x1]
        %v1041 = vlaneseq
        %v1042 = vshrl.u32 %v1041, 7
        %v1043 = vsub.s32 0, %v1042
        %v1044 = vrot.slane %v1039, %v1043
        %v1046 = vmul.f32 %v1007, %v1044
        %v1047 = vmul.f32 %v1008, %v1044
        %v1048 = vmul.f32 %v1009, %v1044
        %v1049 = vmul.f32 %v1010, %v1044
        %v1050 = vmul.f32 %v1011, %v1044
        %v1051 = vmul.f32 %v1012, %v1044
        %v1052 = vmul.f32 %v1013, %v1044
        %v1053 = vmul.f32 %v1014, %v1044
        %v1054 = vmul.f32 %v1015, %v1044
        %v1055 = vmul.f32 %v1016, %v1044
        %v1056 = vmul.f32 %v1017, %v1044
        %v1057 = vmul.f32 %v1018, %v1044
        %v1058 = vmul.f32 %v1019, %v1044
        %v1059 = vmul.f32 %v1020, %v1044
        %v1060 = vmul.f32 %v1021, %v1044
        %v1061 = vmul.f32 %v1022, %v1044
        %v1062 = vmul.f32 %v1023, %v1044
        %v1063 = vmul.f32 %v1024, %v1044
        %v1064 = vmul.f32 %v1025, %v1044
        %v1065 = vmul.f32 %v1026, %v1044
        %v1066 = vmul.f32 %v1027, %v1044
        %v1067 = vmul.f32 %v1028, %v1044
        %v1068 = vmul.f32 %v1029, %v1044
        %v1069 = vmul.f32 %v1030, %v1044
        %v1070 = vmul.f32 %v1031, %v1044
        %v1071 = vmul.f32 %v1032, %v1044
        %v1072 = vmul.f32 %v1033, %v1044
        %v1073 = vmul.f32 %v1034, %v1044
        %v1074 = vmul.f32 %v1035, %v1044
        %v1075 = vmul.f32 %v1036, %v1044
        %v1076 = vmul.f32 %v1037, %v1044
        %v1077 = vmul.f32 %v1038, %v1044
        %v1078 = vld [vmem:[%s2] sm:$0x1]
        %v1080 = vlaneseq
        %v1081 = vshrl.u32 %v1080, 7
        %v1082 = vsub.s32 0, %v1081
        %v1083 = vrot.slane %v1078, %v1082
        %v1085 = vadd.f32 %v1046, %v1083
        %v1086 = vadd.f32 %v1047, %v1083
        %v1087 = vadd.f32 %v1048, %v1083
        %v1088 = vadd.f32 %v1049, %v1083
        %v1089 = vadd.f32 %v1050, %v1083
        %v1090 = vadd.f32 %v1051, %v1083
        %v1091 = vadd.f32 %v1052, %v1083
        %v1092 = vadd.f32 %v1053, %v1083
        %v1093 = vadd.f32 %v1054, %v1083
        %v1094 = vadd.f32 %v1055, %v1083
        %v1095 = vadd.f32 %v1056, %v1083
        %v1096 = vadd.f32 %v1057, %v1083
        %v1097 = vadd.f32 %v1058, %v1083
        %v1098 = vadd.f32 %v1059, %v1083
        %v1099 = vadd.f32 %v1060, %v1083
        %v1100 = vadd.f32 %v1061, %v1083
        %v1101 = vadd.f32 %v1062, %v1083
        %v1102 = vadd.f32 %v1063, %v1083
        %v1103 = vadd.f32 %v1064, %v1083
        %v1104 = vadd.f32 %v1065, %v1083
        %v1105 = vadd.f32 %v1066, %v1083
        %v1106 = vadd.f32 %v1067, %v1083
        %v1107 = vadd.f32 %v1068, %v1083
        %v1108 = vadd.f32 %v1069, %v1083
        %v1109 = vadd.f32 %v1070, %v1083
        %v1110 = vadd.f32 %v1071, %v1083
        %v1111 = vadd.f32 %v1072, %v1083
        %v1112 = vadd.f32 %v1073, %v1083
        %v1113 = vadd.f32 %v1074, %v1083
        %v1114 = vadd.f32 %v1075, %v1083
        %v1115 = vadd.f32 %v1076, %v1083
        %v1116 = vadd.f32 %v1077, %v1083
        %v1117 = vpack.c.bf16 %v1086, %v1085
        %v1118 = vpack.c.bf16 %v1088, %v1087
        %v1119 = vpack.c.bf16 %v1090, %v1089
        %v1120 = vpack.c.bf16 %v1092, %v1091
        %v1121 = vpack.c.bf16 %v1094, %v1093
        %v1122 = vpack.c.bf16 %v1096, %v1095
        %v1123 = vpack.c.bf16 %v1098, %v1097
        %v1124 = vpack.c.bf16 %v1100, %v1099
        %v1125 = vpack.c.bf16 %v1102, %v1101
        %v1126 = vpack.c.bf16 %v1104, %v1103
        %v1127 = vpack.c.bf16 %v1106, %v1105
        %v1128 = vpack.c.bf16 %v1108, %v1107
        %v1129 = vpack.c.bf16 %v1110, %v1109
        %v1130 = vpack.c.bf16 %v1112, %v1111
        %v1131 = vpack.c.bf16 %v1114, %v1113
        %v1132 = vpack.c.bf16 %v1116, %v1115
        %v1133 = vld [vmem:[%s5] sm:$0xf]
        %v1134 = vld [vmem:[%s5 + $0x4] sm:$0xf]
        %v1135 = vld [vmem:[%s5 + $0x8] sm:$0xf]
        %v1136 = vld [vmem:[%s5 + $0xc] sm:$0xf]
        %v1137 = vld [vmem:[%s5 + $0x10] sm:$0xf]
        %v1138 = vld [vmem:[%s5 + $0x14] sm:$0xf]
        %v1139 = vld [vmem:[%s5 + $0x18] sm:$0xf]
        %v1140 = vld [vmem:[%s5 + $0x1c] sm:$0xf]
        %v1141 = vld [vmem:[%s5 + $0x20] sm:$0xf]
        %v1142 = vld [vmem:[%s5 + $0x24] sm:$0xf]
        %v1143 = vld [vmem:[%s5 + $0x28] sm:$0xf]
        %v1144 = vld [vmem:[%s5 + $0x2c] sm:$0xf]
        %v1145 = vld [vmem:[%s5 + $0x30] sm:$0xf]
        %v1146 = vld [vmem:[%s5 + $0x34] sm:$0xf]
        %v1147 = vld [vmem:[%s5 + $0x38] sm:$0xf]
        %v1148 = vld [vmem:[%s5 + $0x3c] sm:$0xf]
        %v1149 = vld [vmem:[#allocation7] sm:$0x1]
        %v1151 = vlaneseq
        %v1152 = vshrl.u32 %v1151, 7
        %v1153 = vsub.s32 0, %v1152
        %v1154 = vrot.slane %v1149, %v1153
        %v1172 = vunpack.c.l.b16 %v1133
        %v1173 = vunpack.c.l.b16 %v1134
        %v1174 = vunpack.c.l.b16 %v1135
        %v1175 = vunpack.c.l.b16 %v1136
        %v1176 = vunpack.c.l.b16 %v1137
        %v1177 = vunpack.c.l.b16 %v1138
        %v1178 = vunpack.c.l.b16 %v1139
        %v1179 = vunpack.c.l.b16 %v1140
        %v1180 = vunpack.c.l.b16 %v1141
        %v1181 = vunpack.c.l.b16 %v1142
        %v1182 = vunpack.c.l.b16 %v1143
        %v1183 = vunpack.c.l.b16 %v1144
        %v1184 = vunpack.c.l.b16 %v1145
        %v1185 = vunpack.c.l.b16 %v1146
        %v1186 = vunpack.c.l.b16 %v1147
        %v1187 = vunpack.c.l.b16 %v1148
        %v1188 = vpack.c.b16 %v1173, %v1172
        %v1189 = vpack.c.b16 %v1175, %v1174
        %v1190 = vpack.c.b16 %v1177, %v1176
        %v1191 = vpack.c.b16 %v1179, %v1178
        %v1192 = vpack.c.b16 %v1181, %v1180
        %v1193 = vpack.c.b16 %v1183, %v1182
        %v1194 = vpack.c.b16 %v1185, %v1184
        %v1195 = vpack.c.b16 %v1187, %v1186
        %1204 = vmatprep.subr.bf16.mxu0 0
        %1205 = vmatpush1.bf16.msra.mxu0 %v1188
        %1206 = vmatprep.subr.bf16.mxu0 0
        %1207 = vmatpush1.bf16.msra.mxu0 %v1189
        %1208 = vmatprep.subr.bf16.mxu0 0
        %1209 = vmatpush1.bf16.msra.mxu0 %v1190
        %1210 = vmatprep.subr.bf16.mxu0 0
        %1211 = vmatpush1.bf16.msra.mxu0 %v1191
        %1212 = vmatprep.subr.bf16.mxu0 0
        %1213 = vmatpush1.bf16.msra.mxu0 %v1192
        %1214 = vmatprep.subr.bf16.mxu0 0
        %1215 = vmatpush1.bf16.msra.mxu0 %v1193
        %1216 = vmatprep.subr.bf16.mxu0 0
        %1217 = vmatpush1.bf16.msra.mxu0 %v1194
        %1218 = vmatprep.subr.bf16.mxu0 0
        %1219 = vmatpush1.bf16.msra.mxu0 %v1195
        %1220 = vmatprep.subr.bf16.mxu0 0
        %1221 = vmatpush1.bf16.msra.mxu0 0
        %1222 = vmatprep.subr.bf16.mxu0 0
        %1223 = vmatpush1.bf16.msra.mxu0 0
        %1224 = vmatprep.subr.bf16.mxu0 0
        %1225 = vmatpush1.bf16.msra.mxu0 0
        %1226 = vmatprep.subr.bf16.mxu0 0
        %1227 = vmatpush1.bf16.msra.mxu0 0
        %1228 = vmatprep.subr.bf16.mxu0 0
        %1229 = vmatpush1.bf16.msra.mxu0 0
        %1230 = vmatprep.subr.bf16.mxu0 0
        %1231 = vmatpush1.bf16.msra.mxu0 0
        %1232 = vmatprep.subr.bf16.mxu0 0
        %1233 = vmatpush1.bf16.msra.mxu0 0
        %1234 = vmatprep.subr.bf16.mxu0 0
        %1235 = vmatpush1.bf16.msra.mxu0 0
        %1236 = vmatprep.mubr.bf16.mxu0 0
        %1237 = vmatmul.mubr.bf16.gmra.mrb[0].mxu0 %v1117
        %v1238 = vpop.f32.mrb[0].mxu0
        %v1239 = vadd.f32 %v1154, %v1238
        %v1240 = vpop.f32.mrb[0].mxu0
        %v1241 = vpop.f32.mrb[0].mxu0
        %v1242 = vadd.f32 %v1154, %v1241
        %v1243 = vpop.f32.mrb[0].mxu0
        %1244 = vmatprep.mubr.bf16.mxu0 0
        %1245 = vmatmul.mubr.bf16.gmra.mrb[0].mxu0 %v1118
        %v1246 = vpop.f32.mrb[0].mxu0
        %v1247 = vadd.f32 %v1154, %v1246
        %v1248 = vpop.f32.mrb[0].mxu0
        %v1249 = vpop.f32.mrb[0].mxu0
        %v1250 = vadd.f32 %v1154, %v1249
        %v1251 = vpop.f32.mrb[0].mxu0
        %1252 = vmatprep.mubr.bf16.mxu0 0
        %1253 = vmatmul.mubr.bf16.gmra.mrb[0].mxu0 %v1119
        %v1254 = vpop.f32.mrb[0].mxu0
        %v1255 = vadd.f32 %v1154, %v1254
        %v1256 = vpop.f32.mrb[0].mxu0
        %v1257 = vpop.f32.mrb[0].mxu0
        %v1258 = vadd.f32 %v1154, %v1257
        %v1259 = vpop.f32.mrb[0].mxu0
        %1260 = vmatprep.mubr.bf16.mxu0 0
        %1261 = vmatmul.mubr.bf16.gmra.mrb[0].mxu0 %v1120
        %v1262 = vpop.f32.mrb[0].mxu0
        %v1263 = vadd.f32 %v1154, %v1262
        %v1264 = vpop.f32.mrb[0].mxu0
        %v1265 = vpop.f32.mrb[0].mxu0
        %v1266 = vadd.f32 %v1154, %v1265
        %v1267 = vpop.f32.mrb[0].mxu0
        %1268 = vmatprep.mubr.bf16.mxu0 0
        %1269 = vmatmul.mubr.bf16.gmra.mrb[0].mxu0 %v1121
        %v1270 = vpop.f32.mrb[0].mxu0
        %v1271 = vadd.f32 %v1154, %v1270
        %v1272 = vpop.f32.mrb[0].mxu0
        %v1273 = vpop.f32.mrb[0].mxu0
        %v1274 = vadd.f32 %v1154, %v1273
        %v1275 = vpop.f32.mrb[0].mxu0
        %1276 = vmatprep.mubr.bf16.mxu0 0
        %1277 = vmatmul.mubr.bf16.gmra.mrb[0].mxu0 %v1122
        %v1278 = vpop.f32.mrb[0].mxu0
        %v1279 = vadd.f32 %v1154, %v1278
        %v1280 = vpop.f32.mrb[0].mxu0
        %v1281 = vpop.f32.mrb[0].mxu0
        %v1282 = vadd.f32 %v1154, %v1281
        %v1283 = vpop.f32.mrb[0].mxu0
        %1284 = vmatprep.mubr.bf16.mxu0 0
        %1285 = vmatmul.mubr.bf16.gmra.mrb[0].mxu0 %v1123
        %v1286 = vpop.f32.mrb[0].mxu0
        %v1287 = vadd.f32 %v1154, %v1286
        %v1288 = vpop.f32.mrb[0].mxu0
        %v1289 = vpop.f32.mrb[0].mxu0
        %v1290 = vadd.f32 %v1154, %v1289
        %v1291 = vpop.f32.mrb[0].mxu0
        %1292 = vmatprep.mubr.bf16.mxu0 0
        %1293 = vmatmul.mubr.bf16.gmra.mrb[0].mxu0 %v1124
        %v1294 = vpop.f32.mrb[0].mxu0
        %v1295 = vadd.f32 %v1154, %v1294
        %v1296 = vpop.f32.mrb[0].mxu0
        %v1297 = vpop.f32.mrb[0].mxu0
        %v1298 = vadd.f32 %v1154, %v1297
        %v1299 = vpop.f32.mrb[0].mxu0
        %1300 = vmatprep.mubr.bf16.mxu0 0
        %1301 = vmatmul.mubr.bf16.gmra.mrb[0].mxu0 %v1125
        %v1302 = vpop.f32.mrb[0].mxu0
        %v1303 = vadd.f32 %v1154, %v1302
        %v1304 = vpop.f32.mrb[0].mxu0
        %v1305 = vpop.f32.mrb[0].mxu0
        %v1306 = vadd.f32 %v1154, %v1305
        %v1307 = vpop.f32.mrb[0].mxu0
        %1308 = vmatprep.mubr.bf16.mxu0 0
        %1309 = vmatmul.mubr.bf16.gmra.mrb[0].mxu0 %v1126
        %v1310 = vpop.f32.mrb[0].mxu0
        %v1311 = vadd.f32 %v1154, %v1310
        %v1312 = vpop.f32.mrb[0].mxu0
        %v1313 = vpop.f32.mrb[0].mxu0
        %v1314 = vadd.f32 %v1154, %v1313
        %v1315 = vpop.f32.mrb[0].mxu0
        %1316 = vmatprep.mubr.bf16.mxu0 0
        %1317 = vmatmul.mubr.bf16.gmra.mrb[0].mxu0 %v1127
        %v1318 = vpop.f32.mrb[0].mxu0
        %v1319 = vadd.f32 %v1154, %v1318
        %v1320 = vpop.f32.mrb[0].mxu0
        %v1321 = vpop.f32.mrb[0].mxu0
        %v1322 = vadd.f32 %v1154, %v1321
        %v1323 = vpop.f32.mrb[0].mxu0
        %1324 = vmatprep.mubr.bf16.mxu0 0
        %1325 = vmatmul.mubr.bf16.gmra.mrb[0].mxu0 %v1128
        %v1326 = vpop.f32.mrb[0].mxu0
        %v1327 = vadd.f32 %v1154, %v1326
        %v1328 = vpop.f32.mrb[0].mxu0
        %v1329 = vpop.f32.mrb[0].mxu0
        %v1330 = vadd.f32 %v1154, %v1329
        %v1331 = vpop.f32.mrb[0].mxu0
        %1332 = vmatprep.mubr.bf16.mxu0 0
        %1333 = vmatmul.mubr.bf16.gmra.mrb[0].mxu0 %v1129
        %v1334 = vpop.f32.mrb[0].mxu0
        %v1335 = vadd.f32 %v1154, %v1334
        %v1336 = vpop.f32.mrb[0].mxu0
        %v1337 = vpop.f32.mrb[0].mxu0
        %v1338 = vadd.f32 %v1154, %v1337
        %v1339 = vpop.f32.mrb[0].mxu0
        %1340 = vmatprep.mubr.bf16.mxu0 0
        %1341 = vmatmul.mubr.bf16.gmra.mrb[0].mxu0 %v1130
        %v1342 = vpop.f32.mrb[0].mxu0
        %v1343 = vadd.f32 %v1154, %v1342
        %v1344 = vpop.f32.mrb[0].mxu0
        %v1345 = vpop.f32.mrb[0].mxu0
        %v1346 = vadd.f32 %v1154, %v1345
        %v1347 = vpop.f32.mrb[0].mxu0
        %1348 = vmatprep.mubr.bf16.mxu0 0
        %1349 = vmatmul.mubr.bf16.gmra.mrb[0].mxu0 %v1131
        %v1350 = vpop.f32.mrb[0].mxu0
        %v1351 = vadd.f32 %v1154, %v1350
        %v1352 = vpop.f32.mrb[0].mxu0
        %v1353 = vpop.f32.mrb[0].mxu0
        %v1354 = vadd.f32 %v1154, %v1353
        %v1355 = vpop.f32.mrb[0].mxu0
        %1356 = vmatprep.mubr.bf16.mxu0 0
        %1357 = vmatmul.mubr.bf16.gmra.mrb[0].mxu0 %v1132
        %v1358 = vpop.f32.mrb[0].mxu0
        %v1359 = vadd.f32 %v1154, %v1358
        %v1360 = vpop.f32.mrb[0].mxu0
        %v1361 = vpop.f32.mrb[0].mxu0
        %v1362 = vadd.f32 %v1154, %v1361
        %v1363 = vpop.f32.mrb[0].mxu0
        %1364 = vdwg.mxu0
        %v1365 = vld [vmem:[%s7] sm:$0xf]
        %v1366 = vld [vmem:[%s7 + $0x4] sm:$0xf]
        %v1367 = vld [vmem:[%s7 + $0x8] sm:$0xf]
        %v1368 = vld [vmem:[%s7 + $0xc] sm:$0xf]
        %v1369 = vld [vmem:[%s7 + $0x10] sm:$0xf]
        %v1370 = vld [vmem:[%s7 + $0x14] sm:$0xf]
        %v1371 = vld [vmem:[%s7 + $0x18] sm:$0xf]
        %v1372 = vld [vmem:[%s7 + $0x1c] sm:$0xf]
        %v1373 = vld [vmem:[%s7 + $0x20] sm:$0xf]
        %v1374 = vld [vmem:[%s7 + $0x24] sm:$0xf]
        %v1375 = vld [vmem:[%s7 + $0x28] sm:$0xf]
        %v1376 = vld [vmem:[%s7 + $0x2c] sm:$0xf]
        %v1377 = vld [vmem:[%s7 + $0x30] sm:$0xf]
        %v1378 = vld [vmem:[%s7 + $0x34] sm:$0xf]
        %v1379 = vld [vmem:[%s7 + $0x38] sm:$0xf]
        %v1380 = vld [vmem:[%s7 + $0x3c] sm:$0xf]
        %v1381 = vld [vmem:[#allocation8] sm:$0x1]
        %v1383 = vlaneseq
        %v1384 = vshrl.u32 %v1383, 7
        %v1385 = vsub.s32 0, %v1384
        %v1386 = vrot.slane %v1381, %v1385
        %v1404 = vunpack.c.l.b16 %v1365
        %v1405 = vunpack.c.l.b16 %v1366
        %v1406 = vunpack.c.l.b16 %v1367
        %v1407 = vunpack.c.l.b16 %v1368
        %v1408 = vunpack.c.l.b16 %v1369
        %v1409 = vunpack.c.l.b16 %v1370
        %v1410 = vunpack.c.l.b16 %v1371
        %v1411 = vunpack.c.l.b16 %v1372
        %v1412 = vunpack.c.l.b16 %v1373
        %v1413 = vunpack.c.l.b16 %v1374
        %v1414 = vunpack.c.l.b16 %v1375
        %v1415 = vunpack.c.l.b16 %v1376
        %v1416 = vunpack.c.l.b16 %v1377
        %v1417 = vunpack.c.l.b16 %v1378
        %v1418 = vunpack.c.l.b16 %v1379
        %v1419 = vunpack.c.l.b16 %v1380
        %v1420 = vpack.c.b16 %v1405, %v1404
        %v1421 = vpack.c.b16 %v1407, %v1406
        %v1422 = vpack.c.b16 %v1409, %v1408
        %v1423 = vpack.c.b16 %v1411, %v1410
        %v1424 = vpack.c.b16 %v1413, %v1412
        %v1425 = vpack.c.b16 %v1415, %v1414
        %v1426 = vpack.c.b16 %v1417, %v1416
        %v1427 = vpack.c.b16 %v1419, %v1418
        %1436 = vmatprep.subr.bf16.mxu0 0
        %1437 = vmatpush1.bf16.msra.mxu0 %v1420
        %1438 = vmatprep.subr.bf16.mxu0 0
        %1439 = vmatpush1.bf16.msra.mxu0 %v1421
        %1440 = vmatprep.subr.bf16.mxu0 0
        %1441 = vmatpush1.bf16.msra.mxu0 %v1422
        %1442 = vmatprep.subr.bf16.mxu0 0
        %1443 = vmatpush1.bf16.msra.mxu0 %v1423
        %1444 = vmatprep.subr.bf16.mxu0 0
        %1445 = vmatpush1.bf16.msra.mxu0 %v1424
        %1446 = vmatprep.subr.bf16.mxu0 0
        %1447 = vmatpush1.bf16.msra.mxu0 %v1425
        %1448 = vmatprep.subr.bf16.mxu0 0
        %1449 = vmatpush1.bf16.msra.mxu0 %v1426
        %1450 = vmatprep.subr.bf16.mxu0 0
        %1451 = vmatpush1.bf16.msra.mxu0 %v1427
        %1452 = vmatprep.subr.bf16.mxu0 0
        %1453 = vmatpush1.bf16.msra.mxu0 0
        %1454 = vmatprep.subr.bf16.mxu0 0
        %1455 = vmatpush1.bf16.msra.mxu0 0
        %1456 = vmatprep.subr.bf16.mxu0 0
        %1457 = vmatpush1.bf16.msra.mxu0 0
        %1458 = vmatprep.subr.bf16.mxu0 0
        %1459 = vmatpush1.bf16.msra.mxu0 0
        %1460 = vmatprep.subr.bf16.mxu0 0
        %1461 = vmatpush1.bf16.msra.mxu0 0
        %1462 = vmatprep.subr.bf16.mxu0 0
        %1463 = vmatpush1.bf16.msra.mxu0 0
        %1464 = vmatprep.subr.bf16.mxu0 0
        %1465 = vmatpush1.bf16.msra.mxu0 0
        %1466 = vmatprep.subr.bf16.mxu0 0
        %1467 = vmatpush1.bf16.msra.mxu0 0
        %1468 = vmatprep.mubr.bf16.mxu0 0
        %1469 = vmatmul.mubr.bf16.gmra.mrb[0].mxu0 %v1117
        %v1470 = vpop.f32.mrb[0].mxu0
        %v1471 = vadd.f32 %v1386, %v1470
        %v1472 = vpop.f32.mrb[0].mxu0
        %v1473 = vpop.f32.mrb[0].mxu0
        %v1474 = vadd.f32 %v1386, %v1473
        %v1475 = vpop.f32.mrb[0].mxu0
        %1476 = vmatprep.mubr.bf16.mxu0 0
        %1477 = vmatmul.mubr.bf16.gmra.mrb[0].mxu0 %v1118
        %v1478 = vpop.f32.mrb[0].mxu0
        %v1479 = vadd.f32 %v1386, %v1478
        %v1480 = vpop.f32.mrb[0].mxu0
        %v1481 = vpop.f32.mrb[0].mxu0
        %v1482 = vadd.f32 %v1386, %v1481
        %v1483 = vpop.f32.mrb[0].mxu0
        %1484 = vmatprep.mubr.bf16.mxu0 0
        %1485 = vmatmul.mubr.bf16.gmra.mrb[0].mxu0 %v1119
        %v1486 = vpop.f32.mrb[0].mxu0
        %v1487 = vadd.f32 %v1386, %v1486
        %v1488 = vpop.f32.mrb[0].mxu0
        %v1489 = vpop.f32.mrb[0].mxu0
        %v1490 = vadd.f32 %v1386, %v1489
        %v1491 = vpop.f32.mrb[0].mxu0
        %1492 = vmatprep.mubr.bf16.mxu0 0
        %1493 = vmatmul.mubr.bf16.gmra.mrb[0].mxu0 %v1120
        %v1494 = vpop.f32.mrb[0].mxu0
        %v1495 = vadd.f32 %v1386, %v1494
        %v1496 = vpop.f32.mrb[0].mxu0
        %v1497 = vpop.f32.mrb[0].mxu0
        %v1498 = vadd.f32 %v1386, %v1497
        %v1499 = vpop.f32.mrb[0].mxu0
        %1500 = vmatprep.mubr.bf16.mxu0 0
        %1501 = vmatmul.mubr.bf16.gmra.mrb[0].mxu0 %v1121
        %v1502 = vpop.f32.mrb[0].mxu0
        %v1503 = vadd.f32 %v1386, %v1502
        %v1504 = vpop.f32.mrb[0].mxu0
        %v1505 = vpop.f32.mrb[0].mxu0
        %v1506 = vadd.f32 %v1386, %v1505
        %v1507 = vpop.f32.mrb[0].mxu0
        %1508 = vmatprep.mubr.bf16.mxu0 0
        %1509 = vmatmul.mubr.bf16.gmra.mrb[0].mxu0 %v1122
        %v1510 = vpop.f32.mrb[0].mxu0
        %v1511 = vadd.f32 %v1386, %v1510
        %v1512 = vpop.f32.mrb[0].mxu0
        %v1513 = vpop.f32.mrb[0].mxu0
        %v1514 = vadd.f32 %v1386, %v1513
        %v1515 = vpop.f32.mrb[0].mxu0
        %1516 = vmatprep.mubr.bf16.mxu0 0
        %1517 = vmatmul.mubr.bf16.gmra.mrb[0].mxu0 %v1123
        %v1518 = vpop.f32.mrb[0].mxu0
        %v1519 = vadd.f32 %v1386, %v1518
        %v1520 = vpop.f32.mrb[0].mxu0
        %v1521 = vpop.f32.mrb[0].mxu0
        %v1522 = vadd.f32 %v1386, %v1521
        %v1523 = vpop.f32.mrb[0].mxu0
        %1524 = vmatprep.mubr.bf16.mxu0 0
        %1525 = vmatmul.mubr.bf16.gmra.mrb[0].mxu0 %v1124
        %v1526 = vpop.f32.mrb[0].mxu0
        %v1527 = vadd.f32 %v1386, %v1526
        %v1528 = vpop.f32.mrb[0].mxu0
        %v1529 = vpop.f32.mrb[0].mxu0
        %v1530 = vadd.f32 %v1386, %v1529
        %v1531 = vpop.f32.mrb[0].mxu0
        %1532 = vmatprep.mubr.bf16.mxu0 0
        %1533 = vmatmul.mubr.bf16.gmra.mrb[0].mxu0 %v1125
        %v1534 = vpop.f32.mrb[0].mxu0
        %v1535 = vadd.f32 %v1386, %v1534
        %v1536 = vpop.f32.mrb[0].mxu0
        %v1537 = vpop.f32.mrb[0].mxu0
        %v1538 = vadd.f32 %v1386, %v1537
        %v1539 = vpop.f32.mrb[0].mxu0
        %1540 = vmatprep.mubr.bf16.mxu0 0
        %1541 = vmatmul.mubr.bf16.gmra.mrb[0].mxu0 %v1126
        %v1542 = vpop.f32.mrb[0].mxu0
        %v1543 = vadd.f32 %v1386, %v1542
        %v1544 = vpop.f32.mrb[0].mxu0
        %v1545 = vpop.f32.mrb[0].mxu0
        %v1546 = vadd.f32 %v1386, %v1545
        %v1547 = vpop.f32.mrb[0].mxu0
        %1548 = vmatprep.mubr.bf16.mxu0 0
        %1549 = vmatmul.mubr.bf16.gmra.mrb[0].mxu0 %v1127
        %v1550 = vpop.f32.mrb[0].mxu0
        %v1551 = vadd.f32 %v1386, %v1550
        %v1552 = vpop.f32.mrb[0].mxu0
        %v1553 = vpop.f32.mrb[0].mxu0
        %v1554 = vadd.f32 %v1386, %v1553
        %v1555 = vpop.f32.mrb[0].mxu0
        %1556 = vmatprep.mubr.bf16.mxu0 0
        %1557 = vmatmul.mubr.bf16.gmra.mrb[0].mxu0 %v1128
        %v1558 = vpop.f32.mrb[0].mxu0
        %v1559 = vadd.f32 %v1386, %v1558
        %v1560 = vpop.f32.mrb[0].mxu0
        %v1561 = vpop.f32.mrb[0].mxu0
        %v1562 = vadd.f32 %v1386, %v1561
        %v1563 = vpop.f32.mrb[0].mxu0
        %1564 = vmatprep.mubr.bf16.mxu0 0
        %1565 = vmatmul.mubr.bf16.gmra.mrb[0].mxu0 %v1129
        %v1566 = vpop.f32.mrb[0].mxu0
        %v1567 = vadd.f32 %v1386, %v1566
        %v1568 = vpop.f32.mrb[0].mxu0
        %v1569 = vpop.f32.mrb[0].mxu0
        %v1570 = vadd.f32 %v1386, %v1569
        %v1571 = vpop.f32.mrb[0].mxu0
        %1572 = vmatprep.mubr.bf16.mxu0 0
        %1573 = vmatmul.mubr.bf16.gmra.mrb[0].mxu0 %v1130
        %v1574 = vpop.f32.mrb[0].mxu0
        %v1575 = vadd.f32 %v1386, %v1574
        %v1576 = vpop.f32.mrb[0].mxu0
        %v1577 = vpop.f32.mrb[0].mxu0
        %v1578 = vadd.f32 %v1386, %v1577
        %v1579 = vpop.f32.mrb[0].mxu0
        %1580 = vmatprep.mubr.bf16.mxu0 0
        %1581 = vmatmul.mubr.bf16.gmra.mrb[0].mxu0 %v1131
        %v1582 = vpop.f32.mrb[0].mxu0
        %v1583 = vadd.f32 %v1386, %v1582
        %v1584 = vpop.f32.mrb[0].mxu0
        %v1585 = vpop.f32.mrb[0].mxu0
        %v1586 = vadd.f32 %v1386, %v1585
        %v1587 = vpop.f32.mrb[0].mxu0
        %1588 = vmatprep.mubr.bf16.mxu0 0
        %1589 = vmatmul.mubr.bf16.gmra.mrb[0].mxu0 %v1132
        %v1590 = vpop.f32.mrb[0].mxu0
        %v1591 = vadd.f32 %v1386, %v1590
        %v1592 = vpop.f32.mrb[0].mxu0
        %v1593 = vpop.f32.mrb[0].mxu0
        %v1594 = vadd.f32 %v1386, %v1593
        %v1595 = vpop.f32.mrb[0].mxu0
        %1596 = vdwg.mxu0
        %v1597 = vld [vmem:[%s9] sm:$0xf]
        %v1598 = vld [vmem:[%s9 + $0x4] sm:$0xf]
        %v1599 = vld [vmem:[%s9 + $0x8] sm:$0xf]
        %v1600 = vld [vmem:[%s9 + $0xc] sm:$0xf]
        %v1601 = vld [vmem:[%s9 + $0x10] sm:$0xf]
        %v1602 = vld [vmem:[%s9 + $0x14] sm:$0xf]
        %v1603 = vld [vmem:[%s9 + $0x18] sm:$0xf]
        %v1604 = vld [vmem:[%s9 + $0x1c] sm:$0xf]
        %v1605 = vld [vmem:[%s9 + $0x20] sm:$0xf]
        %v1606 = vld [vmem:[%s9 + $0x24] sm:$0xf]
        %v1607 = vld [vmem:[%s9 + $0x28] sm:$0xf]
        %v1608 = vld [vmem:[%s9 + $0x2c] sm:$0xf]
        %v1609 = vld [vmem:[%s9 + $0x30] sm:$0xf]
        %v1610 = vld [vmem:[%s9 + $0x34] sm:$0xf]
        %v1611 = vld [vmem:[%s9 + $0x38] sm:$0xf]
        %v1612 = vld [vmem:[%s9 + $0x3c] sm:$0xf]
        %v1613 = vld [vmem:[%s10] sm:$0x1]
        %v1615 = vlaneseq
        %v1616 = vshrl.u32 %v1615, 7
        %v1617 = vsub.s32 0, %v1616
        %v1618 = vrot.slane %v1613, %v1617
        %v1636 = vunpack.c.l.b16 %v1597
        %v1637 = vunpack.c.l.b16 %v1598
        %v1638 = vunpack.c.l.b16 %v1599
        %v1639 = vunpack.c.l.b16 %v1600
        %v1640 = vunpack.c.l.b16 %v1601
        %v1641 = vunpack.c.l.b16 %v1602
        %v1642 = vunpack.c.l.b16 %v1603
        %v1643 = vunpack.c.l.b16 %v1604
        %v1644 = vunpack.c.l.b16 %v1605
        %v1645 = vunpack.c.l.b16 %v1606
        %v1646 = vunpack.c.l.b16 %v1607
        %v1647 = vunpack.c.l.b16 %v1608
        %v1648 = vunpack.c.l.b16 %v1609
        %v1649 = vunpack.c.l.b16 %v1610
        %v1650 = vunpack.c.l.b16 %v1611
        %v1651 = vunpack.c.l.b16 %v1612
        %v1652 = vpack.c.b16 %v1637, %v1636
        %v1653 = vpack.c.b16 %v1639, %v1638
        %v1654 = vpack.c.b16 %v1641, %v1640
        %v1655 = vpack.c.b16 %v1643, %v1642
        %v1656 = vpack.c.b16 %v1645, %v1644
        %v1657 = vpack.c.b16 %v1647, %v1646
        %v1658 = vpack.c.b16 %v1649, %v1648
        %v1659 = vpack.c.b16 %v1651, %v1650
        %1668 = vmatprep.subr.bf16.mxu0 0
        %1669 = vmatpush1.bf16.msra.mxu0 %v1652
        %1670 = vmatprep.subr.bf16.mxu0 0
        %1671 = vmatpush1.bf16.msra.mxu0 %v1653
        %1672 = vmatprep.subr.bf16.mxu0 0
        %1673 = vmatpush1.bf16.msra.mxu0 %v1654
        %1674 = vmatprep.subr.bf16.mxu0 0
        %1675 = vmatpush1.bf16.msra.mxu0 %v1655
        %1676 = vmatprep.subr.bf16.mxu0 0
        %1677 = vmatpush1.bf16.msra.mxu0 %v1656
        %1678 = vmatprep.subr.bf16.mxu0 0
        %1679 = vmatpush1.bf16.msra.mxu0 %v1657
        %1680 = vmatprep.subr.bf16.mxu0 0
        %1681 = vmatpush1.bf16.msra.mxu0 %v1658
        %1682 = vmatprep.subr.bf16.mxu0 0
        %1683 = vmatpush1.bf16.msra.mxu0 %v1659
        %1684 = vmatprep.subr.bf16.mxu0 0
        %1685 = vmatpush1.bf16.msra.mxu0 0
        %1686 = vmatprep.subr.bf16.mxu0 0
        %1687 = vmatpush1.bf16.msra.mxu0 0
        %1688 = vmatprep.subr.bf16.mxu0 0
        %1689 = vmatpush1.bf16.msra.mxu0 0
        %1690 = vmatprep.subr.bf16.mxu0 0
        %1691 = vmatpush1.bf16.msra.mxu0 0
        %1692 = vmatprep.subr.bf16.mxu0 0
        %1693 = vmatpush1.bf16.msra.mxu0 0
        %1694 = vmatprep.subr.bf16.mxu0 0
        %1695 = vmatpush1.bf16.msra.mxu0 0
        %1696 = vmatprep.subr.bf16.mxu0 0
        %1697 = vmatpush1.bf16.msra.mxu0 0
        %1698 = vmatprep.subr.bf16.mxu0 0
        %1699 = vmatpush1.bf16.msra.mxu0 0
        %1700 = vmatprep.mubr.bf16.mxu0 0
        %1701 = vmatmul.mubr.bf16.gmra.mrb[0].mxu0 %v1117
        %v1702 = vpop.f32.mrb[0].mxu0
        %v1703 = vadd.f32 %v1618, %v1702
        %v1704 = vpop.f32.mrb[0].mxu0
        %v1705 = vpop.f32.mrb[0].mxu0
        %v1706 = vadd.f32 %v1618, %v1705
        %v1707 = vpop.f32.mrb[0].mxu0
        %1708 = vmatprep.mubr.bf16.mxu0 0
        %1709 = vmatmul.mubr.bf16.gmra.mrb[0].mxu0 %v1118
        %v1710 = vpop.f32.mrb[0].mxu0
        %v1711 = vadd.f32 %v1618, %v1710
        %v1712 = vpop.f32.mrb[0].mxu0
        %v1713 = vpop.f32.mrb[0].mxu0
        %v1714 = vadd.f32 %v1618, %v1713
        %v1715 = vpop.f32.mrb[0].mxu0
        %1716 = vmatprep.mubr.bf16.mxu0 0
        %1717 = vmatmul.mubr.bf16.gmra.mrb[0].mxu0 %v1119
        %v1718 = vpop.f32.mrb[0].mxu0
        %v1719 = vadd.f32 %v1618, %v1718
        %v1720 = vpop.f32.mrb[0].mxu0
        %v1721 = vpop.f32.mrb[0].mxu0
        %v1722 = vadd.f32 %v1618, %v1721
        %v1723 = vpop.f32.mrb[0].mxu0
        %1724 = vmatprep.mubr.bf16.mxu0 0
        %1725 = vmatmul.mubr.bf16.gmra.mrb[0].mxu0 %v1120
        %v1726 = vpop.f32.mrb[0].mxu0
        %v1727 = vadd.f32 %v1618, %v1726
        %v1728 = vpop.f32.mrb[0].mxu0
        %v1729 = vpop.f32.mrb[0].mxu0
        %v1730 = vadd.f32 %v1618, %v1729
        %v1731 = vpop.f32.mrb[0].mxu0
        %1732 = vmatprep.mubr.bf16.mxu0 0
        %1733 = vmatmul.mubr.bf16.gmra.mrb[0].mxu0 %v1121
        %v1734 = vpop.f32.mrb[0].mxu0
        %v1735 = vadd.f32 %v1618, %v1734
        %v1736 = vpop.f32.mrb[0].mxu0
        %v1737 = vpop.f32.mrb[0].mxu0
        %v1738 = vadd.f32 %v1618, %v1737
        %v1739 = vpop.f32.mrb[0].mxu0
        %1740 = vmatprep.mubr.bf16.mxu0 0
        %1741 = vmatmul.mubr.bf16.gmra.mrb[0].mxu0 %v1122
        %v1742 = vpop.f32.mrb[0].mxu0
        %v1743 = vadd.f32 %v1618, %v1742
        %v1744 = vpop.f32.mrb[0].mxu0
        %v1745 = vpop.f32.mrb[0].mxu0
        %v1746 = vadd.f32 %v1618, %v1745
        %v1747 = vpop.f32.mrb[0].mxu0
        %1748 = vmatprep.mubr.bf16.mxu0 0
        %1749 = vmatmul.mubr.bf16.gmra.mrb[0].mxu0 %v1123
        %v1750 = vpop.f32.mrb[0].mxu0
        %v1751 = vadd.f32 %v1618, %v1750
        %v1752 = vpop.f32.mrb[0].mxu0
        %v1753 = vpop.f32.mrb[0].mxu0
        %v1754 = vadd.f32 %v1618, %v1753
        %v1755 = vpop.f32.mrb[0].mxu0
        %1756 = vmatprep.mubr.bf16.mxu0 0
        %1757 = vmatmul.mubr.bf16.gmra.mrb[0].mxu0 %v1124
        %v1758 = vpop.f32.mrb[0].mxu0
        %v1759 = vadd.f32 %v1618, %v1758
        %v1760 = vpop.f32.mrb[0].mxu0
        %v1761 = vpop.f32.mrb[0].mxu0
        %v1762 = vadd.f32 %v1618, %v1761
        %v1763 = vpop.f32.mrb[0].mxu0
        %1764 = vmatprep.mubr.bf16.mxu0 0
        %1765 = vmatmul.mubr.bf16.gmra.mrb[0].mxu0 %v1125
        %v1766 = vpop.f32.mrb[0].mxu0
        %v1767 = vadd.f32 %v1618, %v1766
        %v1768 = vpop.f32.mrb[0].mxu0
        %v1769 = vpop.f32.mrb[0].mxu0
        %v1770 = vadd.f32 %v1618, %v1769
        %v1771 = vpop.f32.mrb[0].mxu0
        %1772 = vmatprep.mubr.bf16.mxu0 0
        %1773 = vmatmul.mubr.bf16.gmra.mrb[0].mxu0 %v1126
        %v1774 = vpop.f32.mrb[0].mxu0
        %v1775 = vadd.f32 %v1618, %v1774
        %v1776 = vpop.f32.mrb[0].mxu0
        %v1777 = vpop.f32.mrb[0].mxu0
        %v1778 = vadd.f32 %v1618, %v1777
        %v1779 = vpop.f32.mrb[0].mxu0
        %1780 = vmatprep.mubr.bf16.mxu0 0
        %1781 = vmatmul.mubr.bf16.gmra.mrb[0].mxu0 %v1127
        %v1782 = vpop.f32.mrb[0].mxu0
        %v1783 = vadd.f32 %v1618, %v1782
        %v1784 = vpop.f32.mrb[0].mxu0
        %v1785 = vpop.f32.mrb[0].mxu0
        %v1786 = vadd.f32 %v1618, %v1785
        %v1787 = vpop.f32.mrb[0].mxu0
        %1788 = vmatprep.mubr.bf16.mxu0 0
        %1789 = vmatmul.mubr.bf16.gmra.mrb[0].mxu0 %v1128
        %v1790 = vpop.f32.mrb[0].mxu0
        %v1791 = vadd.f32 %v1618, %v1790
        %v1792 = vpop.f32.mrb[0].mxu0
        %v1793 = vpop.f32.mrb[0].mxu0
        %v1794 = vadd.f32 %v1618, %v1793
        %v1795 = vpop.f32.mrb[0].mxu0
        %1796 = vmatprep.mubr.bf16.mxu0 0
        %1797 = vmatmul.mubr.bf16.gmra.mrb[0].mxu0 %v1129
        %v1798 = vpop.f32.mrb[0].mxu0
        %v1799 = vadd.f32 %v1618, %v1798
        %v1800 = vpop.f32.mrb[0].mxu0
        %v1801 = vpop.f32.mrb[0].mxu0
        %v1802 = vadd.f32 %v1618, %v1801
        %v1803 = vpop.f32.mrb[0].mxu0
        %1804 = vmatprep.mubr.bf16.mxu0 0
        %1805 = vmatmul.mubr.bf16.gmra.mrb[0].mxu0 %v1130
        %v1806 = vpop.f32.mrb[0].mxu0
        %v1807 = vadd.f32 %v1618, %v1806
        %v1808 = vpop.f32.mrb[0].mxu0
        %v1809 = vpop.f32.mrb[0].mxu0
        %v1810 = vadd.f32 %v1618, %v1809
        %v1811 = vpop.f32.mrb[0].mxu0
        %1812 = vmatprep.mubr.bf16.mxu0 0
        %1813 = vmatmul.mubr.bf16.gmra.mrb[0].mxu0 %v1131
        %v1814 = vpop.f32.mrb[0].mxu0
        %v1815 = vadd.f32 %v1618, %v1814
        %v1816 = vpop.f32.mrb[0].mxu0
        %v1817 = vpop.f32.mrb[0].mxu0
        %v1818 = vadd.f32 %v1618, %v1817
        %v1819 = vpop.f32.mrb[0].mxu0
        %1820 = vmatprep.mubr.bf16.mxu0 0
        %1821 = vmatmul.mubr.bf16.gmra.mrb[0].mxu0 %v1132
        %v1822 = vpop.f32.mrb[0].mxu0
        %v1823 = vadd.f32 %v1618, %v1822
        %v1824 = vpop.f32.mrb[0].mxu0
        %v1825 = vpop.f32.mrb[0].mxu0
        %v1826 = vadd.f32 %v1618, %v1825
        %v1827 = vpop.f32.mrb[0].mxu0
        %1828 = vdwg.mxu0
        %v1829 = vpack.c.bf16 %v1242, %v1239
        %v1830 = vpack.c.bf16 %v1250, %v1247
        %v1831 = vpack.c.bf16 %v1258, %v1255
        %v1832 = vpack.c.bf16 %v1266, %v1263
        %v1833 = vpack.c.bf16 %v1274, %v1271
        %v1834 = vpack.c.bf16 %v1282, %v1279
        %v1835 = vpack.c.bf16 %v1290, %v1287
        %v1836 = vpack.c.bf16 %v1298, %v1295
        %v1837 = vpack.c.bf16 %v1306, %v1303
        %v1838 = vpack.c.bf16 %v1314, %v1311
        %v1839 = vpack.c.bf16 %v1322, %v1319
        %v1840 = vpack.c.bf16 %v1330, %v1327
        %v1841 = vpack.c.bf16 %v1338, %v1335
        %v1842 = vpack.c.bf16 %v1346, %v1343
        %v1843 = vpack.c.bf16 %v1354, %v1351
        %v1844 = vpack.c.bf16 %v1362, %v1359
        %v1845 = vpack.c.bf16 %v1474, %v1471
        %v1846 = vpack.c.bf16 %v1482, %v1479
        %v1847 = vpack.c.bf16 %v1490, %v1487
        %v1848 = vpack.c.bf16 %v1498, %v1495
        %v1849 = vpack.c.bf16 %v1506, %v1503
        %v1850 = vpack.c.bf16 %v1514, %v1511
        %v1851 = vpack.c.bf16 %v1522, %v1519
        %v1852 = vpack.c.bf16 %v1530, %v1527
        %v1853 = vpack.c.bf16 %v1538, %v1535
        %v1854 = vpack.c.bf16 %v1546, %v1543
        %v1855 = vpack.c.bf16 %v1554, %v1551
        %v1856 = vpack.c.bf16 %v1562, %v1559
        %v1857 = vpack.c.bf16 %v1570, %v1567
        %v1858 = vpack.c.bf16 %v1578, %v1575
        %v1859 = vpack.c.bf16 %v1586, %v1583
        %v1860 = vpack.c.bf16 %v1594, %v1591
        %1861 = vmatprep.subr.bf16.mxu0 0
        %1862 = vmatpush1.bf16.xpose.msra.mxu0 %v1845
        %1863 = vmatprep.subr.bf16.mxu0 0
        %1864 = vmatpush1.bf16.xpose.msra.mxu0 %v1846
        %1865 = vmatprep.subr.bf16.mxu0 0
        %1866 = vmatpush1.bf16.xpose.msra.mxu0 %v1847
        %1867 = vmatprep.subr.bf16.mxu0 0
        %1868 = vmatpush1.bf16.xpose.msra.mxu0 %v1848
        %1869 = vmatprep.subr.bf16.mxu0 0
        %1870 = vmatpush1.bf16.xpose.msra.mxu0 %v1849
        %1871 = vmatprep.subr.bf16.mxu0 0
        %1872 = vmatpush1.bf16.xpose.msra.mxu0 %v1850
        %1873 = vmatprep.subr.bf16.mxu0 0
        %1874 = vmatpush1.bf16.xpose.msra.mxu0 %v1851
        %1875 = vmatprep.subr.bf16.mxu0 0
        %1876 = vmatpush1.bf16.xpose.msra.mxu0 %v1852
        %1877 = vmatprep.subr.bf16.mxu0 0
        %1878 = vmatpush1.bf16.xpose.msra.mxu0 %v1853
        %1879 = vmatprep.subr.bf16.mxu0 0
        %1880 = vmatpush1.bf16.xpose.msra.mxu0 %v1854
        %1881 = vmatprep.subr.bf16.mxu0 0
        %1882 = vmatpush1.bf16.xpose.msra.mxu0 %v1855
        %1883 = vmatprep.subr.bf16.mxu0 0
        %1884 = vmatpush1.bf16.xpose.msra.mxu0 %v1856
        %1885 = vmatprep.subr.bf16.mxu0 0
        %1886 = vmatpush1.bf16.xpose.msra.mxu0 %v1857
        %1887 = vmatprep.subr.bf16.mxu0 0
        %1888 = vmatpush1.bf16.xpose.msra.mxu0 %v1858
        %1889 = vmatprep.subr.bf16.mxu0 0
        %1890 = vmatpush1.bf16.xpose.msra.mxu0 %v1859
        %1891 = vmatprep.subr.bf16.mxu0 0
        %1892 = vmatpush1.bf16.xpose.msra.mxu0 %v1860
        %1893 = vmatprep.mubr.bf16.mxu0 0
        %1894 = vmatmul.mubr.bf16.gmra.mrb[0].mxu0 %v1829
        %v1895 = vpop.f32.mrb[0].mxu0
        %v1896 = vadd.f32 0.0, %v1895
        %v1897 = vpop.f32.mrb[0].mxu0
        %v1898 = vadd.f32 0.0, %v1897
        %v1899 = vpop.f32.mrb[0].mxu0
        %v1900 = vadd.f32 0.0, %v1899
        %v1901 = vpop.f32.mrb[0].mxu0
        %v1902 = vadd.f32 0.0, %v1901
        %1903 = vmatprep.mubr.bf16.mxu0 0
        %1904 = vmatmul.mubr.bf16.gmra.mrb[0].mxu0 %v1830
        %v1905 = vpop.f32.mrb[0].mxu0
        %v1906 = vadd.f32 0.0, %v1905
        %v1907 = vpop.f32.mrb[0].mxu0
        %v1908 = vadd.f32 0.0, %v1907
        %v1909 = vpop.f32.mrb[0].mxu0
        %v1910 = vadd.f32 0.0, %v1909
        %v1911 = vpop.f32.mrb[0].mxu0
        %v1912 = vadd.f32 0.0, %v1911
        %1913 = vmatprep.mubr.bf16.mxu0 0
        %1914 = vmatmul.mubr.bf16.gmra.mrb[0].mxu0 %v1831
        %v1915 = vpop.f32.mrb[0].mxu0
        %v1916 = vadd.f32 0.0, %v1915
        %v1917 = vpop.f32.mrb[0].mxu0
        %v1918 = vadd.f32 0.0, %v1917
        %v1919 = vpop.f32.mrb[0].mxu0
        %v1920 = vadd.f32 0.0, %v1919
        %v1921 = vpop.f32.mrb[0].mxu0
        %v1922 = vadd.f32 0.0, %v1921
        %1923 = vmatprep.mubr.bf16.mxu0 0
        %1924 = vmatmul.mubr.bf16.gmra.mrb[0].mxu0 %v1832
        %v1925 = vpop.f32.mrb[0].mxu0
        %v1926 = vadd.f32 0.0, %v1925
        %v1927 = vpop.f32.mrb[0].mxu0
        %v1928 = vadd.f32 0.0, %v1927
        %v1929 = vpop.f32.mrb[0].mxu0
        %v1930 = vadd.f32 0.0, %v1929
        %v1931 = vpop.f32.mrb[0].mxu0
        %v1932 = vadd.f32 0.0, %v1931
        %1933 = vmatprep.mubr.bf16.mxu0 0
        %1934 = vmatmul.mubr.bf16.gmra.mrb[0].mxu0 %v1833
        %v1935 = vpop.f32.mrb[0].mxu0
        %v1936 = vadd.f32 0.0, %v1935
        %v1937 = vpop.f32.mrb[0].mxu0
        %v1938 = vadd.f32 0.0, %v1937
        %v1939 = vpop.f32.mrb[0].mxu0
        %v1940 = vadd.f32 0.0, %v1939
        %v1941 = vpop.f32.mrb[0].mxu0
        %v1942 = vadd.f32 0.0, %v1941
        %1943 = vmatprep.mubr.bf16.mxu0 0
        %1944 = vmatmul.mubr.bf16.gmra.mrb[0].mxu0 %v1834
        %v1945 = vpop.f32.mrb[0].mxu0
        %v1946 = vadd.f32 0.0, %v1945
        %v1947 = vpop.f32.mrb[0].mxu0
        %v1948 = vadd.f32 0.0, %v1947
        %v1949 = vpop.f32.mrb[0].mxu0
        %v1950 = vadd.f32 0.0, %v1949
        %v1951 = vpop.f32.mrb[0].mxu0
        %v1952 = vadd.f32 0.0, %v1951
        %1953 = vmatprep.mubr.bf16.mxu0 0
        %1954 = vmatmul.mubr.bf16.gmra.mrb[0].mxu0 %v1835
        %v1955 = vpop.f32.mrb[0].mxu0
        %v1956 = vadd.f32 0.0, %v1955
        %v1957 = vpop.f32.mrb[0].mxu0
        %v1958 = vadd.f32 0.0, %v1957
        %v1959 = vpop.f32.mrb[0].mxu0
        %v1960 = vadd.f32 0.0, %v1959
        %v1961 = vpop.f32.mrb[0].mxu0
        %v1962 = vadd.f32 0.0, %v1961
        %1963 = vmatprep.mubr.bf16.mxu0 0
        %1964 = vmatmul.mubr.bf16.gmra.mrb[0].mxu0 %v1836
        %v1965 = vpop.f32.mrb[0].mxu0
        %v1966 = vadd.f32 0.0, %v1965
        %v1967 = vpop.f32.mrb[0].mxu0
        %v1968 = vadd.f32 0.0, %v1967
        %v1969 = vpop.f32.mrb[0].mxu0
        %v1970 = vadd.f32 0.0, %v1969
        %v1971 = vpop.f32.mrb[0].mxu0
        %v1972 = vadd.f32 0.0, %v1971
        %1973 = vmatprep.mubr.bf16.mxu0 0
        %1974 = vmatmul.mubr.bf16.gmra.mrb[0].mxu0 %v1837
        %v1975 = vpop.f32.mrb[0].mxu0
        %v1976 = vadd.f32 0.0, %v1975
        %v1977 = vpop.f32.mrb[0].mxu0
        %v1978 = vadd.f32 0.0, %v1977
        %v1979 = vpop.f32.mrb[0].mxu0
        %v1980 = vadd.f32 0.0, %v1979
        %v1981 = vpop.f32.mrb[0].mxu0
        %v1982 = vadd.f32 0.0, %v1981
        %1983 = vmatprep.mubr.bf16.mxu0 0
        %1984 = vmatmul.mubr.bf16.gmra.mrb[0].mxu0 %v1838
        %v1985 = vpop.f32.mrb[0].mxu0
        %v1986 = vadd.f32 0.0, %v1985
        %v1987 = vpop.f32.mrb[0].mxu0
        %v1988 = vadd.f32 0.0, %v1987
        %v1989 = vpop.f32.mrb[0].mxu0
        %v1990 = vadd.f32 0.0, %v1989
        %v1991 = vpop.f32.mrb[0].mxu0
        %v1992 = vadd.f32 0.0, %v1991
        %1993 = vmatprep.mubr.bf16.mxu0 0
        %1994 = vmatmul.mubr.bf16.gmra.mrb[0].mxu0 %v1839
        %v1995 = vpop.f32.mrb[0].mxu0
        %v1996 = vadd.f32 0.0, %v1995
        %v1997 = vpop.f32.mrb[0].mxu0
        %v1998 = vadd.f32 0.0, %v1997
        %v1999 = vpop.f32.mrb[0].mxu0
        %v2000 = vadd.f32 0.0, %v1999
        %v2001 = vpop.f32.mrb[0].mxu0
        %v2002 = vadd.f32 0.0, %v2001
        %2003 = vmatprep.mubr.bf16.mxu0 0
        %2004 = vmatmul.mubr.bf16.gmra.mrb[0].mxu0 %v1840
        %v2005 = vpop.f32.mrb[0].mxu0
        %v2006 = vadd.f32 0.0, %v2005
        %v2007 = vpop.f32.mrb[0].mxu0
        %v2008 = vadd.f32 0.0, %v2007
        %v2009 = vpop.f32.mrb[0].mxu0
        %v2010 = vadd.f32 0.0, %v2009
        %v2011 = vpop.f32.mrb[0].mxu0
        %v2012 = vadd.f32 0.0, %v2011
        %2013 = vmatprep.mubr.bf16.mxu0 0
        %2014 = vmatmul.mubr.bf16.gmra.mrb[0].mxu0 %v1841
        %v2015 = vpop.f32.mrb[0].mxu0
        %v2016 = vadd.f32 0.0, %v2015
        %v2017 = vpop.f32.mrb[0].mxu0
        %v2018 = vadd.f32 0.0, %v2017
        %v2019 = vpop.f32.mrb[0].mxu0
        %v2020 = vadd.f32 0.0, %v2019
        %v2021 = vpop.f32.mrb[0].mxu0
        %v2022 = vadd.f32 0.0, %v2021
        %2023 = vmatprep.mubr.bf16.mxu0 0
        %2024 = vmatmul.mubr.bf16.gmra.mrb[0].mxu0 %v1842
        %v2025 = vpop.f32.mrb[0].mxu0
        %v2026 = vadd.f32 0.0, %v2025
        %v2027 = vpop.f32.mrb[0].mxu0
        %v2028 = vadd.f32 0.0, %v2027
        %v2029 = vpop.f32.mrb[0].mxu0
        %v2030 = vadd.f32 0.0, %v2029
        %v2031 = vpop.f32.mrb[0].mxu0
        %v2032 = vadd.f32 0.0, %v2031
        %2033 = vmatprep.mubr.bf16.mxu0 0
        %2034 = vmatmul.mubr.bf16.gmra.mrb[0].mxu0 %v1843
        %v2035 = vpop.f32.mrb[0].mxu0
        %v2036 = vadd.f32 0.0, %v2035
        %v2037 = vpop.f32.mrb[0].mxu0
        %v2038 = vadd.f32 0.0, %v2037
        %v2039 = vpop.f32.mrb[0].mxu0
        %v2040 = vadd.f32 0.0, %v2039
        %v2041 = vpop.f32.mrb[0].mxu0
        %v2042 = vadd.f32 0.0, %v2041
        %2043 = vmatprep.mubr.bf16.mxu0 0
        %2044 = vmatmul.mubr.bf16.gmra.mrb[0].mxu0 %v1844
        %v2045 = vpop.f32.mrb[0].mxu0
        %v2046 = vadd.f32 0.0, %v2045
        %v2047 = vpop.f32.mrb[0].mxu0
        %v2048 = vadd.f32 0.0, %v2047
        %v2049 = vpop.f32.mrb[0].mxu0
        %v2050 = vadd.f32 0.0, %v2049
        %v2051 = vpop.f32.mrb[0].mxu0
        %v2052 = vadd.f32 0.0, %v2051
        %2053 = vdwg.mxu0
        %v2054 = vmul.f32 %v1896, 0.088388346
        %v2055 = vmul.f32 %v1898, 0.088388346
        %v2056 = vmul.f32 %v1900, 0.088388346
        %v2057 = vmul.f32 %v1902, 0.088388346
        %v2058 = vmul.f32 %v1906, 0.088388346
        %v2059 = vmul.f32 %v1908, 0.088388346
        %v2060 = vmul.f32 %v1910, 0.088388346
        %v2061 = vmul.f32 %v1912, 0.088388346
        %v2062 = vmul.f32 %v1916, 0.088388346
        %v2063 = vmul.f32 %v1918, 0.088388346
        %v2064 = vmul.f32 %v1920, 0.088388346
        %v2065 = vmul.f32 %v1922, 0.088388346
        %v2066 = vmul.f32 %v1926, 0.088388346
        %v2067 = vmul.f32 %v1928, 0.088388346
        %v2068 = vmul.f32 %v1930, 0.088388346
        %v2069 = vmul.f32 %v1932, 0.088388346
        %v2070 = vmul.f32 %v1936, 0.088388346
        %v2071 = vmul.f32 %v1938, 0.088388346
        %v2072 = vmul.f32 %v1940, 0.088388346
        %v2073 = vmul.f32 %v1942, 0.088388346
        %v2074 = vmul.f32 %v1946, 0.088388346
        %v2075 = vmul.f32 %v1948, 0.088388346
        %v2076 = vmul.f32 %v1950, 0.088388346
        %v2077 = vmul.f32 %v1952, 0.088388346
        %v2078 = vmul.f32 %v1956, 0.088388346
        %v2079 = vmul.f32 %v1958, 0.088388346
        %v2080 = vmul.f32 %v1960, 0.088388346
        %v2081 = vmul.f32 %v1962, 0.088388346
        %v2082 = vmul.f32 %v1966, 0.088388346
        %v2083 = vmul.f32 %v1968, 0.088388346
        %v2084 = vmul.f32 %v1970, 0.088388346
        %v2085 = vmul.f32 %v1972, 0.088388346
        %v2086 = vmul.f32 %v1976, 0.088388346
        %v2087 = vmul.f32 %v1978, 0.088388346
        %v2088 = vmul.f32 %v1980, 0.088388346
        %v2089 = vmul.f32 %v1982, 0.088388346
        %v2090 = vmul.f32 %v1986, 0.088388346
        %v2091 = vmul.f32 %v1988, 0.088388346
        %v2092 = vmul.f32 %v1990, 0.088388346
        %v2093 = vmul.f32 %v1992, 0.088388346
        %v2094 = vmul.f32 %v1996, 0.088388346
        %v2095 = vmul.f32 %v1998, 0.088388346
        %v2096 = vmul.f32 %v2000, 0.088388346
        %v2097 = vmul.f32 %v2002, 0.088388346
        %v2098 = vmul.f32 %v2006, 0.088388346
        %v2099 = vmul.f32 %v2008, 0.088388346
        %v2100 = vmul.f32 %v2010, 0.088388346
        %v2101 = vmul.f32 %v2012, 0.088388346
        %v2102 = vmul.f32 %v2016, 0.088388346
        %v2103 = vmul.f32 %v2018, 0.088388346
        %v2104 = vmul.f32 %v2020, 0.088388346
        %v2105 = vmul.f32 %v2022, 0.088388346
        %v2106 = vmul.f32 %v2026, 0.088388346
        %v2107 = vmul.f32 %v2028, 0.088388346
        %v2108 = vmul.f32 %v2030, 0.088388346
        %v2109 = vmul.f32 %v2032, 0.088388346
        %v2110 = vmul.f32 %v2036, 0.088388346
        %v2111 = vmul.f32 %v2038, 0.088388346
        %v2112 = vmul.f32 %v2040, 0.088388346
        %v2113 = vmul.f32 %v2042, 0.088388346
        %v2114 = vmul.f32 %v2046, 0.088388346
        %v2115 = vmul.f32 %v2048, 0.088388346
        %v2116 = vmul.f32 %v2050, 0.088388346
        %v2117 = vmul.f32 %v2052, 0.088388346
        %v2118 = vmax.f32 %v2054, %v2055
        %2119 = vmax.xlane.f32.xlu0 %v2118
        %v2120 = vpop.xlane.xlu0 %2119
        %v2121 = vmax.f32 %v2056, %v2057
        %2122 = vmax.xlane.f32.xlu0 %v2121
        %v2123 = vpop.xlane.xlu0 %2122
        %v2124 = vmax.f32 %v2058, %v2059
        %2125 = vmax.xlane.f32.xlu0 %v2124
        %v2126 = vpop.xlane.xlu0 %2125
        %v2127 = vmax.f32 %v2060, %v2061
        %2128 = vmax.xlane.f32.xlu0 %v2127
        %v2129 = vpop.xlane.xlu0 %2128
        %v2130 = vmax.f32 %v2062, %v2063
        %2131 = vmax.xlane.f32.xlu0 %v2130
        %v2132 = vpop.xlane.xlu0 %2131
        %v2133 = vmax.f32 %v2064, %v2065
        %2134 = vmax.xlane.f32.xlu0 %v2133
        %v2135 = vpop.xlane.xlu0 %2134
        %v2136 = vmax.f32 %v2066, %v2067
        %2137 = vmax.xlane.f32.xlu0 %v2136
        %v2138 = vpop.xlane.xlu0 %2137
        %v2139 = vmax.f32 %v2068, %v2069
        %2140 = vmax.xlane.f32.xlu0 %v2139
        %v2141 = vpop.xlane.xlu0 %2140
        %v2142 = vmax.f32 %v2070, %v2071
        %2143 = vmax.xlane.f32.xlu0 %v2142
        %v2144 = vpop.xlane.xlu0 %2143
        %v2145 = vmax.f32 %v2072, %v2073
        %2146 = vmax.xlane.f32.xlu0 %v2145
        %v2147 = vpop.xlane.xlu0 %2146
        %v2148 = vmax.f32 %v2074, %v2075
        %2149 = vmax.xlane.f32.xlu0 %v2148
        %v2150 = vpop.xlane.xlu0 %2149
        %v2151 = vmax.f32 %v2076, %v2077
        %2152 = vmax.xlane.f32.xlu0 %v2151
        %v2153 = vpop.xlane.xlu0 %2152
        %v2154 = vmax.f32 %v2078, %v2079
        %2155 = vmax.xlane.f32.xlu0 %v2154
        %v2156 = vpop.xlane.xlu0 %2155
        %v2157 = vmax.f32 %v2080, %v2081
        %2158 = vmax.xlane.f32.xlu0 %v2157
        %v2159 = vpop.xlane.xlu0 %2158
        %v2160 = vmax.f32 %v2082, %v2083
        %2161 = vmax.xlane.f32.xlu0 %v2160
        %v2162 = vpop.xlane.xlu0 %2161
        %v2163 = vmax.f32 %v2084, %v2085
        %2164 = vmax.xlane.f32.xlu0 %v2163
        %v2165 = vpop.xlane.xlu0 %2164
        %v2166 = vmax.f32 %v2086, %v2087
        %2167 = vmax.xlane.f32.xlu0 %v2166
        %v2168 = vpop.xlane.xlu0 %2167
        %v2169 = vmax.f32 %v2088, %v2089
        %2170 = vmax.xlane.f32.xlu0 %v2169
        %v2171 = vpop.xlane.xlu0 %2170
        %v2172 = vmax.f32 %v2090, %v2091
        %2173 = vmax.xlane.f32.xlu0 %v2172
        %v2174 = vpop.xlane.xlu0 %2173
        %v2175 = vmax.f32 %v2092, %v2093
        %2176 = vmax.xlane.f32.xlu0 %v2175
        %v2177 = vpop.xlane.xlu0 %2176
        %v2178 = vmax.f32 %v2094, %v2095
        %2179 = vmax.xlane.f32.xlu0 %v2178
        %v2180 = vpop.xlane.xlu0 %2179
        %v2181 = vmax.f32 %v2096, %v2097
        %2182 = vmax.xlane.f32.xlu0 %v2181
        %v2183 = vpop.xlane.xlu0 %2182
        %v2184 = vmax.f32 %v2098, %v2099
        %2185 = vmax.xlane.f32.xlu0 %v2184
        %v2186 = vpop.xlane.xlu0 %2185
        %v2187 = vmax.f32 %v2100, %v2101
        %2188 = vmax.xlane.f32.xlu0 %v2187
        %v2189 = vpop.xlane.xlu0 %2188
        %v2190 = vmax.f32 %v2102, %v2103
        %2191 = vmax.xlane.f32.xlu0 %v2190
        %v2192 = vpop.xlane.xlu0 %2191
        %v2193 = vmax.f32 %v2104, %v2105
        %2194 = vmax.xlane.f32.xlu0 %v2193
        %v2195 = vpop.xlane.xlu0 %2194
        %v2196 = vmax.f32 %v2106, %v2107
        %2197 = vmax.xlane.f32.xlu0 %v2196
        %v2198 = vpop.xlane.xlu0 %2197
        %v2199 = vmax.f32 %v2108, %v2109
        %2200 = vmax.xlane.f32.xlu0 %v2199
        %v2201 = vpop.xlane.xlu0 %2200
        %v2202 = vmax.f32 %v2110, %v2111
        %2203 = vmax.xlane.f32.xlu0 %v2202
        %v2204 = vpop.xlane.xlu0 %2203
        %v2205 = vmax.f32 %v2112, %v2113
        %2206 = vmax.xlane.f32.xlu0 %v2205
        %v2207 = vpop.xlane.xlu0 %2206
        %v2208 = vmax.f32 %v2114, %v2115
        %2209 = vmax.xlane.f32.xlu0 %v2208
        %v2210 = vpop.xlane.xlu0 %2209
        %v2211 = vmax.f32 %v2116, %v2117
        %2212 = vmax.xlane.f32.xlu0 %v2211
        %v2213 = vpop.xlane.xlu0 %2212
        %v2214 = vsub.f32 %v2054, %v2120
        %v2215 = vsub.f32 %v2055, %v2120
        %v2216 = vsub.f32 %v2056, %v2123
        %v2217 = vsub.f32 %v2057, %v2123
        %v2218 = vsub.f32 %v2058, %v2126
        %v2219 = vsub.f32 %v2059, %v2126
        %v2220 = vsub.f32 %v2060, %v2129
        %v2221 = vsub.f32 %v2061, %v2129
        %v2222 = vsub.f32 %v2062, %v2132
        %v2223 = vsub.f32 %v2063, %v2132
        %v2224 = vsub.f32 %v2064, %v2135
        %v2225 = vsub.f32 %v2065, %v2135
        %v2226 = vsub.f32 %v2066, %v2138
        %v2227 = vsub.f32 %v2067, %v2138
        %v2228 = vsub.f32 %v2068, %v2141
        %v2229 = vsub.f32 %v2069, %v2141
        %v2230 = vsub.f32 %v2070, %v2144
        %v2231 = vsub.f32 %v2071, %v2144
        %v2232 = vsub.f32 %v2072, %v2147
        %v2233 = vsub.f32 %v2073, %v2147
        %v2234 = vsub.f32 %v2074, %v2150
        %v2235 = vsub.f32 %v2075, %v2150
        %v2236 = vsub.f32 %v2076, %v2153
        %v2237 = vsub.f32 %v2077, %v2153
        %v2238 = vsub.f32 %v2078, %v2156
        %v2239 = vsub.f32 %v2079, %v2156
        %v2240 = vsub.f32 %v2080, %v2159
        %v2241 = vsub.f32 %v2081, %v2159
        %v2242 = vsub.f32 %v2082, %v2162
        %v2243 = vsub.f32 %v2083, %v2162
        %v2244 = vsub.f32 %v2084, %v2165
        %v2245 = vsub.f32 %v2085, %v2165
        %v2246 = vsub.f32 %v2086, %v2168
        %v2247 = vsub.f32 %v2087, %v2168
        %v2248 = vsub.f32 %v2088, %v2171
        %v2249 = vsub.f32 %v2089, %v2171
        %v2250 = vsub.f32 %v2090, %v2174
        %v2251 = vsub.f32 %v2091, %v2174
        %v2252 = vsub.f32 %v2092, %v2177
        %v2253 = vsub.f32 %v2093, %v2177
        %v2254 = vsub.f32 %v2094, %v2180
        %v2255 = vsub.f32 %v2095, %v2180
        %v2256 = vsub.f32 %v2096, %v2183
        %v2257 = vsub.f32 %v2097, %v2183
        %v2258 = vsub.f32 %v2098, %v2186
        %v2259 = vsub.f32 %v2099, %v2186
        %v2260 = vsub.f32 %v2100, %v2189
        %v2261 = vsub.f32 %v2101, %v2189
        %v2262 = vsub.f32 %v2102, %v2192
        %v2263 = vsub.f32 %v2103, %v2192
        %v2264 = vsub.f32 %v2104, %v2195
        %v2265 = vsub.f32 %v2105, %v2195
        %v2266 = vsub.f32 %v2106, %v2198
        %v2267 = vsub.f32 %v2107, %v2198
        %v2268 = vsub.f32 %v2108, %v2201
        %v2269 = vsub.f32 %v2109, %v2201
        %v2270 = vsub.f32 %v2110, %v2204
        %v2271 = vsub.f32 %v2111, %v2204
        %v2272 = vsub.f32 %v2112, %v2207
        %v2273 = vsub.f32 %v2113, %v2207
        %v2274 = vsub.f32 %v2114, %v2210
        %v2275 = vsub.f32 %v2115, %v2210
        %v2276 = vsub.f32 %v2116, %v2213
        %v2277 = vsub.f32 %v2117, %v2213
        %v2278 = vmul.f32 %v2214, 1.442695
        %v2279 = vpow.pop %v2278
        %v2280 = vmul.f32 %v2215, 1.442695
        %v2281 = vpow.pop %v2280
        %v2282 = vmul.f32 %v2216, 1.442695
        %v2283 = vpow.pop %v2282
        %v2284 = vmul.f32 %v2217, 1.442695
        %v2285 = vpow.pop %v2284
        %v2286 = vmul.f32 %v2218, 1.442695
        %v2287 = vpow.pop %v2286
        %v2288 = vmul.f32 %v2219, 1.442695
        %v2289 = vpow.pop %v2288
        %v2290 = vmul.f32 %v2220, 1.442695
        %v2291 = vpow.pop %v2290
        %v2292 = vmul.f32 %v2221, 1.442695
        %v2293 = vpow.pop %v2292
        %v2294 = vmul.f32 %v2222, 1.442695
        %v2295 = vpow.pop %v2294
        %v2296 = vmul.f32 %v2223, 1.442695
        %v2297 = vpow.pop %v2296
        %v2298 = vmul.f32 %v2224, 1.442695
        %v2299 = vpow.pop %v2298
        %v2300 = vmul.f32 %v2225, 1.442695
        %v2301 = vpow.pop %v2300
        %v2302 = vmul.f32 %v2226, 1.442695
        %v2303 = vpow.pop %v2302
        %v2304 = vmul.f32 %v2227, 1.442695
        %v2305 = vpow.pop %v2304
        %v2306 = vmul.f32 %v2228, 1.442695
        %v2307 = vpow.pop %v2306
        %v2308 = vmul.f32 %v2229, 1.442695
        %v2309 = vpow.pop %v2308
        %v2310 = vmul.f32 %v2230, 1.442695
        %v2311 = vpow.pop %v2310
        %v2312 = vmul.f32 %v2231, 1.442695
        %v2313 = vpow.pop %v2312
        %v2314 = vmul.f32 %v2232, 1.442695
        %v2315 = vpow.pop %v2314
        %v2316 = vmul.f32 %v2233, 1.442695
        %v2317 = vpow.pop %v2316
        %v2318 = vmul.f32 %v2234, 1.442695
        %v2319 = vpow.pop %v2318
        %v2320 = vmul.f32 %v2235, 1.442695
        %v2321 = vpow.pop %v2320
        %v2322 = vmul.f32 %v2236, 1.442695
        %v2323 = vpow.pop %v2322
        %v2324 = vmul.f32 %v2237, 1.442695
        %v2325 = vpow.pop %v2324
        %v2326 = vmul.f32 %v2238, 1.442695
        %v2327 = vpow.pop %v2326
        %v2328 = vmul.f32 %v2239, 1.442695
        %v2329 = vpow.pop %v2328
        %v2330 = vmul.f32 %v2240, 1.442695
        %v2331 = vpow.pop %v2330
        %v2332 = vmul.f32 %v2241, 1.442695
        %v2333 = vpow.pop %v2332
        %v2334 = vmul.f32 %v2242, 1.442695
        %v2335 = vpow.pop %v2334
        %v2336 = vmul.f32 %v2243, 1.442695
        %v2337 = vpow.pop %v2336
        %v2338 = vmul.f32 %v2244, 1.442695
        %v2339 = vpow.pop %v2338
        %v2340 = vmul.f32 %v2245, 1.442695
        %v2341 = vpow.pop %v2340
        %v2342 = vmul.f32 %v2246, 1.442695
        %v2343 = vpow.pop %v2342
        %v2344 = vmul.f32 %v2247, 1.442695
        %v2345 = vpow.pop %v2344
        %v2346 = vmul.f32 %v2248, 1.442695
        %v2347 = vpow.pop %v2346
        %v2348 = vmul.f32 %v2249, 1.442695
        %v2349 = vpow.pop %v2348
        %v2350 = vmul.f32 %v2250, 1.442695
        %v2351 = vpow.pop %v2350
        %v2352 = vmul.f32 %v2251, 1.442695
        %v2353 = vpow.pop %v2352
        %v2354 = vmul.f32 %v2252, 1.442695
        %v2355 = vpow.pop %v2354
        %v2356 = vmul.f32 %v2253, 1.442695
        %v2357 = vpow.pop %v2356
        %v2358 = vmul.f32 %v2254, 1.442695
        %v2359 = vpow.pop %v2358
        %v2360 = vmul.f32 %v2255, 1.442695
        %v2361 = vpow.pop %v2360
        %v2362 = vmul.f32 %v2256, 1.442695
        %v2363 = vpow.pop %v2362
        %v2364 = vmul.f32 %v2257, 1.442695
        %v2365 = vpow.pop %v2364
        %v2366 = vmul.f32 %v2258, 1.442695
        %v2367 = vpow.pop %v2366
        %v2368 = vmul.f32 %v2259, 1.442695
        %v2369 = vpow.pop %v2368
        %v2370 = vmul.f32 %v2260, 1.442695
        %v2371 = vpow.pop %v2370
        %v2372 = vmul.f32 %v2261, 1.442695
        %v2373 = vpow.pop %v2372
        %v2374 = vmul.f32 %v2262, 1.442695
        %v2375 = vpow.pop %v2374
        %v2376 = vmul.f32 %v2263, 1.442695
        %v2377 = vpow.pop %v2376
        %v2378 = vmul.f32 %v2264, 1.442695
        %v2379 = vpow.pop %v2378
        %v2380 = vmul.f32 %v2265, 1.442695
        %v2381 = vpow.pop %v2380
        %v2382 = vmul.f32 %v2266, 1.442695
        %v2383 = vpow.pop %v2382
        %v2384 = vmul.f32 %v2267, 1.442695
        %v2385 = vpow.pop %v2384
        %v2386 = vmul.f32 %v2268, 1.442695
        %v2387 = vpow.pop %v2386
        %v2388 = vmul.f32 %v2269, 1.442695
        %v2389 = vpow.pop %v2388
        %v2390 = vmul.f32 %v2270, 1.442695
        %v2391 = vpow.pop %v2390
        %v2392 = vmul.f32 %v2271, 1.442695
        %v2393 = vpow.pop %v2392
        %v2394 = vmul.f32 %v2272, 1.442695
        %v2395 = vpow.pop %v2394
        %v2396 = vmul.f32 %v2273, 1.442695
        %v2397 = vpow.pop %v2396
        %v2398 = vmul.f32 %v2274, 1.442695
        %v2399 = vpow.pop %v2398
        %v2400 = vmul.f32 %v2275, 1.442695
        %v2401 = vpow.pop %v2400
        %v2402 = vmul.f32 %v2276, 1.442695
        %v2403 = vpow.pop %v2402
        %v2404 = vmul.f32 %v2277, 1.442695
        %v2405 = vpow.pop %v2404
        %v2406 = vadd.f32 %v2279, %v2281
        %2407 = vadd.xlane.f32.xlu0 %v2406
        %v2408 = vpop.xlane.xlu0 %2407
        %v2409 = vadd.f32 %v2283, %v2285
        %2410 = vadd.xlane.f32.xlu0 %v2409
        %v2411 = vpop.xlane.xlu0 %2410
        %v2412 = vadd.f32 %v2287, %v2289
        %2413 = vadd.xlane.f32.xlu0 %v2412
        %v2414 = vpop.xlane.xlu0 %2413
        %v2415 = vadd.f32 %v2291, %v2293
        %2416 = vadd.xlane.f32.xlu0 %v2415
        %v2417 = vpop.xlane.xlu0 %2416
        %v2418 = vadd.f32 %v2295, %v2297
        %2419 = vadd.xlane.f32.xlu0 %v2418
        %v2420 = vpop.xlane.xlu0 %2419
        %v2421 = vadd.f32 %v2299, %v2301
        %2422 = vadd.xlane.f32.xlu0 %v2421
        %v2423 = vpop.xlane.xlu0 %2422
        %v2424 = vadd.f32 %v2303, %v2305
        %2425 = vadd.xlane.f32.xlu0 %v2424
        %v2426 = vpop.xlane.xlu0 %2425
        %v2427 = vadd.f32 %v2307, %v2309
        %2428 = vadd.xlane.f32.xlu0 %v2427
        %v2429 = vpop.xlane.xlu0 %2428
        %v2430 = vadd.f32 %v2311, %v2313
        %2431 = vadd.xlane.f32.xlu0 %v2430
        %v2432 = vpop.xlane.xlu0 %2431
        %v2433 = vadd.f32 %v2315, %v2317
        %2434 = vadd.xlane.f32.xlu0 %v2433
        %v2435 = vpop.xlane.xlu0 %2434
        %v2436 = vadd.f32 %v2319, %v2321
        %2437 = vadd.xlane.f32.xlu0 %v2436
        %v2438 = vpop.xlane.xlu0 %2437
        %v2439 = vadd.f32 %v2323, %v2325
        %2440 = vadd.xlane.f32.xlu0 %v2439
        %v2441 = vpop.xlane.xlu0 %2440
        %v2442 = vadd.f32 %v2327, %v2329
        %2443 = vadd.xlane.f32.xlu0 %v2442
        %v2444 = vpop.xlane.xlu0 %2443
        %v2445 = vadd.f32 %v2331, %v2333
        %2446 = vadd.xlane.f32.xlu0 %v2445
        %v2447 = vpop.xlane.xlu0 %2446
        %v2448 = vadd.f32 %v2335, %v2337
        %2449 = vadd.xlane.f32.xlu0 %v2448
        %v2450 = vpop.xlane.xlu0 %2449
        %v2451 = vadd.f32 %v2339, %v2341
        %2452 = vadd.xlane.f32.xlu0 %v2451
        %v2453 = vpop.xlane.xlu0 %2452
        %v2454 = vadd.f32 %v2343, %v2345
        %2455 = vadd.xlane.f32.xlu0 %v2454
        %v2456 = vpop.xlane.xlu0 %2455
        %v2457 = vadd.f32 %v2347, %v2349
        %2458 = vadd.xlane.f32.xlu0 %v2457
        %v2459 = vpop.xlane.xlu0 %2458
        %v2460 = vadd.f32 %v2351, %v2353
        %2461 = vadd.xlane.f32.xlu0 %v2460
        %v2462 = vpop.xlane.xlu0 %2461
        %v2463 = vadd.f32 %v2355, %v2357
        %2464 = vadd.xlane.f32.xlu0 %v2463
        %v2465 = vpop.xlane.xlu0 %2464
        %v2466 = vadd.f32 %v2359, %v2361
        %2467 = vadd.xlane.f32.xlu0 %v2466
        %v2468 = vpop.xlane.xlu0 %2467
        %v2469 = vadd.f32 %v2363, %v2365
        %2470 = vadd.xlane.f32.xlu0 %v2469
        %v2471 = vpop.xlane.xlu0 %2470
        %v2472 = vadd.f32 %v2367, %v2369
        %2473 = vadd.xlane.f32.xlu0 %v2472
        %v2474 = vpop.xlane.xlu0 %2473
        %v2475 = vadd.f32 %v2371, %v2373
        %2476 = vadd.xlane.f32.xlu0 %v2475
        %v2477 = vpop.xlane.xlu0 %2476
        %v2478 = vadd.f32 %v2375, %v2377
        %2479 = vadd.xlane.f32.xlu0 %v2478
        %v2480 = vpop.xlane.xlu0 %2479
        %v2481 = vadd.f32 %v2379, %v2381
        %2482 = vadd.xlane.f32.xlu0 %v2481
        %v2483 = vpop.xlane.xlu0 %2482
        %v2484 = vadd.f32 %v2383, %v2385
        %2485 = vadd.xlane.f32.xlu0 %v2484
        %v2486 = vpop.xlane.xlu0 %2485
        %v2487 = vadd.f32 %v2387, %v2389
        %2488 = vadd.xlane.f32.xlu0 %v2487
        %v2489 = vpop.xlane.xlu0 %2488
        %v2490 = vadd.f32 %v2391, %v2393
        %2491 = vadd.xlane.f32.xlu0 %v2490
        %v2492 = vpop.xlane.xlu0 %2491
        %v2493 = vadd.f32 %v2395, %v2397
        %2494 = vadd.xlane.f32.xlu0 %v2493
        %v2495 = vpop.xlane.xlu0 %2494
        %v2496 = vadd.f32 %v2399, %v2401
        %2497 = vadd.xlane.f32.xlu0 %v2496
        %v2498 = vpop.xlane.xlu0 %2497
        %v2499 = vadd.f32 %v2403, %v2405
        %2500 = vadd.xlane.f32.xlu0 %v2499
        %v2501 = vpop.xlane.xlu0 %2500
        %v2502 = vrcp.pop %v2408
        %v2503 = vrcp.pop %v2411
        %v2504 = vrcp.pop %v2414
        %v2505 = vrcp.pop %v2417
        %v2506 = vrcp.pop %v2420
        %v2507 = vrcp.pop %v2423
        %v2508 = vrcp.pop %v2426
        %v2509 = vrcp.pop %v2429
        %v2510 = vrcp.pop %v2432
        %v2511 = vrcp.pop %v2435
        %v2512 = vrcp.pop %v2438
        %v2513 = vrcp.pop %v2441
        %v2514 = vrcp.pop %v2444
        %v2515 = vrcp.pop %v2447
        %v2516 = vrcp.pop %v2450
        %v2517 = vrcp.pop %v2453
        %v2518 = vrcp.pop %v2456
        %v2519 = vrcp.pop %v2459
        %v2520 = vrcp.pop %v2462
        %v2521 = vrcp.pop %v2465
        %v2522 = vrcp.pop %v2468
        %v2523 = vrcp.pop %v2471
        %v2524 = vrcp.pop %v2474
        %v2525 = vrcp.pop %v2477
        %v2526 = vrcp.pop %v2480
        %v2527 = vrcp.pop %v2483
        %v2528 = vrcp.pop %v2486
        %v2529 = vrcp.pop %v2489
        %v2530 = vrcp.pop %v2492
        %v2531 = vrcp.pop %v2495
        %v2532 = vrcp.pop %v2498
        %v2533 = vrcp.pop %v2501
        %v2534 = vmul.f32 %v2279, %v2502
        %v2535 = vmul.f32 %v2281, %v2502
        %v2536 = vmul.f32 %v2283, %v2503
        %v2537 = vmul.f32 %v2285, %v2503
        %v2538 = vmul.f32 %v2287, %v2504
        %v2539 = vmul.f32 %v2289, %v2504
        %v2540 = vmul.f32 %v2291, %v2505
        %v2541 = vmul.f32 %v2293, %v2505
        %v2542 = vmul.f32 %v2295, %v2506
        %v2543 = vmul.f32 %v2297, %v2506
        %v2544 = vmul.f32 %v2299, %v2507
        %v2545 = vmul.f32 %v2301, %v2507
        %v2546 = vmul.f32 %v2303, %v2508
        %v2547 = vmul.f32 %v2305, %v2508
        %v2548 = vmul.f32 %v2307, %v2509
        %v2549 = vmul.f32 %v2309, %v2509
        %v2550 = vmul.f32 %v2311, %v2510
        %v2551 = vmul.f32 %v2313, %v2510
        %v2552 = vmul.f32 %v2315, %v2511
        %v2553 = vmul.f32 %v2317, %v2511
        %v2554 = vmul.f32 %v2319, %v2512
        %v2555 = vmul.f32 %v2321, %v2512
        %v2556 = vmul.f32 %v2323, %v2513
        %v2557 = vmul.f32 %v2325, %v2513
        %v2558 = vmul.f32 %v2327, %v2514
        %v2559 = vmul.f32 %v2329, %v2514
        %v2560 = vmul.f32 %v2331, %v2515
        %v2561 = vmul.f32 %v2333, %v2515
        %v2562 = vmul.f32 %v2335, %v2516
        %v2563 = vmul.f32 %v2337, %v2516
        %v2564 = vmul.f32 %v2339, %v2517
        %v2565 = vmul.f32 %v2341, %v2517
        %v2566 = vmul.f32 %v2343, %v2518
        %v2567 = vmul.f32 %v2345, %v2518
        %v2568 = vmul.f32 %v2347, %v2519
        %v2569 = vmul.f32 %v2349, %v2519
        %v2570 = vmul.f32 %v2351, %v2520
        %v2571 = vmul.f32 %v2353, %v2520
        %v2572 = vmul.f32 %v2355, %v2521
        %v2573 = vmul.f32 %v2357, %v2521
        %v2574 = vmul.f32 %v2359, %v2522
        %v2575 = vmul.f32 %v2361, %v2522
        %v2576 = vmul.f32 %v2363, %v2523
        %v2577 = vmul.f32 %v2365, %v2523
        %v2578 = vmul.f32 %v2367, %v2524
        %v2579 = vmul.f32 %v2369, %v2524
        %v2580 = vmul.f32 %v2371, %v2525
        %v2581 = vmul.f32 %v2373, %v2525
        %v2582 = vmul.f32 %v2375, %v2526
        %v2583 = vmul.f32 %v2377, %v2526
        %v2584 = vmul.f32 %v2379, %v2527
        %v2585 = vmul.f32 %v2381, %v2527
        %v2586 = vmul.f32 %v2383, %v2528
        %v2587 = vmul.f32 %v2385, %v2528
        %v2588 = vmul.f32 %v2387, %v2529
        %v2589 = vmul.f32 %v2389, %v2529
        %v2590 = vmul.f32 %v2391, %v2530
        %v2591 = vmul.f32 %v2393, %v2530
        %v2592 = vmul.f32 %v2395, %v2531
        %v2593 = vmul.f32 %v2397, %v2531
        %v2594 = vmul.f32 %v2399, %v2532
        %v2595 = vmul.f32 %v2401, %v2532
        %v2596 = vmul.f32 %v2403, %v2533
        %v2597 = vmul.f32 %v2405, %v2533
        %v2598 = vpack.c.bf16 %v2536, %v2534
        %v2599 = vpack.c.bf16 %v2537, %v2535
        %v2600 = vpack.c.bf16 %v2540, %v2538
        %v2601 = vpack.c.bf16 %v2541, %v2539
        %v2602 = vpack.c.bf16 %v2544, %v2542
        %v2603 = vpack.c.bf16 %v2545, %v2543
        %v2604 = vpack.c.bf16 %v2548, %v2546
        %v2605 = vpack.c.bf16 %v2549, %v2547
        %v2606 = vpack.c.bf16 %v2552, %v2550
        %v2607 = vpack.c.bf16 %v2553, %v2551
        %v2608 = vpack.c.bf16 %v2556, %v2554
        %v2609 = vpack.c.bf16 %v2557, %v2555
        %v2610 = vpack.c.bf16 %v2560, %v2558
        %v2611 = vpack.c.bf16 %v2561, %v2559
        %v2612 = vpack.c.bf16 %v2564, %v2562
        %v2613 = vpack.c.bf16 %v2565, %v2563
        %v2614 = vpack.c.bf16 %v2568, %v2566
        %v2615 = vpack.c.bf16 %v2569, %v2567
        %v2616 = vpack.c.bf16 %v2572, %v2570
        %v2617 = vpack.c.bf16 %v2573, %v2571
        %v2618 = vpack.c.bf16 %v2576, %v2574
        %v2619 = vpack.c.bf16 %v2577, %v2575
        %v2620 = vpack.c.bf16 %v2580, %v2578
        %v2621 = vpack.c.bf16 %v2581, %v2579
        %v2622 = vpack.c.bf16 %v2584, %v2582
        %v2623 = vpack.c.bf16 %v2585, %v2583
        %v2624 = vpack.c.bf16 %v2588, %v2586
        %v2625 = vpack.c.bf16 %v2589, %v2587
        %v2626 = vpack.c.bf16 %v2592, %v2590
        %v2627 = vpack.c.bf16 %v2593, %v2591
        %v2628 = vpack.c.bf16 %v2596, %v2594
        %v2629 = vpack.c.bf16 %v2597, %v2595
        %v2630 = vpack.c.bf16 %v1706, %v1703
        %v2631 = vpack.c.bf16 %v1714, %v1711
        %v2632 = vpack.c.bf16 %v1722, %v1719
        %v2633 = vpack.c.bf16 %v1730, %v1727
        %v2634 = vpack.c.bf16 %v1738, %v1735
        %v2635 = vpack.c.bf16 %v1746, %v1743
        %v2636 = vpack.c.bf16 %v1754, %v1751
        %v2637 = vpack.c.bf16 %v1762, %v1759
        %v2638 = vpack.c.bf16 %v1770, %v1767
        %v2639 = vpack.c.bf16 %v1778, %v1775
        %v2640 = vpack.c.bf16 %v1786, %v1783
        %v2641 = vpack.c.bf16 %v1794, %v1791
        %v2642 = vpack.c.bf16 %v1802, %v1799
        %v2643 = vpack.c.bf16 %v1810, %v1807
        %v2644 = vpack.c.bf16 %v1818, %v1815
        %v2645 = vpack.c.bf16 %v1826, %v1823
        %2646 = vmatprep.subr.bf16.mxu0 0
        %2647 = vmatpush1.bf16.msra.mxu0 %v2630
        %2648 = vmatprep.subr.bf16.mxu0 0
        %2649 = vmatpush1.bf16.msra.mxu0 %v2631
        %2650 = vmatprep.subr.bf16.mxu0 0
        %2651 = vmatpush1.bf16.msra.mxu0 %v2632
        %2652 = vmatprep.subr.bf16.mxu0 0
        %2653 = vmatpush1.bf16.msra.mxu0 %v2633
        %2654 = vmatprep.subr.bf16.mxu0 0
        %2655 = vmatpush1.bf16.msra.mxu0 %v2634
        %2656 = vmatprep.subr.bf16.mxu0 0
        %2657 = vmatpush1.bf16.msra.mxu0 %v2635
        %2658 = vmatprep.subr.bf16.mxu0 0
        %2659 = vmatpush1.bf16.msra.mxu0 %v2636
        %2660 = vmatprep.subr.bf16.mxu0 0
        %2661 = vmatpush1.bf16.msra.mxu0 %v2637
        %2662 = vmatprep.subr.bf16.mxu0 0
        %2663 = vmatpush1.bf16.msra.mxu0 %v2638
        %2664 = vmatprep.subr.bf16.mxu0 0
        %2665 = vmatpush1.bf16.msra.mxu0 %v2639
        %2666 = vmatprep.subr.bf16.mxu0 0
        %2667 = vmatpush1.bf16.msra.mxu0 %v2640
        %2668 = vmatprep.subr.bf16.mxu0 0
        %2669 = vmatpush1.bf16.msra.mxu0 %v2641
        %2670 = vmatprep.subr.bf16.mxu0 0
        %2671 = vmatpush1.bf16.msra.mxu0 %v2642
        %2672 = vmatprep.subr.bf16.mxu0 0
        %2673 = vmatpush1.bf16.msra.mxu0 %v2643
        %2674 = vmatprep.subr.bf16.mxu0 0
        %2675 = vmatpush1.bf16.msra.mxu0 %v2644
        %2676 = vmatprep.subr.bf16.mxu0 0
        %2677 = vmatpush1.bf16.msra.mxu0 %v2645
        %2678 = vmatprep.mubr.bf16.mxu0 %v2599
        %2679 = vmatmul.mubr.bf16.gmra.mrb[0].mxu0 %v2598
        %v2680 = vpop.f32.mrb[0].mxu0
        %v2681 = vadd.f32 0.0, %v2680
        %v2682 = vpop.f32.mrb[0].mxu0
        %v2683 = vpop.f32.mrb[0].mxu0
        %v2684 = vadd.f32 0.0, %v2683
        %v2685 = vpop.f32.mrb[0].mxu0
        %2686 = vmatprep.mubr.bf16.mxu0 %v2601
        %2687 = vmatmul.mubr.bf16.gmra.mrb[0].mxu0 %v2600
        %v2688 = vpop.f32.mrb[0].mxu0
        %v2689 = vadd.f32 0.0, %v2688
        %v2690 = vpop.f32.mrb[0].mxu0
        %v2691 = vpop.f32.mrb[0].mxu0
        %v2692 = vadd.f32 0.0, %v2691
        %v2693 = vpop.f32.mrb[0].mxu0
        %2694 = vmatprep.mubr.bf16.mxu0 %v2603
        %2695 = vmatmul.mubr.bf16.gmra.mrb[0].mxu0 %v2602
        %v2696 = vpop.f32.mrb[0].mxu0
        %v2697 = vadd.f32 0.0, %v2696
        %v2698 = vpop.f32.mrb[0].mxu0
        %v2699 = vpop.f32.mrb[0].mxu0
        %v2700 = vadd.f32 0.0, %v2699
        %v2701 = vpop.f32.mrb[0].mxu0
        %2702 = vmatprep.mubr.bf16.mxu0 %v2605
        %2703 = vmatmul.mubr.bf16.gmra.mrb[0].mxu0 %v2604
        %v2704 = vpop.f32.mrb[0].mxu0
        %v2705 = vadd.f32 0.0, %v2704
        %v2706 = vpop.f32.mrb[0].mxu0
        %v2707 = vpop.f32.mrb[0].mxu0
        %v2708 = vadd.f32 0.0, %v2707
        %v2709 = vpop.f32.mrb[0].mxu0
        %2710 = vmatprep.mubr.bf16.mxu0 %v2607
        %2711 = vmatmul.mubr.bf16.gmra.mrb[0].mxu0 %v2606
        %v2712 = vpop.f32.mrb[0].mxu0
        %v2713 = vadd.f32 0.0, %v2712
        %v2714 = vpop.f32.mrb[0].mxu0
        %v2715 = vpop.f32.mrb[0].mxu0
        %v2716 = vadd.f32 0.0, %v2715
        %v2717 = vpop.f32.mrb[0].mxu0
        %2718 = vmatprep.mubr.bf16.mxu0 %v2609
        %2719 = vmatmul.mubr.bf16.gmra.mrb[0].mxu0 %v2608
        %v2720 = vpop.f32.mrb[0].mxu0
        %v2721 = vadd.f32 0.0, %v2720
        %v2722 = vpop.f32.mrb[0].mxu0
        %v2723 = vpop.f32.mrb[0].mxu0
        %v2724 = vadd.f32 0.0, %v2723
        %v2725 = vpop.f32.mrb[0].mxu0
        %2726 = vmatprep.mubr.bf16.mxu0 %v2611
        %2727 = vmatmul.mubr.bf16.gmra.mrb[0].mxu0 %v2610
        %v2728 = vpop.f32.mrb[0].mxu0
        %v2729 = vadd.f32 0.0, %v2728
        %v2730 = vpop.f32.mrb[0].mxu0
        %v2731 = vpop.f32.mrb[0].mxu0
        %v2732 = vadd.f32 0.0, %v2731
        %v2733 = vpop.f32.mrb[0].mxu0
        %2734 = vmatprep.mubr.bf16.mxu0 %v2613
        %2735 = vmatmul.mubr.bf16.gmra.mrb[0].mxu0 %v2612
        %v2736 = vpop.f32.mrb[0].mxu0
        %v2737 = vadd.f32 0.0, %v2736
        %v2738 = vpop.f32.mrb[0].mxu0
        %v2739 = vpop.f32.mrb[0].mxu0
        %v2740 = vadd.f32 0.0, %v2739
        %v2741 = vpop.f32.mrb[0].mxu0
        %2742 = vmatprep.mubr.bf16.mxu0 %v2615
        %2743 = vmatmul.mubr.bf16.gmra.mrb[0].mxu0 %v2614
        %v2744 = vpop.f32.mrb[0].mxu0
        %v2745 = vadd.f32 0.0, %v2744
        %v2746 = vpop.f32.mrb[0].mxu0
        %v2747 = vpop.f32.mrb[0].mxu0
        %v2748 = vadd.f32 0.0, %v2747
        %v2749 = vpop.f32.mrb[0].mxu0
        %2750 = vmatprep.mubr.bf16.mxu0 %v2617
        %2751 = vmatmul.mubr.bf16.gmra.mrb[0].mxu0 %v2616
        %v2752 = vpop.f32.mrb[0].mxu0
        %v2753 = vadd.f32 0.0, %v2752
        %v2754 = vpop.f32.mrb[0].mxu0
        %v2755 = vpop.f32.mrb[0].mxu0
        %v2756 = vadd.f32 0.0, %v2755
        %v2757 = vpop.f32.mrb[0].mxu0
        %2758 = vmatprep.mubr.bf16.mxu0 %v2619
        %2759 = vmatmul.mubr.bf16.gmra.mrb[0].mxu0 %v2618
        %v2760 = vpop.f32.mrb[0].mxu0
        %v2761 = vadd.f32 0.0, %v2760
        %v2762 = vpop.f32.mrb[0].mxu0
        %v2763 = vpop.f32.mrb[0].mxu0
        %v2764 = vadd.f32 0.0, %v2763
        %v2765 = vpop.f32.mrb[0].mxu0
        %2766 = vmatprep.mubr.bf16.mxu0 %v2621
        %2767 = vmatmul.mubr.bf16.gmra.mrb[0].mxu0 %v2620
        %v2768 = vpop.f32.mrb[0].mxu0
        %v2769 = vadd.f32 0.0, %v2768
        %v2770 = vpop.f32.mrb[0].mxu0
        %v2771 = vpop.f32.mrb[0].mxu0
        %v2772 = vadd.f32 0.0, %v2771
        %v2773 = vpop.f32.mrb[0].mxu0
        %2774 = vmatprep.mubr.bf16.mxu0 %v2623
        %2775 = vmatmul.mubr.bf16.gmra.mrb[0].mxu0 %v2622
        %v2776 = vpop.f32.mrb[0].mxu0
        %v2777 = vadd.f32 0.0, %v2776
        %v2778 = vpop.f32.mrb[0].mxu0
        %v2779 = vpop.f32.mrb[0].mxu0
        %v2780 = vadd.f32 0.0, %v2779
        %v2781 = vpop.f32.mrb[0].mxu0
        %2782 = vmatprep.mubr.bf16.mxu0 %v2625
        %2783 = vmatmul.mubr.bf16.gmra.mrb[0].mxu0 %v2624
        %v2784 = vpop.f32.mrb[0].mxu0
        %v2785 = vadd.f32 0.0, %v2784
        %v2786 = vpop.f32.mrb[0].mxu0
        %v2787 = vpop.f32.mrb[0].mxu0
        %v2788 = vadd.f32 0.0, %v2787
        %v2789 = vpop.f32.mrb[0].mxu0
        %2790 = vmatprep.mubr.bf16.mxu0 %v2627
        %2791 = vmatmul.mubr.bf16.gmra.mrb[0].mxu0 %v2626
        %v2792 = vpop.f32.mrb[0].mxu0
        %v2793 = vadd.f32 0.0, %v2792
        %v2794 = vpop.f32.mrb[0].mxu0
        %v2795 = vpop.f32.mrb[0].mxu0
        %v2796 = vadd.f32 0.0, %v2795
        %v2797 = vpop.f32.mrb[0].mxu0
        %2798 = vmatprep.mubr.bf16.mxu0 %v2629
        %2799 = vmatmul.mubr.bf16.gmra.mrb[0].mxu0 %v2628
        %v2800 = vpop.f32.mrb[0].mxu0
        %v2801 = vadd.f32 0.0, %v2800
        %v2802 = vpop.f32.mrb[0].mxu0
        %v2803 = vpop.f32.mrb[0].mxu0
        %v2804 = vadd.f32 0.0, %v2803
        %v2805 = vpop.f32.mrb[0].mxu0
        %2806 = vdwg.mxu0
        %v2807 = vpack.c.bf16 %v2684, %v2681
        %v2808 = vpack.c.bf16 %v2692, %v2689
        %v2809 = vpack.c.bf16 %v2700, %v2697
        %v2810 = vpack.c.bf16 %v2708, %v2705
        %v2811 = vpack.c.bf16 %v2716, %v2713
        %v2812 = vpack.c.bf16 %v2724, %v2721
        %v2813 = vpack.c.bf16 %v2732, %v2729
        %v2814 = vpack.c.bf16 %v2740, %v2737
        %v2815 = vpack.c.bf16 %v2748, %v2745
        %v2816 = vpack.c.bf16 %v2756, %v2753
        %v2817 = vpack.c.bf16 %v2764, %v2761
        %v2818 = vpack.c.bf16 %v2772, %v2769
        %v2819 = vpack.c.bf16 %v2780, %v2777
        %v2820 = vpack.c.bf16 %v2788, %v2785
        %v2821 = vpack.c.bf16 %v2796, %v2793
        %v2822 = vpack.c.bf16 %v2804, %v2801
        %v2823 = vld [vmem:[#allocation10] sm:$0xf]
        %v2824 = vld [vmem:[#allocation10 + $0x4] sm:$0xf]
        %v2825 = vld [vmem:[#allocation10 + $0x8] sm:$0xf]
        %v2826 = vld [vmem:[#allocation10 + $0xc] sm:$0xf]
        %v2827 = vld [vmem:[#allocation10 + $0x10] sm:$0xf]
        %v2828 = vld [vmem:[#allocation10 + $0x14] sm:$0xf]
        %v2829 = vld [vmem:[#allocation10 + $0x18] sm:$0xf]
        %v2830 = vld [vmem:[#allocation10 + $0x1c] sm:$0xf]
        %v2831 = vld [vmem:[#allocation10 + $0x20] sm:$0xf]
        %v2832 = vld [vmem:[#allocation10 + $0x24] sm:$0xf]
        %v2833 = vld [vmem:[#allocation10 + $0x28] sm:$0xf]
        %v2834 = vld [vmem:[#allocation10 + $0x2c] sm:$0xf]
        %v2835 = vld [vmem:[#allocation10 + $0x30] sm:$0xf]
        %v2836 = vld [vmem:[#allocation10 + $0x34] sm:$0xf]
        %v2837 = vld [vmem:[#allocation10 + $0x38] sm:$0xf]
        %v2838 = vld [vmem:[#allocation10 + $0x3c] sm:$0xf]
        %v2839 = vld [vmem:[%s12] sm:$0x1]
        %v2841 = vlaneseq
        %v2842 = vshrl.u32 %v2841, 7
        %v2843 = vsub.s32 0, %v2842
        %v2844 = vrot.slane %v2839, %v2843
        %v2862 = vunpack.c.l.b16 %v2823
        %v2863 = vunpack.c.l.b16 %v2824
        %v2864 = vunpack.c.l.b16 %v2825
        %v2865 = vunpack.c.l.b16 %v2826
        %v2866 = vunpack.c.l.b16 %v2827
        %v2867 = vunpack.c.l.b16 %v2828
        %v2868 = vunpack.c.l.b16 %v2829
        %v2869 = vunpack.c.l.b16 %v2830
        %v2870 = vunpack.c.l.b16 %v2831
        %v2871 = vunpack.c.l.b16 %v2832
        %v2872 = vunpack.c.l.b16 %v2833
        %v2873 = vunpack.c.l.b16 %v2834
        %v2874 = vunpack.c.l.b16 %v2835
        %v2875 = vunpack.c.l.b16 %v2836
        %v2876 = vunpack.c.l.b16 %v2837
        %v2877 = vunpack.c.l.b16 %v2838
        %v2878 = vpack.c.b16 %v2863, %v2862
        %v2879 = vpack.c.b16 %v2865, %v2864
        %v2880 = vpack.c.b16 %v2867, %v2866
        %v2881 = vpack.c.b16 %v2869, %v2868
        %v2882 = vpack.c.b16 %v2871, %v2870
        %v2883 = vpack.c.b16 %v2873, %v2872
        %v2884 = vpack.c.b16 %v2875, %v2874
        %v2885 = vpack.c.b16 %v2877, %v2876
        %2894 = vmatprep.subr.bf16.mxu0 0
        %2895 = vmatpush1.bf16.msra.mxu0 %v2878
        %2896 = vmatprep.subr.bf16.mxu0 0
        %2897 = vmatpush1.bf16.msra.mxu0 %v2879
        %2898 = vmatprep.subr.bf16.mxu0 0
        %2899 = vmatpush1.bf16.msra.mxu0 %v2880
        %2900 = vmatprep.subr.bf16.mxu0 0
        %2901 = vmatpush1.bf16.msra.mxu0 %v2881
        %2902 = vmatprep.subr.bf16.mxu0 0
        %2903 = vmatpush1.bf16.msra.mxu0 %v2882
        %2904 = vmatprep.subr.bf16.mxu0 0
        %2905 = vmatpush1.bf16.msra.mxu0 %v2883
        %2906 = vmatprep.subr.bf16.mxu0 0
        %2907 = vmatpush1.bf16.msra.mxu0 %v2884
        %2908 = vmatprep.subr.bf16.mxu0 0
        %2909 = vmatpush1.bf16.msra.mxu0 %v2885
        %2910 = vmatprep.subr.bf16.mxu0 0
        %2911 = vmatpush1.bf16.msra.mxu0 0
        %2912 = vmatprep.subr.bf16.mxu0 0
        %2913 = vmatpush1.bf16.msra.mxu0 0
        %2914 = vmatprep.subr.bf16.mxu0 0
        %2915 = vmatpush1.bf16.msra.mxu0 0
        %2916 = vmatprep.subr.bf16.mxu0 0
        %2917 = vmatpush1.bf16.msra.mxu0 0
        %2918 = vmatprep.subr.bf16.mxu0 0
        %2919 = vmatpush1.bf16.msra.mxu0 0
        %2920 = vmatprep.subr.bf16.mxu0 0
        %2921 = vmatpush1.bf16.msra.mxu0 0
        %2922 = vmatprep.subr.bf16.mxu0 0
        %2923 = vmatpush1.bf16.msra.mxu0 0
        %2924 = vmatprep.subr.bf16.mxu0 0
        %2925 = vmatpush1.bf16.msra.mxu0 0
        %2926 = vmatprep.mubr.bf16.mxu0 0
        %2927 = vmatmul.mubr.bf16.gmra.mrb[0].mxu0 %v2807
        %v2928 = vpop.f32.mrb[0].mxu0
        %v2929 = vadd.f32 %v2844, %v2928
        %v2930 = vpop.f32.mrb[0].mxu0
        %v2931 = vpop.f32.mrb[0].mxu0
        %v2932 = vadd.f32 %v2844, %v2931
        %v2933 = vpop.f32.mrb[0].mxu0
        %2934 = vmatprep.mubr.bf16.mxu0 0
        %2935 = vmatmul.mubr.bf16.gmra.mrb[0].mxu0 %v2808
        %v2936 = vpop.f32.mrb[0].mxu0
        %v2937 = vadd.f32 %v2844, %v2936
        %v2938 = vpop.f32.mrb[0].mxu0
        %v2939 = vpop.f32.mrb[0].mxu0
        %v2940 = vadd.f32 %v2844, %v2939
        %v2941 = vpop.f32.mrb[0].mxu0
        %2942 = vmatprep.mubr.bf16.mxu0 0
        %2943 = vmatmul.mubr.bf16.gmra.mrb[0].mxu0 %v2809
        %v2944 = vpop.f32.mrb[0].mxu0
        %v2945 = vadd.f32 %v2844, %v2944
        %v2946 = vpop.f32.mrb[0].mxu0
        %v2947 = vpop.f32.mrb[0].mxu0
        %v2948 = vadd.f32 %v2844, %v2947
        %v2949 = vpop.f32.mrb[0].mxu0
        %2950 = vmatprep.mubr.bf16.mxu0 0
        %2951 = vmatmul.mubr.bf16.gmra.mrb[0].mxu0 %v2810
        %v2952 = vpop.f32.mrb[0].mxu0
        %v2953 = vadd.f32 %v2844, %v2952
        %v2954 = vpop.f32.mrb[0].mxu0
        %v2955 = vpop.f32.mrb[0].mxu0
        %v2956 = vadd.f32 %v2844, %v2955
        %v2957 = vpop.f32.mrb[0].mxu0
        %2958 = vmatprep.mubr.bf16.mxu0 0
        %2959 = vmatmul.mubr.bf16.gmra.mrb[0].mxu0 %v2811
        %v2960 = vpop.f32.mrb[0].mxu0
        %v2961 = vadd.f32 %v2844, %v2960
        %v2962 = vpop.f32.mrb[0].mxu0
        %v2963 = vpop.f32.mrb[0].mxu0
        %v2964 = vadd.f32 %v2844, %v2963
        %v2965 = vpop.f32.mrb[0].mxu0
        %2966 = vmatprep.mubr.bf16.mxu0 0
        %2967 = vmatmul.mubr.bf16.gmra.mrb[0].mxu0 %v2812
        %v2968 = vpop.f32.mrb[0].mxu0
        %v2969 = vadd.f32 %v2844, %v2968
        %v2970 = vpop.f32.mrb[0].mxu0
        %v2971 = vpop.f32.mrb[0].mxu0
        %v2972 = vadd.f32 %v2844, %v2971
        %v2973 = vpop.f32.mrb[0].mxu0
        %2974 = vmatprep.mubr.bf16.mxu0 0
        %2975 = vmatmul.mubr.bf16.gmra.mrb[0].mxu0 %v2813
        %v2976 = vpop.f32.mrb[0].mxu0
        %v2977 = vadd.f32 %v2844, %v2976
        %v2978 = vpop.f32.mrb[0].mxu0
        %v2979 = vpop.f32.mrb[0].mxu0
        %v2980 = vadd.f32 %v2844, %v2979
        %v2981 = vpop.f32.mrb[0].mxu0
        %2982 = vmatprep.mubr.bf16.mxu0 0
        %2983 = vmatmul.mubr.bf16.gmra.mrb[0].mxu0 %v2814
        %v2984 = vpop.f32.mrb[0].mxu0
        %v2985 = vadd.f32 %v2844, %v2984
        %v2986 = vpop.f32.mrb[0].mxu0
        %v2987 = vpop.f32.mrb[0].mxu0
        %v2988 = vadd.f32 %v2844, %v2987
        %v2989 = vpop.f32.mrb[0].mxu0
        %2990 = vmatprep.mubr.bf16.mxu0 0
        %2991 = vmatmul.mubr.bf16.gmra.mrb[0].mxu0 %v2815
        %v2992 = vpop.f32.mrb[0].mxu0
        %v2993 = vadd.f32 %v2844, %v2992
        %v2994 = vpop.f32.mrb[0].mxu0
        %v2995 = vpop.f32.mrb[0].mxu0
        %v2996 = vadd.f32 %v2844, %v2995
        %v2997 = vpop.f32.mrb[0].mxu0
        %2998 = vmatprep.mubr.bf16.mxu0 0
        %2999 = vmatmul.mubr.bf16.gmra.mrb[0].mxu0 %v2816
        %v3000 = vpop.f32.mrb[0].mxu0
        %v3001 = vadd.f32 %v2844, %v3000
        %v3002 = vpop.f32.mrb[0].mxu0
        %v3003 = vpop.f32.mrb[0].mxu0
        %v3004 = vadd.f32 %v2844, %v3003
        %v3005 = vpop.f32.mrb[0].mxu0
        %3006 = vmatprep.mubr.bf16.mxu0 0
        %3007 = vmatmul.mubr.bf16.gmra.mrb[0].mxu0 %v2817
        %v3008 = vpop.f32.mrb[0].mxu0
        %v3009 = vadd.f32 %v2844, %v3008
        %v3010 = vpop.f32.mrb[0].mxu0
        %v3011 = vpop.f32.mrb[0].mxu0
        %v3012 = vadd.f32 %v2844, %v3011
        %v3013 = vpop.f32.mrb[0].mxu0
        %3014 = vmatprep.mubr.bf16.mxu0 0
        %3015 = vmatmul.mubr.bf16.gmra.mrb[0].mxu0 %v2818
        %v3016 = vpop.f32.mrb[0].mxu0
        %v3017 = vadd.f32 %v2844, %v3016
        %v3018 = vpop.f32.mrb[0].mxu0
        %v3019 = vpop.f32.mrb[0].mxu0
        %v3020 = vadd.f32 %v2844, %v3019
        %v3021 = vpop.f32.mrb[0].mxu0
        %3022 = vmatprep.mubr.bf16.mxu0 0
        %3023 = vmatmul.mubr.bf16.gmra.mrb[0].mxu0 %v2819
        %v3024 = vpop.f32.mrb[0].mxu0
        %v3025 = vadd.f32 %v2844, %v3024
        %v3026 = vpop.f32.mrb[0].mxu0
        %v3027 = vpop.f32.mrb[0].mxu0
        %v3028 = vadd.f32 %v2844, %v3027
        %v3029 = vpop.f32.mrb[0].mxu0
        %3030 = vmatprep.mubr.bf16.mxu0 0
        %3031 = vmatmul.mubr.bf16.gmra.mrb[0].mxu0 %v2820
        %v3032 = vpop.f32.mrb[0].mxu0
        %v3033 = vadd.f32 %v2844, %v3032
        %v3034 = vpop.f32.mrb[0].mxu0
        %v3035 = vpop.f32.mrb[0].mxu0
        %v3036 = vadd.f32 %v2844, %v3035
        %v3037 = vpop.f32.mrb[0].mxu0
        %3038 = vmatprep.mubr.bf16.mxu0 0
        %3039 = vmatmul.mubr.bf16.gmra.mrb[0].mxu0 %v2821
        %v3040 = vpop.f32.mrb[0].mxu0
        %v3041 = vadd.f32 %v2844, %v3040
        %v3042 = vpop.f32.mrb[0].mxu0
        %v3043 = vpop.f32.mrb[0].mxu0
        %v3044 = vadd.f32 %v2844, %v3043
        %v3045 = vpop.f32.mrb[0].mxu0
        %3046 = vmatprep.mubr.bf16.mxu0 0
        %3047 = vmatmul.mubr.bf16.gmra.mrb[0].mxu0 %v2822
        %v3048 = vpop.f32.mrb[0].mxu0
        %v3049 = vadd.f32 %v2844, %v3048
        %v3050 = vpop.f32.mrb[0].mxu0
        %v3051 = vpop.f32.mrb[0].mxu0
        %v3052 = vadd.f32 %v2844, %v3051
        %v3053 = vpop.f32.mrb[0].mxu0
        %3054 = vdwg.mxu0
        %v3055 = vadd.f32 %v514, %v2929
        %v3056 = vadd.f32 %v515, %v2932
        %v3057 = vadd.f32 %v516, %v2937
        %v3058 = vadd.f32 %v517, %v2940
        %v3059 = vadd.f32 %v518, %v2945
        %v3060 = vadd.f32 %v519, %v2948
        %v3061 = vadd.f32 %v520, %v2953
        %v3062 = vadd.f32 %v521, %v2956
        %v3063 = vadd.f32 %v522, %v2961
        %v3064 = vadd.f32 %v523, %v2964
        %v3065 = vadd.f32 %v524, %v2969
        %v3066 = vadd.f32 %v525, %v2972
        %v3067 = vadd.f32 %v526, %v2977
        %v3068 = vadd.f32 %v527, %v2980
        %v3069 = vadd.f32 %v528, %v2985
        %v3070 = vadd.f32 %v529, %v2988
        %v3071 = vadd.f32 %v530, %v2993
        %v3072 = vadd.f32 %v531, %v2996
        %v3073 = vadd.f32 %v532, %v3001
        %v3074 = vadd.f32 %v533, %v3004
        %v3075 = vadd.f32 %v534, %v3009
        %v3076 = vadd.f32 %v535, %v3012
        %v3077 = vadd.f32 %v536, %v3017
        %v3078 = vadd.f32 %v537, %v3020
        %v3079 = vadd.f32 %v538, %v3025
        %v3080 = vadd.f32 %v539, %v3028
        %v3081 = vadd.f32 %v540, %v3033
        %v3082 = vadd.f32 %v541, %v3036
        %v3083 = vadd.f32 %v542, %v3041
        %v3084 = vadd.f32 %v543, %v3044
        %v3085 = vadd.f32 %v544, %v3049
        %v3086 = vadd.f32 %v545, %v3052
        %3087 = vst [vmem:[%s512] sm:$0xff] %v3055
        %3088 = vst [vmem:[%s512 + $0x8] sm:$0xff] %v3056
        %3089 = vst [vmem:[%s512 + $0x10] sm:$0xff] %v3057
        %3090 = vst [vmem:[%s512 + $0x18] sm:$0xff] %v3058
        %3091 = vst [vmem:[%s512 + $0x20] sm:$0xff] %v3059
        %3092 = vst [vmem:[%s512 + $0x28] sm:$0xff] %v3060
        %3093 = vst [vmem:[%s512 + $0x30] sm:$0xff] %v3061
        %3094 = vst [vmem:[%s512 + $0x38] sm:$0xff] %v3062
        %3095 = vst [vmem:[%s512 + $0x40] sm:$0xff] %v3063
        %3096 = vst [vmem:[%s512 + $0x48] sm:$0xff] %v3064
        %3097 = vst [vmem:[%s512 + $0x50] sm:$0xff] %v3065
        %3098 = vst [vmem:[%s512 + $0x58] sm:$0xff] %v3066
        %3099 = vst [vmem:[%s512 + $0x60] sm:$0xff] %v3067
        %3100 = vst [vmem:[%s512 + $0x68] sm:$0xff] %v3068
        %3101 = vst [vmem:[%s512 + $0x70] sm:$0xff] %v3069
        %3102 = vst [vmem:[%s512 + $0x78] sm:$0xff] %v3070
        %3103 = vst [vmem:[%s512 + $0x80] sm:$0xff] %v3071
        %3104 = vst [vmem:[%s512 + $0x88] sm:$0xff] %v3072
        %3105 = vst [vmem:[%s512 + $0x90] sm:$0xff] %v3073
        %3106 = vst [vmem:[%s512 + $0x98] sm:$0xff] %v3074
        %3107 = vst [vmem:[%s512 + $0xa0] sm:$0xff] %v3075
        %3108 = vst [vmem:[%s512 + $0xa8] sm:$0xff] %v3076
        %3109 = vst [vmem:[%s512 + $0xb0] sm:$0xff] %v3077
        %3110 = vst [vmem:[%s512 + $0xb8] sm:$0xff] %v3078
        %3111 = vst [vmem:[%s512 + $0xc0] sm:$0xff] %v3079
        %3112 = vst [vmem:[%s512 + $0xc8] sm:$0xff] %v3080
        %3113 = vst [vmem:[%s512 + $0xd0] sm:$0xff] %v3081
        %3114 = vst [vmem:[%s512 + $0xd8] sm:$0xff] %v3082
        %3115 = vst [vmem:[%s512 + $0xe0] sm:$0xff] %v3083
        %3116 = vst [vmem:[%s512 + $0xe8] sm:$0xff] %v3084
        %3117 = vst [vmem:[%s512 + $0xf0] sm:$0xff] %v3085
        %3118 = vst [vmem:[%s512 + $0xf8] sm:$0xff] %v3086
        %s3119 = sand.u32 %s318, 1
        %s3120 = scalar_lea.sflag [#allocation4], %s3119
        %s3121 = sand.u32 %s318, 1
        %s3122 = smul.addr %s3121, 256
        %s3123 = scalar_lea.vmem [#allocation11], %s3122
        // Predicated region
        $region93: #{tpu_custom_call.1} parent=71 // pred_check
          %p3124 = pneg %p328
        $region94: #{tpu_custom_call.1} parent=71 // pred_check_branch
          %3126 = sbr.rel (%p3124) target = $region96
        $region95: #{tpu_custom_call.1} parent=71 // pred_region
          %s3128 = ssub.s32 4096, 4096
          %3129 = vsyncadd %s3120, %s3128
          %s3130 = smul.addr %s32, 32
          %s3131 = smul.addr %s3130, 128
          %s3132 = scalar_lea.hbm %s13, %s3131
          %s3133 = sshll.u32 %s3123, 4
          %s3134 = int_to_ptr.vmem [resolvable:$true] %s3133
          %3139 = dma.vmem_to_hbm [thread:$0]  %s3134, 4096, %s3132, %s3120, 128, 128, 8
        $region96: #{tpu_custom_call.1} parent=71 // pred_fallthru
          _
      $region72: #{tpu_custom_call.1} parent=5 // pred_fallthru
        _
      %p3140 = scmp.le.s32.totalorder 2, %s27
      // Predicated region
      $region97: #{tpu_custom_call.1} parent=5 // pred_check
        %p3141 = pneg %p3140
      $region98: #{tpu_custom_call.1} parent=5 // pred_check_branch
        %3143 = sbr.rel (%p3141) target = $region100
      $region99: #{tpu_custom_call.1} parent=5 // pred_region
        %s3144 = ssub.s32 %s27, 2
        // Predicated region
        $region101: #{tpu_custom_call.1} parent=99 // pred_check
          %p3145 = pneg %p334
        $region102: #{tpu_custom_call.1} parent=99 // pred_check_branch
          %3147 = sbr.rel (%p3145) target = $region104
        $region103: #{tpu_custom_call.1} parent=99 // pred_region
          %s3148 = sand.u32 %s319, 1
          %s3149 = scalar_lea.sflag [#allocation4], %s3148
          %s3150 = sand.u32 %s319, 1
          %s3151 = smul.addr %s3150, 256
          %s3152 = scalar_lea.vmem [#allocation11], %s3151
          %3153 = dma.done %s3149, 4096
        $region104: #{tpu_custom_call.1} parent=99 // pred_fallthru
          _
      $region100: #{tpu_custom_call.1} parent=5 // pred_fallthru
        _
    $region6: #{tpu_custom_call.1} parent=1 // loop_footer
      %s31 = sadd.s32 1, %s27
    $region7: #{tpu_custom_call.1} parent=1 // loop_footer_branch
      %26 = sbr.rel target = $region3
    $region8: #{tpu_custom_call.1} parent=1 // loop_exit
      _
    %3154 = vsyncpa [#allocation3], 1
    %s3155 = scalar_lea.sflag [#allocation3], 1
    %3156 = vsyncpa %s3155, 1
    %3157 = vsyncpa [#allocation6], 1
    %3158 = vsyncpa [#allocation9], 1
    %3159 = vsyncpa [#allocation4], 1
    %s3160 = scalar_lea.sflag [#allocation4], 1
    %3161 = vsyncpa %s3160, 1

</llo_original>
